<compile_context>
chip_gen: v7x
topology: tpu7x:2x2x1
jax: 0.10.0
libtpu: 0.0.40
codegen_flags: <defaults>
</compile_context>

<pallas_src>
import math
import functools

import jax
import jax.numpy as jnp
from jax.experimental import pallas as pl
from jax.experimental.pallas import tpu as pltpu

FRAMES = 180
B = 2


# ----------------------------- Pallas kernel --------------------------------
def _simple_conv1d_kernel(x_ref, t_ref, w_ref, b_ref, o_ref, *, batch, frames):
    """x_ref: (B*F, 4) f32.  t_ref: (B,) f32 in SMEM.
    w_ref: (448, 128) bf16 coalesced weight slab:
        rows   0: 24  -> conv1 taps (3*8,  32)  [cin padded 5->8, segment padded to 32 rows]
        rows  32:128  -> conv2 taps (3*32, 64)
        rows 128:320  -> conv3 taps (3*64, 128)
        rows 320:448  -> fc weight  (128, 4)
    b_ref: (8, 128) f32; rows 0..3 = conv1/conv2/conv3/fc biases.
    o_ref: (B*F, 4) f32.
    """
    bf = batch * frames

    # Per-batch frame-boundary masks + time column (equality checks, no modulo).
    row = jax.lax.broadcasted_iota(jnp.int32, (bf, 1), 0)
    is_first = row == 0
    is_last = row == frames - 1
    for b in range(1, batch):
        is_first = jnp.logical_or(is_first, row == b * frames)
        is_last = jnp.logical_or(is_last, row == (b + 1) * frames - 1)

    t_col = jnp.full((bf, 1), t_ref[batch - 1], dtype=jnp.float32)
    for b in range(batch - 2, -1, -1):
        t_col = jnp.where(row < (b + 1) * frames, t_ref[b], t_col)

    def taps(a):
        # [a_{l-1} | a_l | a_{l+1}] with zeros at per-batch frame boundaries
        # (this is exactly the padding=1 zero padding of the Conv1d).
        a_m1 = jnp.where(is_first, 0.0, pltpu.roll(a, shift=1, axis=0))
        a_p1 = jnp.where(is_last, 0.0, pltpu.roll(a, shift=bf - 1, axis=0))
        return jnp.concatenate([a_m1, a, a_p1], axis=1).astype(jnp.bfloat16)

    def conv_relu(a, w_row0, cin, cout, bias_row):
        w = w_ref[w_row0:w_row0 + 3 * cin, 0:cout]          # (3*cin, cout) bf16
        bias = b_ref[bias_row:bias_row + 1, 0:cout]         # (1, cout) f32
        acc = jnp.dot(taps(a), w, preferred_element_type=jnp.float32)
        return jnp.maximum(acc + bias, 0.0)                 # ReLU, f32

    # conv1 input: [x(4) | t | 0 0 0]  (channels padded 5 -> 8), built in-kernel.
    a0 = jnp.concatenate(
        [x_ref[...], t_col, jnp.zeros((bf, 3), jnp.float32)], axis=1)   # (bf, 8)

    h = conv_relu(a0, 0, 8, 32, 0)          # (bf, 32)
    h = conv_relu(h, 32, 32, 64, 1)         # (bf, 64)
    h = conv_relu(h, 128, 64, 128, 2)       # (bf, 128)

    wfc = w_ref[320:448, 0:4]               # (128, 4) bf16
    bfc = b_ref[3:4, 0:4]                   # (1, 4) f32
    out = jnp.dot(h.astype(jnp.bfloat16), wfc,
                  preferred_element_type=jnp.float32) + bfc
    o_ref[...] = out.astype(o_ref.dtype)


# ----------------------------- wrapper ---------------------------------------
@jax.jit
def simple_conv1d_forward(x, t, packed_params):
    """Equivalent of SimpleConv1d.forward(x, t); x: (B, FRAMES, 4), t: (B,)."""
    wslab, bslab = packed_params
    b, frames, c = x.shape

    x2d = x.reshape(b * frames, c)          # contiguous reshape: free layout glue

    kernel = functools.partial(_simple_conv1d_kernel, batch=b, frames=frames)
    out2d = pl.pallas_call(
        kernel,
        out_shape=jax.ShapeDtypeStruct((b * frames, 4), jnp.float32),
        in_specs=[
            pl.BlockSpec(memory_space=pltpu.MemorySpace.VMEM),   # x
            pl.BlockSpec(memory_space=pltpu.MemorySpace.SMEM),   # t (scalars)
            pl.BlockSpec(memory_space=pltpu.MemorySpace.VMEM),   # coalesced weights
            pl.BlockSpec(memory_space=pltpu.MemorySpace.VMEM),   # f32 biases
        ],
        out_specs=pl.BlockSpec(memory_space=pltpu.MemorySpace.VMEM),
    )(x2d, t.astype(jnp.float32), wslab, bslab)
    return out2d.reshape(b, frames, 4)


# ----------------------------- params ----------------------------------------
def init_params(key):
    ks = jax.random.split(key, 8)

    def conv_w(k, cout, cin):
        return jax.random.normal(k, (cout, cin, 3), jnp.float32) / math.sqrt(cin * 3)

    w1 = conv_w(ks[0], 32, 5)
    b1 = jax.random.normal(ks[1], (32,), jnp.float32) * 0.1
    w2 = conv_w(ks[2], 64, 32)
    b2 = jax.random.normal(ks[3], (64,), jnp.float32) * 0.1
    w3 = conv_w(ks[4], 128, 64)
    b3 = jax.random.normal(ks[5], (128,), jnp.float32) * 0.1
    wfc = jax.random.normal(ks[6], (4, 128), jnp.float32) / math.sqrt(128)
    bfc = jax.random.normal(ks[7], (4,), jnp.float32) * 0.1
    return (w1, b1, w2, b2, w3, b3, wfc, bfc)


def pack_params(params):
    """Pack PyTorch-layout weights into one bf16 weight slab + one f32 bias slab."""
    w1, b1, w2, b2, w3, b3, wfc, bfc = params

    def conv_block(w, cin_pad):
        # (cout, cin, 3) -> (3*cin_pad, cout); rows [k*cin_pad : k*cin_pad+cin] = W[:,:,k].T
        cout, cin, _ = w.shape
        blocks = []
        for k in range(3):
            tap = w[:, :, k].T                                       # (cin, cout)
            if cin_pad > cin:
                tap = jnp.concatenate(
                    [tap, jnp.zeros((cin_pad - cin, cout), w.dtype)], axis=0)
            blocks.append(tap)
        return jnp.concatenate(blocks, axis=0)                       # (3*cin_pad, cout)

    def lane_pad(m, width=128):
        return jnp.pad(m, ((0, 0), (0, width - m.shape[1])))

    def row_pad(m, rows):
        return jnp.pad(m, ((0, rows - m.shape[0]), (0, 0)))

    w1b = row_pad(lane_pad(conv_block(w1, 8)), 32)    # rows   0: 32 (valid 0:24), cols 0:32
    w2b = lane_pad(conv_block(w2, 32))                # rows  32:128,              cols 0:64
    w3b = lane_pad(conv_block(w3, 64))                # rows 128:320,              cols 0:128
    wfcb = lane_pad(wfc.T)                            # rows 320:448,              cols 0:4
    wslab = jnp.concatenate([w1b, w2b, w3b, wfcb], axis=0).astype(jnp.bfloat16)  # (448,128)

    bslab = jnp.zeros((8, 128), jnp.float32)
    bslab = (bslab.at[0, :32].set(b1)
                  .at[1, :64].set(b2)
                  .at[2, :128].set(b3)
                  .at[3, :4].set(bfc))
    return (wslab, bslab)


# ----------------------------- pure-JAX reference ----------------------------
def reference_forward(x, t, params):
    w1, b1, w2, b2, w3, b3, wfc, bfc = params
    b = x.shape[0]
    t_chan = jnp.broadcast_to(t.astype(x.dtype)[:, None, None], (b, FRAMES, 1))
    h = jnp.concatenate([x, t_chan], axis=2)      # (B, F, 5)
    h = jnp.transpose(h, (0, 2, 1))               # (B, 5, F)

    def conv(v, w, bb):
        y = jax.lax.conv_general_dilated(
            v, w, window_strides=(1,), padding=((1, 1),),
            dimension_numbers=("NCH", "OIH", "NCH"))
        return jax.nn.relu(y + bb[None, :, None])

    h = conv(h, w1, b1)
    h = conv(h, w2, b2)
    h = conv(h, w3, b3)
    h = jnp.transpose(h, (0, 2, 1))               # (B, F, 128)
    return h @ wfc.T + bfc


# ----------------------------- main -------------------------------------------
if __name__ == "__main__":
    key = jax.random.PRNGKey(0)
    kx, kt, kp = jax.random.split(key, 3)

    x = jax.random.normal(kx, (B, FRAMES, 4), jnp.float32)
    t = jax.random.uniform(kt, (B,), jnp.float32)

    params = init_params(kp)
    packed = pack_params(params)

    out = jax.block_until_ready(simple_conv1d_forward(x, t, packed))
    ref = reference_forward(x, t, params)

    assert out.shape == (B, FRAMES, 4)
    # bf16 MXU operands with f32 accumulation (biases kept f32) -> ~1% drift allowed.
    assert jnp.allclose(out, ref, rtol=3e-2, atol=3e-2)

    print("KERNEL_OK")
</pallas_src>

<mosaic_0001>
module attributes {stable_mosaic.version = 11 : i64} {
  func.func @_simple_conv1d_kernel(%arg0: memref<360x4xf32, #tpu.memory_space<vmem>>, %arg1: memref<2xf32, #tpu.memory_space<smem>>, %arg2: memref<448x128xbf16, #tpu.memory_space<vmem>>, %arg3: memref<8x128xf32, #tpu.memory_space<vmem>>, %arg4: memref<360x4xf32, #tpu.memory_space<vmem>>) attributes {dimension_semantics = [], scalar_prefetch = 0 : i64, scratch_operands = 0 : i64, tpu.core_type = #tpu.core_type<tc>} {
    %0 = tpu.iota {dimensions = array<i32: 0>} : vector<360x1xi32>
    %c0_i32 = arith.constant 0 : i32
    %1 = vector.broadcast %c0_i32 : i32 to vector<360x1xi32>
    %2 = arith.cmpi eq, %0, %1 : vector<360x1xi32>
    %c179_i32 = arith.constant 179 : i32
    %3 = vector.broadcast %c179_i32 : i32 to vector<360x1xi32>
    %4 = arith.cmpi eq, %0, %3 : vector<360x1xi32>
    %c180_i32 = arith.constant 180 : i32
    %5 = vector.broadcast %c180_i32 : i32 to vector<360x1xi32>
    %6 = arith.cmpi eq, %0, %5 : vector<360x1xi32>
    %7 = arith.ori %2, %6 : vector<360x1xi1>
    %c359_i32 = arith.constant 359 : i32
    %8 = vector.broadcast %c359_i32 : i32 to vector<360x1xi32>
    %9 = arith.cmpi eq, %0, %8 : vector<360x1xi32>
    %10 = arith.ori %4, %9 : vector<360x1xi1>
    %c1 = arith.constant 1 : index
    %11 = memref.load %arg1[%c1] : memref<2xf32, #tpu.memory_space<smem>>
    %12 = vector.broadcast %11 : f32 to vector<360x1xf32>
    %c180_i32_0 = arith.constant 180 : i32
    %13 = vector.broadcast %c180_i32_0 : i32 to vector<360x1xi32>
    %14 = arith.cmpi slt, %0, %13 : vector<360x1xi32>
    %c0 = arith.constant 0 : index
    %15 = memref.load %arg1[%c0] : memref<2xf32, #tpu.memory_space<smem>>
    %16 = vector.broadcast %15 : f32 to vector<360x1xf32>
    %17 = arith.select %14, %16, %12 : vector<360x1xi1>, vector<360x1xf32>
    %c0_1 = arith.constant 0 : index
    %c0_2 = arith.constant 0 : index
    %18 = vector.load %arg0[%c0_1, %c0_2] : memref<360x4xf32, #tpu.memory_space<vmem>>, vector<360x4xf32>
    %cst = arith.constant 0.000000e+00 : f32
    %19 = vector.broadcast %cst : f32 to vector<360x3xf32>
    %20 = tpu.concatenate %18, %17, %19 in 1 : vector<360x4xf32>, vector<360x1xf32>, vector<360x3xf32> -> vector<360x8xf32>
    %c0_3 = arith.constant 0 : index
    %c0_4 = arith.constant 0 : index
    %21 = vector.load %arg2[%c0_3, %c0_4] : memref<448x128xbf16, #tpu.memory_space<vmem>>, vector<24x32xbf16>
    %c0_5 = arith.constant 0 : index
    %c0_6 = arith.constant 0 : index
    %22 = vector.load %arg3[%c0_5, %c0_6] : memref<8x128xf32, #tpu.memory_space<vmem>>, vector<1x32xf32>
    %c1_i32 = arith.constant 1 : i32
    %23 = tpu.dynamic_rotate %20 by %c1_i32 dim 0 : vector<360x8xf32>, i32 -> vector<360x8xf32>
    %cst_7 = arith.constant 0.000000e+00 : f32
    %24 = vector.shape_cast %7 : vector<360x1xi1> to vector<360x1xi1>
    %25 = vector.broadcast %24 : vector<360x1xi1> to vector<360x8xi1>
    %26 = vector.broadcast %cst_7 : f32 to vector<360x8xf32>
    %27 = arith.select %25, %26, %23 : vector<360x8xi1>, vector<360x8xf32>
    %c359_i32_8 = arith.constant 359 : i32
    %28 = tpu.dynamic_rotate %20 by %c359_i32_8 dim 0 : vector<360x8xf32>, i32 -> vector<360x8xf32>
    %cst_9 = arith.constant 0.000000e+00 : f32
    %29 = vector.shape_cast %10 : vector<360x1xi1> to vector<360x1xi1>
    %30 = vector.broadcast %29 : vector<360x1xi1> to vector<360x8xi1>
    %31 = vector.broadcast %cst_9 : f32 to vector<360x8xf32>
    %32 = arith.select %30, %31, %28 : vector<360x8xi1>, vector<360x8xf32>
    %33 = tpu.concatenate %27, %20, %32 in 1 : vector<360x8xf32>, vector<360x8xf32>, vector<360x8xf32> -> vector<360x24xf32>
    %34 = arith.truncf %33 : vector<360x24xf32> to vector<360x24xbf16>
    %cst_10 = arith.constant dense<0.000000e+00> : vector<360x32xf32>
    %35 = tpu.matmul %34, %21, %cst_10 {dimension_numbers = #tpu.dot_dimension_numbers<[1], [0], [0], [1], [0, 0, 1, 1], [], []>} : vector<360x24xbf16>, vector<24x32xbf16>, vector<360x32xf32> -> vector<360x32xf32>
    %36 = vector.broadcast %22 : vector<1x32xf32> to vector<360x32xf32>
    %37 = arith.addf %35, %36 : vector<360x32xf32>
    %cst_11 = arith.constant 0.000000e+00 : f32
    %38 = vector.broadcast %cst_11 : f32 to vector<360x32xf32>
    %39 = arith.maximumf %37, %38 : vector<360x32xf32>
    %c32 = arith.constant 32 : index
    %c0_12 = arith.constant 0 : index
    %40 = vector.load %arg2[%c32, %c0_12] : memref<448x128xbf16, #tpu.memory_space<vmem>>, vector<96x64xbf16>
    %c1_13 = arith.constant 1 : index
    %c0_14 = arith.constant 0 : index
    %41 = vector.load %arg3[%c1_13, %c0_14] : memref<8x128xf32, #tpu.memory_space<vmem>>, vector<1x64xf32>
    %c1_i32_15 = arith.constant 1 : i32
    %42 = tpu.dynamic_rotate %39 by %c1_i32_15 dim 0 : vector<360x32xf32>, i32 -> vector<360x32xf32>
    %cst_16 = arith.constant 0.000000e+00 : f32
    %43 = vector.shape_cast %7 : vector<360x1xi1> to vector<360x1xi1>
    %44 = vector.broadcast %43 : vector<360x1xi1> to vector<360x32xi1>
    %45 = vector.broadcast %cst_16 : f32 to vector<360x32xf32>
    %46 = arith.select %44, %45, %42 : vector<360x32xi1>, vector<360x32xf32>
    %c359_i32_17 = arith.constant 359 : i32
    %47 = tpu.dynamic_rotate %39 by %c359_i32_17 dim 0 : vector<360x32xf32>, i32 -> vector<360x32xf32>
    %cst_18 = arith.constant 0.000000e+00 : f32
    %48 = vector.shape_cast %10 : vector<360x1xi1> to vector<360x1xi1>
    %49 = vector.broadcast %48 : vector<360x1xi1> to vector<360x32xi1>
    %50 = vector.broadcast %cst_18 : f32 to vector<360x32xf32>
    %51 = arith.select %49, %50, %47 : vector<360x32xi1>, vector<360x32xf32>
    %52 = tpu.concatenate %46, %39, %51 in 1 : vector<360x32xf32>, vector<360x32xf32>, vector<360x32xf32> -> vector<360x96xf32>
    %53 = arith.truncf %52 : vector<360x96xf32> to vector<360x96xbf16>
    %cst_19 = arith.constant dense<0.000000e+00> : vector<360x64xf32>
    %54 = tpu.matmul %53, %40, %cst_19 {dimension_numbers = #tpu.dot_dimension_numbers<[1], [0], [0], [1], [0, 0, 1, 1], [], []>} : vector<360x96xbf16>, vector<96x64xbf16>, vector<360x64xf32> -> vector<360x64xf32>
    %55 = vector.broadcast %41 : vector<1x64xf32> to vector<360x64xf32>
    %56 = arith.addf %54, %55 : vector<360x64xf32>
    %cst_20 = arith.constant 0.000000e+00 : f32
    %57 = vector.broadcast %cst_20 : f32 to vector<360x64xf32>
    %58 = arith.maximumf %56, %57 : vector<360x64xf32>
    %c128 = arith.constant 128 : index
    %c0_21 = arith.constant 0 : index
    %59 = vector.load %arg2[%c128, %c0_21] : memref<448x128xbf16, #tpu.memory_space<vmem>>, vector<192x128xbf16>
    %c2 = arith.constant 2 : index
    %c0_22 = arith.constant 0 : index
    %60 = vector.load %arg3[%c2, %c0_22] : memref<8x128xf32, #tpu.memory_space<vmem>>, vector<1x128xf32>
    %c1_i32_23 = arith.constant 1 : i32
    %61 = tpu.dynamic_rotate %58 by %c1_i32_23 dim 0 : vector<360x64xf32>, i32 -> vector<360x64xf32>
    %cst_24 = arith.constant 0.000000e+00 : f32
    %62 = vector.shape_cast %7 : vector<360x1xi1> to vector<360x1xi1>
    %63 = vector.broadcast %62 : vector<360x1xi1> to vector<360x64xi1>
    %64 = vector.broadcast %cst_24 : f32 to vector<360x64xf32>
    %65 = arith.select %63, %64, %61 : vector<360x64xi1>, vector<360x64xf32>
    %c359_i32_25 = arith.constant 359 : i32
    %66 = tpu.dynamic_rotate %58 by %c359_i32_25 dim 0 : vector<360x64xf32>, i32 -> vector<360x64xf32>
    %cst_26 = arith.constant 0.000000e+00 : f32
    %67 = vector.shape_cast %10 : vector<360x1xi1> to vector<360x1xi1>
    %68 = vector.broadcast %67 : vector<360x1xi1> to vector<360x64xi1>
    %69 = vector.broadcast %cst_26 : f32 to vector<360x64xf32>
    %70 = arith.select %68, %69, %66 : vector<360x64xi1>, vector<360x64xf32>
    %71 = tpu.concatenate %65, %58, %70 in 1 : vector<360x64xf32>, vector<360x64xf32>, vector<360x64xf32> -> vector<360x192xf32>
    %72 = arith.truncf %71 : vector<360x192xf32> to vector<360x192xbf16>
    %cst_27 = arith.constant dense<0.000000e+00> : vector<360x128xf32>
    %73 = tpu.matmul %72, %59, %cst_27 {dimension_numbers = #tpu.dot_dimension_numbers<[1], [0], [0], [1], [0, 0, 1, 1], [], []>} : vector<360x192xbf16>, vector<192x128xbf16>, vector<360x128xf32> -> vector<360x128xf32>
    %74 = vector.broadcast %60 : vector<1x128xf32> to vector<360x128xf32>
    %75 = arith.addf %73, %74 : vector<360x128xf32>
    %cst_28 = arith.constant 0.000000e+00 : f32
    %76 = vector.broadcast %cst_28 : f32 to vector<360x128xf32>
    %77 = arith.maximumf %75, %76 : vector<360x128xf32>
    %c320 = arith.constant 320 : index
    %c0_29 = arith.constant 0 : index
    %78 = vector.load %arg2[%c320, %c0_29] : memref<448x128xbf16, #tpu.memory_space<vmem>>, vector<128x4xbf16>
    %c3 = arith.constant 3 : index
    %c0_30 = arith.constant 0 : index
    %79 = vector.load %arg3[%c3, %c0_30] : memref<8x128xf32, #tpu.memory_space<vmem>>, vector<1x4xf32>
    %80 = arith.truncf %77 : vector<360x128xf32> to vector<360x128xbf16>
    %cst_31 = arith.constant dense<0.000000e+00> : vector<360x4xf32>
    %81 = tpu.matmul %80, %78, %cst_31 {dimension_numbers = #tpu.dot_dimension_numbers<[1], [0], [0], [1], [0, 0, 1, 1], [], []>} : vector<360x128xbf16>, vector<128x4xbf16>, vector<360x4xf32> -> vector<360x4xf32>
    %82 = vector.broadcast %79 : vector<1x4xf32> to vector<360x4xf32>
    %83 = arith.addf %81, %82 : vector<360x4xf32>
    %c0_32 = arith.constant 0 : index
    %c0_33 = arith.constant 0 : index
    %84 = vector.load %arg4[%c0_32, %c0_33] : memref<360x4xf32, #tpu.memory_space<vmem>>, vector<360x4xf32>
    tpu.vector_store %arg4[%c0_32, %c0_33], %83 {strides = array<i32>} : memref<360x4xf32, #tpu.memory_space<vmem>>, vector<360x4xf32>,
    return
  }
}

</mosaic_0001>

<llo_original>
// kernel: simple_conv1d_forward.1
$region0: #{simple_conv1d_forward.1}
  #allocation0 [shape = 'u32[]', space=smem, size = 0x4, offset = 0x4, fixed_abs, tag = 'smem constant byte address 0x4 - core index']
  #allocation1 [shape = 'u32[144,128]{1,0:T(1,128)}', space=vmem, size = 0x12000, scoped, tag = 'internal scratch']
  %s0 = inlined_call_operand.vmem [shape: f32[360,4], index: 0, kind: input, shape index: {}]
  %s1 = inlined_call_operand.vmem [shape: f32[2], index: 1, kind: input, shape index: {}]
  %s2 = inlined_call_operand.vmem [shape: bf16[448,128], index: 2, kind: input, shape index: {}]
  %s3 = inlined_call_operand.vmem [shape: f32[8,128], index: 3, kind: input, shape index: {}]
  %s4 = inlined_call_operand.vmem [shape: f32[360,4], index: 4, kind: output, shape index: {}]
  %s5 = sld [smem:[#allocation0]]
  $region30: #{simple_conv1d_forward.1} parent=0
    _
  %s7 = ssub.s32 1, %s5
  %s8 = scalar_select 0, %s7, %s5
  $region1: #{simple_conv1d_forward.1} parent=0
    #allocation2 [shape = 'u8[512]{0}', space=smem, size = 0x200, scoped, tag = 'input window, operand 1, single buffered']
    #allocation3 [shape = 's32[1]{0}', space=sflag, size = 0x4, scoped, tag = 'scoped memory for simple_conv1d_forward.1']
    %9 = vsyncpa [#allocation3], 0
    // Predicated region
    $region2: #{simple_conv1d_forward.1} parent=1 // pred_check
      _
    $region3: #{simple_conv1d_forward.1} parent=1 // pred_check_branch
      %11 = sbr.rel (0) target = $region5
    $region4: #{simple_conv1d_forward.1} parent=1 // pred_region
      _
    $region5: #{simple_conv1d_forward.1} parent=1 // pred_fallthru
      _
    // Predicated region
    $region6: #{simple_conv1d_forward.1} parent=1 // pred_check
      _
    $region7: #{simple_conv1d_forward.1} parent=1 // pred_check_branch
      %13 = sbr.rel (0) target = $region9
    $region8: #{simple_conv1d_forward.1} parent=1 // pred_region
      %s15 = ssub.s32 16, 16
      %16 = vsyncadd [#allocation3], %s15
      %s18 = sshll.u32 %s1, 4
      %s19 = int_to_ptr.vmem [resolvable:$true] %s18
      %21 = dma.vmem_to_smem %s19, 16, [#allocation2], [#allocation3]
    $region9: #{simple_conv1d_forward.1} parent=1 // pred_fallthru
      _
    // Predicated region
    $region10: #{simple_conv1d_forward.1} parent=1 // pred_check
      _
    $region11: #{simple_conv1d_forward.1} parent=1 // pred_check_branch
      %23 = sbr.rel (0) target = $region13
    $region12: #{simple_conv1d_forward.1} parent=1 // pred_region
      _
    $region13: #{simple_conv1d_forward.1} parent=1 // pred_fallthru
      _
    // Predicated region
    $region14: #{simple_conv1d_forward.1} parent=1 // pred_check
      _
    $region15: #{simple_conv1d_forward.1} parent=1 // pred_check_branch
      %25 = sbr.rel (0) target = $region17
    $region16: #{simple_conv1d_forward.1} parent=1 // pred_region
      _
    $region17: #{simple_conv1d_forward.1} parent=1 // pred_fallthru
      _
    // Predicated region
    $region18: #{simple_conv1d_forward.1} parent=1 // pred_check
      _
    $region19: #{simple_conv1d_forward.1} parent=1 // pred_check_branch
      %27 = sbr.rel (0) target = $region21
    $region20: #{simple_conv1d_forward.1} parent=1 // pred_region
      %28 = dma.done [#allocation3], 16
    $region21: #{simple_conv1d_forward.1} parent=1 // pred_fallthru
      _
    %29 = sfence
    %v31 = vlaneseq
    %v32 = vshrl.u32 %v31, 7
    %v33 = vadd.s32 %v32, 8
    %v34 = vadd.s32 %v32, 16
    %v35 = vadd.s32 %v32, 24
    %v36 = vadd.s32 %v32, 32
    %v37 = vadd.s32 %v32, 40
    %v38 = vadd.s32 %v32, 48
    %v39 = vadd.s32 %v32, 56
    %v40 = vadd.s32 %v32, 64
    %v41 = vadd.s32 %v32, 72
    %v42 = vadd.s32 %v32, 80
    %v43 = vadd.s32 %v32, 88
    %v44 = vadd.s32 %v32, 96
    %v45 = vadd.s32 %v32, 104
    %v46 = vadd.s32 %v32, 112
    %v47 = vadd.s32 %v32, 120
    %v48 = vadd.s32 %v32, 128
    %v49 = vadd.s32 %v32, 136
    %v50 = vadd.s32 %v32, 144
    %v51 = vadd.s32 %v32, 152
    %v52 = vadd.s32 %v32, 160
    %v53 = vadd.s32 %v32, 168
    %v54 = vadd.s32 %v32, 176
    %v55 = vadd.s32 %v32, 184
    %v56 = vadd.s32 %v32, 192
    %v57 = vadd.s32 %v32, 200
    %v58 = vadd.s32 %v32, 208
    %v59 = vadd.s32 %v32, 216
    %v60 = vadd.s32 %v32, 224
    %v61 = vadd.s32 %v32, 232
    %v62 = vadd.s32 %v32, 240
    %v63 = vadd.s32 %v32, 248
    %v64 = vadd.s32 %v32, 256
    %v65 = vadd.s32 %v32, 264
    %v66 = vadd.s32 %v32, 272
    %v67 = vadd.s32 %v32, 280
    %v68 = vadd.s32 %v32, 288
    %v69 = vadd.s32 %v32, 296
    %v70 = vadd.s32 %v32, 304
    %v71 = vadd.s32 %v32, 312
    %v72 = vadd.s32 %v32, 320
    %v73 = vadd.s32 %v32, 328
    %v74 = vadd.s32 %v32, 336
    %v75 = vadd.s32 %v32, 344
    %v76 = vadd.s32 %v32, 352
    %vm77 = vcmp.eq.s32.totalorder %v32, 0
    %vm78 = vcmp.eq.s32.totalorder %v33, 0
    %vm79 = vcmp.eq.s32.totalorder %v34, 0
    %vm80 = vcmp.eq.s32.totalorder %v35, 0
    %vm81 = vcmp.eq.s32.totalorder %v36, 0
    %vm82 = vcmp.eq.s32.totalorder %v37, 0
    %vm83 = vcmp.eq.s32.totalorder %v38, 0
    %vm84 = vcmp.eq.s32.totalorder %v39, 0
    %vm85 = vcmp.eq.s32.totalorder %v40, 0
    %vm86 = vcmp.eq.s32.totalorder %v41, 0
    %vm87 = vcmp.eq.s32.totalorder %v42, 0
    %vm88 = vcmp.eq.s32.totalorder %v43, 0
    %vm89 = vcmp.eq.s32.totalorder %v44, 0
    %vm90 = vcmp.eq.s32.totalorder %v45, 0
    %vm91 = vcmp.eq.s32.totalorder %v46, 0
    %vm92 = vcmp.eq.s32.totalorder %v47, 0
    %vm93 = vcmp.eq.s32.totalorder %v48, 0
    %vm94 = vcmp.eq.s32.totalorder %v49, 0
    %vm95 = vcmp.eq.s32.totalorder %v50, 0
    %vm96 = vcmp.eq.s32.totalorder %v51, 0
    %vm97 = vcmp.eq.s32.totalorder %v52, 0
    %vm98 = vcmp.eq.s32.totalorder %v53, 0
    %vm99 = vcmp.eq.s32.totalorder %v54, 0
    %vm100 = vcmp.eq.s32.totalorder %v55, 0
    %vm101 = vcmp.eq.s32.totalorder %v56, 0
    %vm102 = vcmp.eq.s32.totalorder %v57, 0
    %vm103 = vcmp.eq.s32.totalorder %v58, 0
    %vm104 = vcmp.eq.s32.totalorder %v59, 0
    %vm105 = vcmp.eq.s32.totalorder %v60, 0
    %vm106 = vcmp.eq.s32.totalorder %v61, 0
    %vm107 = vcmp.eq.s32.totalorder %v62, 0
    %vm108 = vcmp.eq.s32.totalorder %v63, 0
    %vm109 = vcmp.eq.s32.totalorder %v64, 0
    %vm110 = vcmp.eq.s32.totalorder %v65, 0
    %vm111 = vcmp.eq.s32.totalorder %v66, 0
    %vm112 = vcmp.eq.s32.totalorder %v67, 0
    %vm113 = vcmp.eq.s32.totalorder %v68, 0
    %vm114 = vcmp.eq.s32.totalorder %v69, 0
    %vm115 = vcmp.eq.s32.totalorder %v70, 0
    %vm116 = vcmp.eq.s32.totalorder %v71, 0
    %vm117 = vcmp.eq.s32.totalorder %v72, 0
    %vm118 = vcmp.eq.s32.totalorder %v73, 0
    %vm119 = vcmp.eq.s32.totalorder %v74, 0
    %vm120 = vcmp.eq.s32.totalorder %v75, 0
    %vm121 = vcmp.eq.s32.totalorder %v76, 0
    %vm122 = vcmp.eq.s32.totalorder %v32, 179
    %vm123 = vcmp.eq.s32.totalorder %v33, 179
    %vm124 = vcmp.eq.s32.totalorder %v34, 179
    %vm125 = vcmp.eq.s32.totalorder %v35, 179
    %vm126 = vcmp.eq.s32.totalorder %v36, 179
    %vm127 = vcmp.eq.s32.totalorder %v37, 179
    %vm128 = vcmp.eq.s32.totalorder %v38, 179
    %vm129 = vcmp.eq.s32.totalorder %v39, 179
    %vm130 = vcmp.eq.s32.totalorder %v40, 179
    %vm131 = vcmp.eq.s32.totalorder %v41, 179
    %vm132 = vcmp.eq.s32.totalorder %v42, 179
    %vm133 = vcmp.eq.s32.totalorder %v43, 179
    %vm134 = vcmp.eq.s32.totalorder %v44, 179
    %vm135 = vcmp.eq.s32.totalorder %v45, 179
    %vm136 = vcmp.eq.s32.totalorder %v46, 179
    %vm137 = vcmp.eq.s32.totalorder %v47, 179
    %vm138 = vcmp.eq.s32.totalorder %v48, 179
    %vm139 = vcmp.eq.s32.totalorder %v49, 179
    %vm140 = vcmp.eq.s32.totalorder %v50, 179
    %vm141 = vcmp.eq.s32.totalorder %v51, 179
    %vm142 = vcmp.eq.s32.totalorder %v52, 179
    %vm143 = vcmp.eq.s32.totalorder %v53, 179
    %vm144 = vcmp.eq.s32.totalorder %v54, 179
    %vm145 = vcmp.eq.s32.totalorder %v55, 179
    %vm146 = vcmp.eq.s32.totalorder %v56, 179
    %vm147 = vcmp.eq.s32.totalorder %v57, 179
    %vm148 = vcmp.eq.s32.totalorder %v58, 179
    %vm149 = vcmp.eq.s32.totalorder %v59, 179
    %vm150 = vcmp.eq.s32.totalorder %v60, 179
    %vm151 = vcmp.eq.s32.totalorder %v61, 179
    %vm152 = vcmp.eq.s32.totalorder %v62, 179
    %vm153 = vcmp.eq.s32.totalorder %v63, 179
    %vm154 = vcmp.eq.s32.totalorder %v64, 179
    %vm155 = vcmp.eq.s32.totalorder %v65, 179
    %vm156 = vcmp.eq.s32.totalorder %v66, 179
    %vm157 = vcmp.eq.s32.totalorder %v67, 179
    %vm158 = vcmp.eq.s32.totalorder %v68, 179
    %vm159 = vcmp.eq.s32.totalorder %v69, 179
    %vm160 = vcmp.eq.s32.totalorder %v70, 179
    %vm161 = vcmp.eq.s32.totalorder %v71, 179
    %vm162 = vcmp.eq.s32.totalorder %v72, 179
    %vm163 = vcmp.eq.s32.totalorder %v73, 179
    %vm164 = vcmp.eq.s32.totalorder %v74, 179
    %vm165 = vcmp.eq.s32.totalorder %v75, 179
    %vm166 = vcmp.eq.s32.totalorder %v76, 179
    %vm167 = vcmp.eq.s32.totalorder %v32, 180
    %vm168 = vcmp.eq.s32.totalorder %v33, 180
    %vm169 = vcmp.eq.s32.totalorder %v34, 180
    %vm170 = vcmp.eq.s32.totalorder %v35, 180
    %vm171 = vcmp.eq.s32.totalorder %v36, 180
    %vm172 = vcmp.eq.s32.totalorder %v37, 180
    %vm173 = vcmp.eq.s32.totalorder %v38, 180
    %vm174 = vcmp.eq.s32.totalorder %v39, 180
    %vm175 = vcmp.eq.s32.totalorder %v40, 180
    %vm176 = vcmp.eq.s32.totalorder %v41, 180
    %vm177 = vcmp.eq.s32.totalorder %v42, 180
    %vm178 = vcmp.eq.s32.totalorder %v43, 180
    %vm179 = vcmp.eq.s32.totalorder %v44, 180
    %vm180 = vcmp.eq.s32.totalorder %v45, 180
    %vm181 = vcmp.eq.s32.totalorder %v46, 180
    %vm182 = vcmp.eq.s32.totalorder %v47, 180
    %vm183 = vcmp.eq.s32.totalorder %v48, 180
    %vm184 = vcmp.eq.s32.totalorder %v49, 180
    %vm185 = vcmp.eq.s32.totalorder %v50, 180
    %vm186 = vcmp.eq.s32.totalorder %v51, 180
    %vm187 = vcmp.eq.s32.totalorder %v52, 180
    %vm188 = vcmp.eq.s32.totalorder %v53, 180
    %vm189 = vcmp.eq.s32.totalorder %v54, 180
    %vm190 = vcmp.eq.s32.totalorder %v55, 180
    %vm191 = vcmp.eq.s32.totalorder %v56, 180
    %vm192 = vcmp.eq.s32.totalorder %v57, 180
    %vm193 = vcmp.eq.s32.totalorder %v58, 180
    %vm194 = vcmp.eq.s32.totalorder %v59, 180
    %vm195 = vcmp.eq.s32.totalorder %v60, 180
    %vm196 = vcmp.eq.s32.totalorder %v61, 180
    %vm197 = vcmp.eq.s32.totalorder %v62, 180
    %vm198 = vcmp.eq.s32.totalorder %v63, 180
    %vm199 = vcmp.eq.s32.totalorder %v64, 180
    %vm200 = vcmp.eq.s32.totalorder %v65, 180
    %vm201 = vcmp.eq.s32.totalorder %v66, 180
    %vm202 = vcmp.eq.s32.totalorder %v67, 180
    %vm203 = vcmp.eq.s32.totalorder %v68, 180
    %vm204 = vcmp.eq.s32.totalorder %v69, 180
    %vm205 = vcmp.eq.s32.totalorder %v70, 180
    %vm206 = vcmp.eq.s32.totalorder %v71, 180
    %vm207 = vcmp.eq.s32.totalorder %v72, 180
    %vm208 = vcmp.eq.s32.totalorder %v73, 180
    %vm209 = vcmp.eq.s32.totalorder %v74, 180
    %vm210 = vcmp.eq.s32.totalorder %v75, 180
    %vm211 = vcmp.eq.s32.totalorder %v76, 180
    %vm212 = vmor %vm77, %vm167
    %vm213 = vmor %vm78, %vm168
    %vm214 = vmor %vm79, %vm169
    %vm215 = vmor %vm80, %vm170
    %vm216 = vmor %vm81, %vm171
    %vm217 = vmor %vm82, %vm172
    %vm218 = vmor %vm83, %vm173
    %vm219 = vmor %vm84, %vm174
    %vm220 = vmor %vm85, %vm175
    %vm221 = vmor %vm86, %vm176
    %vm222 = vmor %vm87, %vm177
    %vm223 = vmor %vm88, %vm178
    %vm224 = vmor %vm89, %vm179
    %vm225 = vmor %vm90, %vm180
    %vm226 = vmor %vm91, %vm181
    %vm227 = vmor %vm92, %vm182
    %vm228 = vmor %vm93, %vm183
    %vm229 = vmor %vm94, %vm184
    %vm230 = vmor %vm95, %vm185
    %vm231 = vmor %vm96, %vm186
    %vm232 = vmor %vm97, %vm187
    %vm233 = vmor %vm98, %vm188
    %vm234 = vmor %vm99, %vm189
    %vm235 = vmor %vm100, %vm190
    %vm236 = vmor %vm101, %vm191
    %vm237 = vmor %vm102, %vm192
    %vm238 = vmor %vm103, %vm193
    %vm239 = vmor %vm104, %vm194
    %vm240 = vmor %vm105, %vm195
    %vm241 = vmor %vm106, %vm196
    %vm242 = vmor %vm107, %vm197
    %vm243 = vmor %vm108, %vm198
    %vm244 = vmor %vm109, %vm199
    %vm245 = vmor %vm110, %vm200
    %vm246 = vmor %vm111, %vm201
    %vm247 = vmor %vm112, %vm202
    %vm248 = vmor %vm113, %vm203
    %vm249 = vmor %vm114, %vm204
    %vm250 = vmor %vm115, %vm205
    %vm251 = vmor %vm116, %vm206
    %vm252 = vmor %vm117, %vm207
    %vm253 = vmor %vm118, %vm208
    %vm254 = vmor %vm119, %vm209
    %vm255 = vmor %vm120, %vm210
    %vm256 = vmor %vm121, %vm211
    %vm257 = vcmp.eq.s32.totalorder %v32, 359
    %vm258 = vcmp.eq.s32.totalorder %v33, 359
    %vm259 = vcmp.eq.s32.totalorder %v34, 359
    %vm260 = vcmp.eq.s32.totalorder %v35, 359
    %vm261 = vcmp.eq.s32.totalorder %v36, 359
    %vm262 = vcmp.eq.s32.totalorder %v37, 359
    %vm263 = vcmp.eq.s32.totalorder %v38, 359
    %vm264 = vcmp.eq.s32.totalorder %v39, 359
    %vm265 = vcmp.eq.s32.totalorder %v40, 359
    %vm266 = vcmp.eq.s32.totalorder %v41, 359
    %vm267 = vcmp.eq.s32.totalorder %v42, 359
    %vm268 = vcmp.eq.s32.totalorder %v43, 359
    %vm269 = vcmp.eq.s32.totalorder %v44, 359
    %vm270 = vcmp.eq.s32.totalorder %v45, 359
    %vm271 = vcmp.eq.s32.totalorder %v46, 359
    %vm272 = vcmp.eq.s32.totalorder %v47, 359
    %vm273 = vcmp.eq.s32.totalorder %v48, 359
    %vm274 = vcmp.eq.s32.totalorder %v49, 359
    %vm275 = vcmp.eq.s32.totalorder %v50, 359
    %vm276 = vcmp.eq.s32.totalorder %v51, 359
    %vm277 = vcmp.eq.s32.totalorder %v52, 359
    %vm278 = vcmp.eq.s32.totalorder %v53, 359
    %vm279 = vcmp.eq.s32.totalorder %v54, 359
    %vm280 = vcmp.eq.s32.totalorder %v55, 359
    %vm281 = vcmp.eq.s32.totalorder %v56, 359
    %vm282 = vcmp.eq.s32.totalorder %v57, 359
    %vm283 = vcmp.eq.s32.totalorder %v58, 359
    %vm284 = vcmp.eq.s32.totalorder %v59, 359
    %vm285 = vcmp.eq.s32.totalorder %v60, 359
    %vm286 = vcmp.eq.s32.totalorder %v61, 359
    %vm287 = vcmp.eq.s32.totalorder %v62, 359
    %vm288 = vcmp.eq.s32.totalorder %v63, 359
    %vm289 = vcmp.eq.s32.totalorder %v64, 359
    %vm290 = vcmp.eq.s32.totalorder %v65, 359
    %vm291 = vcmp.eq.s32.totalorder %v66, 359
    %vm292 = vcmp.eq.s32.totalorder %v67, 359
    %vm293 = vcmp.eq.s32.totalorder %v68, 359
    %vm294 = vcmp.eq.s32.totalorder %v69, 359
    %vm295 = vcmp.eq.s32.totalorder %v70, 359
    %vm296 = vcmp.eq.s32.totalorder %v71, 359
    %vm297 = vcmp.eq.s32.totalorder %v72, 359
    %vm298 = vcmp.eq.s32.totalorder %v73, 359
    %vm299 = vcmp.eq.s32.totalorder %v74, 359
    %vm300 = vcmp.eq.s32.totalorder %v75, 359
    %vm301 = vcmp.eq.s32.totalorder %v76, 359
    %vm302 = vmor %vm122, %vm257
    %vm303 = vmor %vm123, %vm258
    %vm304 = vmor %vm124, %vm259
    %vm305 = vmor %vm125, %vm260
    %vm306 = vmor %vm126, %vm261
    %vm307 = vmor %vm127, %vm262
    %vm308 = vmor %vm128, %vm263
    %vm309 = vmor %vm129, %vm264
    %vm310 = vmor %vm130, %vm265
    %vm311 = vmor %vm131, %vm266
    %vm312 = vmor %vm132, %vm267
    %vm313 = vmor %vm133, %vm268
    %vm314 = vmor %vm134, %vm269
    %vm315 = vmor %vm135, %vm270
    %vm316 = vmor %vm136, %vm271
    %vm317 = vmor %vm137, %vm272
    %vm318 = vmor %vm138, %vm273
    %vm319 = vmor %vm139, %vm274
    %vm320 = vmor %vm140, %vm275
    %vm321 = vmor %vm141, %vm276
    %vm322 = vmor %vm142, %vm277
    %vm323 = vmor %vm143, %vm278
    %vm324 = vmor %vm144, %vm279
    %vm325 = vmor %vm145, %vm280
    %vm326 = vmor %vm146, %vm281
    %vm327 = vmor %vm147, %vm282
    %vm328 = vmor %vm148, %vm283
    %vm329 = vmor %vm149, %vm284
    %vm330 = vmor %vm150, %vm285
    %vm331 = vmor %vm151, %vm286
    %vm332 = vmor %vm152, %vm287
    %vm333 = vmor %vm153, %vm288
    %vm334 = vmor %vm154, %vm289
    %vm335 = vmor %vm155, %vm290
    %vm336 = vmor %vm156, %vm291
    %vm337 = vmor %vm157, %vm292
    %vm338 = vmor %vm158, %vm293
    %vm339 = vmor %vm159, %vm294
    %vm340 = vmor %vm160, %vm295
    %vm341 = vmor %vm161, %vm296
    %vm342 = vmor %vm162, %vm297
    %vm343 = vmor %vm163, %vm298
    %vm344 = vmor %vm164, %vm299
    %vm345 = vmor %vm165, %vm300
    %vm346 = vmor %vm166, %vm301
    %s347 = sld [smem:[#allocation2 + $0x1]]
    %v348 = vstv %s347
    %vm349 = vcmp.lt.s32.totalorder %v32, 180
    %vm350 = vcmp.lt.s32.totalorder %v33, 180
    %vm351 = vcmp.lt.s32.totalorder %v34, 180
    %vm352 = vcmp.lt.s32.totalorder %v35, 180
    %vm353 = vcmp.lt.s32.totalorder %v36, 180
    %vm354 = vcmp.lt.s32.totalorder %v37, 180
    %vm355 = vcmp.lt.s32.totalorder %v38, 180
    %vm356 = vcmp.lt.s32.totalorder %v39, 180
    %vm357 = vcmp.lt.s32.totalorder %v40, 180
    %vm358 = vcmp.lt.s32.totalorder %v41, 180
    %vm359 = vcmp.lt.s32.totalorder %v42, 180
    %vm360 = vcmp.lt.s32.totalorder %v43, 180
    %vm361 = vcmp.lt.s32.totalorder %v44, 180
    %vm362 = vcmp.lt.s32.totalorder %v45, 180
    %vm363 = vcmp.lt.s32.totalorder %v46, 180
    %vm364 = vcmp.lt.s32.totalorder %v47, 180
    %vm365 = vcmp.lt.s32.totalorder %v48, 180
    %vm366 = vcmp.lt.s32.totalorder %v49, 180
    %vm367 = vcmp.lt.s32.totalorder %v50, 180
    %vm368 = vcmp.lt.s32.totalorder %v51, 180
    %vm369 = vcmp.lt.s32.totalorder %v52, 180
    %vm370 = vcmp.lt.s32.totalorder %v53, 180
    %vm371 = vcmp.lt.s32.totalorder %v54, 180
    %vm372 = vcmp.lt.s32.totalorder %v55, 180
    %vm373 = vcmp.lt.s32.totalorder %v56, 180
    %vm374 = vcmp.lt.s32.totalorder %v57, 180
    %vm375 = vcmp.lt.s32.totalorder %v58, 180
    %vm376 = vcmp.lt.s32.totalorder %v59, 180
    %vm377 = vcmp.lt.s32.totalorder %v60, 180
    %vm378 = vcmp.lt.s32.totalorder %v61, 180
    %vm379 = vcmp.lt.s32.totalorder %v62, 180
    %vm380 = vcmp.lt.s32.totalorder %v63, 180
    %vm381 = vcmp.lt.s32.totalorder %v64, 180
    %vm382 = vcmp.lt.s32.totalorder %v65, 180
    %vm383 = vcmp.lt.s32.totalorder %v66, 180
    %vm384 = vcmp.lt.s32.totalorder %v67, 180
    %vm385 = vcmp.lt.s32.totalorder %v68, 180
    %vm386 = vcmp.lt.s32.totalorder %v69, 180
    %vm387 = vcmp.lt.s32.totalorder %v70, 180
    %vm388 = vcmp.lt.s32.totalorder %v71, 180
    %vm389 = vcmp.lt.s32.totalorder %v72, 180
    %vm390 = vcmp.lt.s32.totalorder %v73, 180
    %vm391 = vcmp.lt.s32.totalorder %v74, 180
    %vm392 = vcmp.lt.s32.totalorder %v75, 180
    %vm393 = vcmp.lt.s32.totalorder %v76, 180
    %s394 = sld [smem:[#allocation2]]
    %v395 = vstv %s394
    %v396 = vsel %vm349, %v395, %v348
    %v397 = vsel %vm350, %v395, %v348
    %v398 = vsel %vm351, %v395, %v348
    %v399 = vsel %vm352, %v395, %v348
    %v400 = vsel %vm353, %v395, %v348
    %v401 = vsel %vm354, %v395, %v348
    %v402 = vsel %vm355, %v395, %v348
    %v403 = vsel %vm356, %v395, %v348
    %v404 = vsel %vm357, %v395, %v348
    %v405 = vsel %vm358, %v395, %v348
    %v406 = vsel %vm359, %v395, %v348
    %v407 = vsel %vm360, %v395, %v348
    %v408 = vsel %vm361, %v395, %v348
    %v409 = vsel %vm362, %v395, %v348
    %v410 = vsel %vm363, %v395, %v348
    %v411 = vsel %vm364, %v395, %v348
    %v412 = vsel %vm365, %v395, %v348
    %v413 = vsel %vm366, %v395, %v348
    %v414 = vsel %vm367, %v395, %v348
    %v415 = vsel %vm368, %v395, %v348
    %v416 = vsel %vm369, %v395, %v348
    %v417 = vsel %vm370, %v395, %v348
    %v418 = vsel %vm371, %v395, %v348
    %v419 = vsel %vm372, %v395, %v348
    %v420 = vsel %vm373, %v395, %v348
    %v421 = vsel %vm374, %v395, %v348
    %v422 = vsel %vm375, %v395, %v348
    %v423 = vsel %vm376, %v395, %v348
    %v424 = vsel %vm377, %v395, %v348
    %v425 = vsel %vm378, %v395, %v348
    %v426 = vsel %vm379, %v395, %v348
    %v427 = vsel %vm380, %v395, %v348
    %v428 = vsel %vm381, %v395, %v348
    %v429 = vsel %vm382, %v395, %v348
    %v430 = vsel %vm383, %v395, %v348
    %v431 = vsel %vm384, %v395, %v348
    %v432 = vsel %vm385, %v395, %v348
    %v433 = vsel %vm386, %v395, %v348
    %v434 = vsel %vm387, %v395, %v348
    %v435 = vsel %vm388, %v395, %v348
    %v436 = vsel %vm389, %v395, %v348
    %v437 = vsel %vm390, %v395, %v348
    %v438 = vsel %vm391, %v395, %v348
    %v439 = vsel %vm392, %v395, %v348
    %v440 = vsel %vm393, %v395, %v348
    %v441 = vld [vmem:[%s0] sm:$0xff]
    %v442 = vld [vmem:[%s0 + $0x8] sm:$0xff]
    %v443 = vld [vmem:[%s0 + $0x10] sm:$0xff]
    %v444 = vld [vmem:[%s0 + $0x18] sm:$0xff]
    %v445 = vld [vmem:[%s0 + $0x20] sm:$0xff]
    %v446 = vld [vmem:[%s0 + $0x28] sm:$0xff]
    %v447 = vld [vmem:[%s0 + $0x30] sm:$0xff]
    %v448 = vld [vmem:[%s0 + $0x38] sm:$0xff]
    %v449 = vld [vmem:[%s0 + $0x40] sm:$0xff]
    %v450 = vld [vmem:[%s0 + $0x48] sm:$0xff]
    %v451 = vld [vmem:[%s0 + $0x50] sm:$0xff]
    %v452 = vld [vmem:[%s0 + $0x58] sm:$0xff]
    %v453 = vld [vmem:[%s0 + $0x60] sm:$0xff]
    %v454 = vld [vmem:[%s0 + $0x68] sm:$0xff]
    %v455 = vld [vmem:[%s0 + $0x70] sm:$0xff]
    %v456 = vld [vmem:[%s0 + $0x78] sm:$0xff]
    %v457 = vld [vmem:[%s0 + $0x80] sm:$0xff]
    %v458 = vld [vmem:[%s0 + $0x88] sm:$0xff]
    %v459 = vld [vmem:[%s0 + $0x90] sm:$0xff]
    %v460 = vld [vmem:[%s0 + $0x98] sm:$0xff]
    %v461 = vld [vmem:[%s0 + $0xa0] sm:$0xff]
    %v462 = vld [vmem:[%s0 + $0xa8] sm:$0xff]
    %v463 = vld [vmem:[%s0 + $0xb0] sm:$0xff]
    %v464 = vld [vmem:[%s0 + $0xb8] sm:$0xff]
    %v465 = vld [vmem:[%s0 + $0xc0] sm:$0xff]
    %v466 = vld [vmem:[%s0 + $0xc8] sm:$0xff]
    %v467 = vld [vmem:[%s0 + $0xd0] sm:$0xff]
    %v468 = vld [vmem:[%s0 + $0xd8] sm:$0xff]
    %v469 = vld [vmem:[%s0 + $0xe0] sm:$0xff]
    %v470 = vld [vmem:[%s0 + $0xe8] sm:$0xff]
    %v471 = vld [vmem:[%s0 + $0xf0] sm:$0xff]
    %v472 = vld [vmem:[%s0 + $0xf8] sm:$0xff]
    %v473 = vld [vmem:[%s0 + $0x100] sm:$0xff]
    %v474 = vld [vmem:[%s0 + $0x108] sm:$0xff]
    %v475 = vld [vmem:[%s0 + $0x110] sm:$0xff]
    %v476 = vld [vmem:[%s0 + $0x118] sm:$0xff]
    %v477 = vld [vmem:[%s0 + $0x120] sm:$0xff]
    %v478 = vld [vmem:[%s0 + $0x128] sm:$0xff]
    %v479 = vld [vmem:[%s0 + $0x130] sm:$0xff]
    %v480 = vld [vmem:[%s0 + $0x138] sm:$0xff]
    %v481 = vld [vmem:[%s0 + $0x140] sm:$0xff]
    %v482 = vld [vmem:[%s0 + $0x148] sm:$0xff]
    %v483 = vld [vmem:[%s0 + $0x150] sm:$0xff]
    %v484 = vld [vmem:[%s0 + $0x158] sm:$0xff]
    %v485 = vld [vmem:[%s0 + $0x160] sm:$0xff]
    %vm486 = vcmask 31744
    %v487 = vsel %vm486, %v441, %v396
    %v488 = vsel %vm486, %v442, %v397
    %v489 = vsel %vm486, %v443, %v398
    %v490 = vsel %vm486, %v444, %v399
    %v491 = vsel %vm486, %v445, %v400
    %v492 = vsel %vm486, %v446, %v401
    %v493 = vsel %vm486, %v447, %v402
    %v494 = vsel %vm486, %v448, %v403
    %v495 = vsel %vm486, %v449, %v404
    %v496 = vsel %vm486, %v450, %v405
    %v497 = vsel %vm486, %v451, %v406
    %v498 = vsel %vm486, %v452, %v407
    %v499 = vsel %vm486, %v453, %v408
    %v500 = vsel %vm486, %v454, %v409
    %v501 = vsel %vm486, %v455, %v410
    %v502 = vsel %vm486, %v456, %v411
    %v503 = vsel %vm486, %v457, %v412
    %v504 = vsel %vm486, %v458, %v413
    %v505 = vsel %vm486, %v459, %v414
    %v506 = vsel %vm486, %v460, %v415
    %v507 = vsel %vm486, %v461, %v416
    %v508 = vsel %vm486, %v462, %v417
    %v509 = vsel %vm486, %v463, %v418
    %v510 = vsel %vm486, %v464, %v419
    %v511 = vsel %vm486, %v465, %v420
    %v512 = vsel %vm486, %v466, %v421
    %v513 = vsel %vm486, %v467, %v422
    %v514 = vsel %vm486, %v468, %v423
    %v515 = vsel %vm486, %v469, %v424
    %v516 = vsel %vm486, %v470, %v425
    %v517 = vsel %vm486, %v471, %v426
    %v518 = vsel %vm486, %v472, %v427
    %v519 = vsel %vm486, %v473, %v428
    %v520 = vsel %vm486, %v474, %v429
    %v521 = vsel %vm486, %v475, %v430
    %v522 = vsel %vm486, %v476, %v431
    %v523 = vsel %vm486, %v477, %v432
    %v524 = vsel %vm486, %v478, %v433
    %v525 = vsel %vm486, %v479, %v434
    %v526 = vsel %vm486, %v480, %v435
    %v527 = vsel %vm486, %v481, %v436
    %v528 = vsel %vm486, %v482, %v437
    %v529 = vsel %vm486, %v483, %v438
    %v530 = vsel %vm486, %v484, %v439
    %v531 = vsel %vm486, %v485, %v440
    %vm532 = vcmask 39936
    %v533 = vsel %vm532, %v487, 0.0
    %v534 = vsel %vm532, %v488, 0.0
    %v535 = vsel %vm532, %v489, 0.0
    %v536 = vsel %vm532, %v490, 0.0
    %v537 = vsel %vm532, %v491, 0.0
    %v538 = vsel %vm532, %v492, 0.0
    %v539 = vsel %vm532, %v493, 0.0
    %v540 = vsel %vm532, %v494, 0.0
    %v541 = vsel %vm532, %v495, 0.0
    %v542 = vsel %vm532, %v496, 0.0
    %v543 = vsel %vm532, %v497, 0.0
    %v544 = vsel %vm532, %v498, 0.0
    %v545 = vsel %vm532, %v499, 0.0
    %v546 = vsel %vm532, %v500, 0.0
    %v547 = vsel %vm532, %v501, 0.0
    %v548 = vsel %vm532, %v502, 0.0
    %v549 = vsel %vm532, %v503, 0.0
    %v550 = vsel %vm532, %v504, 0.0
    %v551 = vsel %vm532, %v505, 0.0
    %v552 = vsel %vm532, %v506, 0.0
    %v553 = vsel %vm532, %v507, 0.0
    %v554 = vsel %vm532, %v508, 0.0
    %v555 = vsel %vm532, %v509, 0.0
    %v556 = vsel %vm532, %v510, 0.0
    %v557 = vsel %vm532, %v511, 0.0
    %v558 = vsel %vm532, %v512, 0.0
    %v559 = vsel %vm532, %v513, 0.0
    %v560 = vsel %vm532, %v514, 0.0
    %v561 = vsel %vm532, %v515, 0.0
    %v562 = vsel %vm532, %v516, 0.0
    %v563 = vsel %vm532, %v517, 0.0
    %v564 = vsel %vm532, %v518, 0.0
    %v565 = vsel %vm532, %v519, 0.0
    %v566 = vsel %vm532, %v520, 0.0
    %v567 = vsel %vm532, %v521, 0.0
    %v568 = vsel %vm532, %v522, 0.0
    %v569 = vsel %vm532, %v523, 0.0
    %v570 = vsel %vm532, %v524, 0.0
    %v571 = vsel %vm532, %v525, 0.0
    %v572 = vsel %vm532, %v526, 0.0
    %v573 = vsel %vm532, %v527, 0.0
    %v574 = vsel %vm532, %v528, 0.0
    %v575 = vsel %vm532, %v529, 0.0
    %v576 = vsel %vm532, %v530, 0.0
    %v577 = vsel %vm532, %v531, 0.0
    %v578 = vld [vmem:[%s2] sm:$0xf]
    %v579 = vld [vmem:[%s2 + $0x4] sm:$0xf]
    %v580 = vld [vmem:[%s2 + $0x8] sm:$0xf]
    %v581 = vld [vmem:[%s3] sm:$0x1]
    %v582 = vrot.slane %v533, 7
    %v583 = vrot.slane %v534, 7
    %v584 = vrot.slane %v535, 7
    %v585 = vrot.slane %v536, 7
    %v586 = vrot.slane %v537, 7
    %v587 = vrot.slane %v538, 7
    %v588 = vrot.slane %v539, 7
    %v589 = vrot.slane %v540, 7
    %v590 = vrot.slane %v541, 7
    %v591 = vrot.slane %v542, 7
    %v592 = vrot.slane %v543, 7
    %v593 = vrot.slane %v544, 7
    %v594 = vrot.slane %v545, 7
    %v595 = vrot.slane %v546, 7
    %v596 = vrot.slane %v547, 7
    %v597 = vrot.slane %v548, 7
    %v598 = vrot.slane %v549, 7
    %v599 = vrot.slane %v550, 7
    %v600 = vrot.slane %v551, 7
    %v601 = vrot.slane %v552, 7
    %v602 = vrot.slane %v553, 7
    %v603 = vrot.slane %v554, 7
    %v604 = vrot.slane %v555, 7
    %v605 = vrot.slane %v556, 7
    %v606 = vrot.slane %v557, 7
    %v607 = vrot.slane %v558, 7
    %v608 = vrot.slane %v559, 7
    %v609 = vrot.slane %v560, 7
    %v610 = vrot.slane %v561, 7
    %v611 = vrot.slane %v562, 7
    %v612 = vrot.slane %v563, 7
    %v613 = vrot.slane %v564, 7
    %v614 = vrot.slane %v565, 7
    %v615 = vrot.slane %v566, 7
    %v616 = vrot.slane %v567, 7
    %v617 = vrot.slane %v568, 7
    %v618 = vrot.slane %v569, 7
    %v619 = vrot.slane %v570, 7
    %v620 = vrot.slane %v571, 7
    %v621 = vrot.slane %v572, 7
    %v622 = vrot.slane %v573, 7
    %v623 = vrot.slane %v574, 7
    %v624 = vrot.slane %v575, 7
    %v625 = vrot.slane %v576, 7
    %v626 = vrot.slane %v577, 7
    %vm627 = vcmp.lt.s32.totalorder %v32, 1
    %v628 = vsel %vm627, %v625, %v626
    %v629 = vsel %vm627, %v624, %v625
    %v630 = vsel %vm627, %v623, %v624
    %v631 = vsel %vm627, %v622, %v623
    %v632 = vsel %vm627, %v621, %v622
    %v633 = vsel %vm627, %v620, %v621
    %v634 = vsel %vm627, %v619, %v620
    %v635 = vsel %vm627, %v618, %v619
    %v636 = vsel %vm627, %v617, %v618
    %v637 = vsel %vm627, %v616, %v617
    %v638 = vsel %vm627, %v615, %v616
    %v639 = vsel %vm627, %v614, %v615
    %v640 = vsel %vm627, %v613, %v614
    %v641 = vsel %vm627, %v612, %v613
    %v642 = vsel %vm627, %v611, %v612
    %v643 = vsel %vm627, %v610, %v611
    %v644 = vsel %vm627, %v609, %v610
    %v645 = vsel %vm627, %v608, %v609
    %v646 = vsel %vm627, %v607, %v608
    %v647 = vsel %vm627, %v606, %v607
    %v648 = vsel %vm627, %v605, %v606
    %v649 = vsel %vm627, %v604, %v605
    %v650 = vsel %vm627, %v603, %v604
    %v651 = vsel %vm627, %v602, %v603
    %v652 = vsel %vm627, %v601, %v602
    %v653 = vsel %vm627, %v600, %v601
    %v654 = vsel %vm627, %v599, %v600
    %v655 = vsel %vm627, %v598, %v599
    %v656 = vsel %vm627, %v597, %v598
    %v657 = vsel %vm627, %v596, %v597
    %v658 = vsel %vm627, %v595, %v596
    %v659 = vsel %vm627, %v594, %v595
    %v660 = vsel %vm627, %v593, %v594
    %v661 = vsel %vm627, %v592, %v593
    %v662 = vsel %vm627, %v591, %v592
    %v663 = vsel %vm627, %v590, %v591
    %v664 = vsel %vm627, %v589, %v590
    %v665 = vsel %vm627, %v588, %v589
    %v666 = vsel %vm627, %v587, %v588
    %v667 = vsel %vm627, %v586, %v587
    %v668 = vsel %vm627, %v585, %v586
    %v669 = vsel %vm627, %v584, %v585
    %v670 = vsel %vm627, %v583, %v584
    %v671 = vsel %vm627, %v582, %v583
    %v672 = vsel %vm627, %v626, %v582
    %v673 = vsel %vm212, 1, 0
    %v674 = vsel %vm213, 1, 0
    %v675 = vsel %vm214, 1, 0
    %v676 = vsel %vm215, 1, 0
    %v677 = vsel %vm216, 1, 0
    %v678 = vsel %vm217, 1, 0
    %v679 = vsel %vm218, 1, 0
    %v680 = vsel %vm219, 1, 0
    %v681 = vsel %vm220, 1, 0
    %v682 = vsel %vm221, 1, 0
    %v683 = vsel %vm222, 1, 0
    %v684 = vsel %vm223, 1, 0
    %v685 = vsel %vm224, 1, 0
    %v686 = vsel %vm225, 1, 0
    %v687 = vsel %vm226, 1, 0
    %v688 = vsel %vm227, 1, 0
    %v689 = vsel %vm228, 1, 0
    %v690 = vsel %vm229, 1, 0
    %v691 = vsel %vm230, 1, 0
    %v692 = vsel %vm231, 1, 0
    %v693 = vsel %vm232, 1, 0
    %v694 = vsel %vm233, 1, 0
    %v695 = vsel %vm234, 1, 0
    %v696 = vsel %vm235, 1, 0
    %v697 = vsel %vm236, 1, 0
    %v698 = vsel %vm237, 1, 0
    %v699 = vsel %vm238, 1, 0
    %v700 = vsel %vm239, 1, 0
    %v701 = vsel %vm240, 1, 0
    %v702 = vsel %vm241, 1, 0
    %v703 = vsel %vm242, 1, 0
    %v704 = vsel %vm243, 1, 0
    %v705 = vsel %vm244, 1, 0
    %v706 = vsel %vm245, 1, 0
    %v707 = vsel %vm246, 1, 0
    %v708 = vsel %vm247, 1, 0
    %v709 = vsel %vm248, 1, 0
    %v710 = vsel %vm249, 1, 0
    %v711 = vsel %vm250, 1, 0
    %v712 = vsel %vm251, 1, 0
    %v713 = vsel %vm252, 1, 0
    %v714 = vsel %vm253, 1, 0
    %v715 = vsel %vm254, 1, 0
    %v716 = vsel %vm255, 1, 0
    %v717 = vsel %vm256, 1, 0
    %vm718 = vcmp.eq.s32.totalorder %v673, 1
    %vm719 = vcmp.eq.s32.totalorder %v674, 1
    %vm720 = vcmp.eq.s32.totalorder %v675, 1
    %vm721 = vcmp.eq.s32.totalorder %v676, 1
    %vm722 = vcmp.eq.s32.totalorder %v677, 1
    %vm723 = vcmp.eq.s32.totalorder %v678, 1
    %vm724 = vcmp.eq.s32.totalorder %v679, 1
    %vm725 = vcmp.eq.s32.totalorder %v680, 1
    %vm726 = vcmp.eq.s32.totalorder %v681, 1
    %vm727 = vcmp.eq.s32.totalorder %v682, 1
    %vm728 = vcmp.eq.s32.totalorder %v683, 1
    %vm729 = vcmp.eq.s32.totalorder %v684, 1
    %vm730 = vcmp.eq.s32.totalorder %v685, 1
    %vm731 = vcmp.eq.s32.totalorder %v686, 1
    %vm732 = vcmp.eq.s32.totalorder %v687, 1
    %vm733 = vcmp.eq.s32.totalorder %v688, 1
    %vm734 = vcmp.eq.s32.totalorder %v689, 1
    %vm735 = vcmp.eq.s32.totalorder %v690, 1
    %vm736 = vcmp.eq.s32.totalorder %v691, 1
    %vm737 = vcmp.eq.s32.totalorder %v692, 1
    %vm738 = vcmp.eq.s32.totalorder %v693, 1
    %vm739 = vcmp.eq.s32.totalorder %v694, 1
    %vm740 = vcmp.eq.s32.totalorder %v695, 1
    %vm741 = vcmp.eq.s32.totalorder %v696, 1
    %vm742 = vcmp.eq.s32.totalorder %v697, 1
    %vm743 = vcmp.eq.s32.totalorder %v698, 1
    %vm744 = vcmp.eq.s32.totalorder %v699, 1
    %vm745 = vcmp.eq.s32.totalorder %v700, 1
    %vm746 = vcmp.eq.s32.totalorder %v701, 1
    %vm747 = vcmp.eq.s32.totalorder %v702, 1
    %vm748 = vcmp.eq.s32.totalorder %v703, 1
    %vm749 = vcmp.eq.s32.totalorder %v704, 1
    %vm750 = vcmp.eq.s32.totalorder %v705, 1
    %vm751 = vcmp.eq.s32.totalorder %v706, 1
    %vm752 = vcmp.eq.s32.totalorder %v707, 1
    %vm753 = vcmp.eq.s32.totalorder %v708, 1
    %vm754 = vcmp.eq.s32.totalorder %v709, 1
    %vm755 = vcmp.eq.s32.totalorder %v710, 1
    %vm756 = vcmp.eq.s32.totalorder %v711, 1
    %vm757 = vcmp.eq.s32.totalorder %v712, 1
    %vm758 = vcmp.eq.s32.totalorder %v713, 1
    %vm759 = vcmp.eq.s32.totalorder %v714, 1
    %vm760 = vcmp.eq.s32.totalorder %v715, 1
    %vm761 = vcmp.eq.s32.totalorder %v716, 1
    %vm762 = vcmp.eq.s32.totalorder %v717, 1
    %v763 = vsel %vm718, 0.0, %v672
    %v764 = vsel %vm719, 0.0, %v671
    %v765 = vsel %vm720, 0.0, %v670
    %v766 = vsel %vm721, 0.0, %v669
    %v767 = vsel %vm722, 0.0, %v668
    %v768 = vsel %vm723, 0.0, %v667
    %v769 = vsel %vm724, 0.0, %v666
    %v770 = vsel %vm725, 0.0, %v665
    %v771 = vsel %vm726, 0.0, %v664
    %v772 = vsel %vm727, 0.0, %v663
    %v773 = vsel %vm728, 0.0, %v662
    %v774 = vsel %vm729, 0.0, %v661
    %v775 = vsel %vm730, 0.0, %v660
    %v776 = vsel %vm731, 0.0, %v659
    %v777 = vsel %vm732, 0.0, %v658
    %v778 = vsel %vm733, 0.0, %v657
    %v779 = vsel %vm734, 0.0, %v656
    %v780 = vsel %vm735, 0.0, %v655
    %v781 = vsel %vm736, 0.0, %v654
    %v782 = vsel %vm737, 0.0, %v653
    %v783 = vsel %vm738, 0.0, %v652
    %v784 = vsel %vm739, 0.0, %v651
    %v785 = vsel %vm740, 0.0, %v650
    %v786 = vsel %vm741, 0.0, %v649
    %v787 = vsel %vm742, 0.0, %v648
    %v788 = vsel %vm743, 0.0, %v647
    %v789 = vsel %vm744, 0.0, %v646
    %v790 = vsel %vm745, 0.0, %v645
    %v791 = vsel %vm746, 0.0, %v644
    %v792 = vsel %vm747, 0.0, %v643
    %v793 = vsel %vm748, 0.0, %v642
    %v794 = vsel %vm749, 0.0, %v641
    %v795 = vsel %vm750, 0.0, %v640
    %v796 = vsel %vm751, 0.0, %v639
    %v797 = vsel %vm752, 0.0, %v638
    %v798 = vsel %vm753, 0.0, %v637
    %v799 = vsel %vm754, 0.0, %v636
    %v800 = vsel %vm755, 0.0, %v635
    %v801 = vsel %vm756, 0.0, %v634
    %v802 = vsel %vm757, 0.0, %v633
    %v803 = vsel %vm758, 0.0, %v632
    %v804 = vsel %vm759, 0.0, %v631
    %v805 = vsel %vm760, 0.0, %v630
    %v806 = vsel %vm761, 0.0, %v629
    %v807 = vsel %vm762, 0.0, %v628
    %v808 = vrot.slane %v533, 1
    %v809 = vrot.slane %v534, 1
    %v810 = vrot.slane %v535, 1
    %v811 = vrot.slane %v536, 1
    %v812 = vrot.slane %v537, 1
    %v813 = vrot.slane %v538, 1
    %v814 = vrot.slane %v539, 1
    %v815 = vrot.slane %v540, 1
    %v816 = vrot.slane %v541, 1
    %v817 = vrot.slane %v542, 1
    %v818 = vrot.slane %v543, 1
    %v819 = vrot.slane %v544, 1
    %v820 = vrot.slane %v545, 1
    %v821 = vrot.slane %v546, 1
    %v822 = vrot.slane %v547, 1
    %v823 = vrot.slane %v548, 1
    %v824 = vrot.slane %v549, 1
    %v825 = vrot.slane %v550, 1
    %v826 = vrot.slane %v551, 1
    %v827 = vrot.slane %v552, 1
    %v828 = vrot.slane %v553, 1
    %v829 = vrot.slane %v554, 1
    %v830 = vrot.slane %v555, 1
    %v831 = vrot.slane %v556, 1
    %v832 = vrot.slane %v557, 1
    %v833 = vrot.slane %v558, 1
    %v834 = vrot.slane %v559, 1
    %v835 = vrot.slane %v560, 1
    %v836 = vrot.slane %v561, 1
    %v837 = vrot.slane %v562, 1
    %v838 = vrot.slane %v563, 1
    %v839 = vrot.slane %v564, 1
    %v840 = vrot.slane %v565, 1
    %v841 = vrot.slane %v566, 1
    %v842 = vrot.slane %v567, 1
    %v843 = vrot.slane %v568, 1
    %v844 = vrot.slane %v569, 1
    %v845 = vrot.slane %v570, 1
    %v846 = vrot.slane %v571, 1
    %v847 = vrot.slane %v572, 1
    %v848 = vrot.slane %v573, 1
    %v849 = vrot.slane %v574, 1
    %v850 = vrot.slane %v575, 1
    %v851 = vrot.slane %v576, 1
    %v852 = vrot.slane %v577, 1
    %vm853 = vcmp.lt.s32.totalorder %v32, 7
    %v854 = vsel %vm853, %v851, %v852
    %v855 = vsel %vm853, %v850, %v851
    %v856 = vsel %vm853, %v849, %v850
    %v857 = vsel %vm853, %v848, %v849
    %v858 = vsel %vm853, %v847, %v848
    %v859 = vsel %vm853, %v846, %v847
    %v860 = vsel %vm853, %v845, %v846
    %v861 = vsel %vm853, %v844, %v845
    %v862 = vsel %vm853, %v843, %v844
    %v863 = vsel %vm853, %v842, %v843
    %v864 = vsel %vm853, %v841, %v842
    %v865 = vsel %vm853, %v840, %v841
    %v866 = vsel %vm853, %v839, %v840
    %v867 = vsel %vm853, %v838, %v839
    %v868 = vsel %vm853, %v837, %v838
    %v869 = vsel %vm853, %v836, %v837
    %v870 = vsel %vm853, %v835, %v836
    %v871 = vsel %vm853, %v834, %v835
    %v872 = vsel %vm853, %v833, %v834
    %v873 = vsel %vm853, %v832, %v833
    %v874 = vsel %vm853, %v831, %v832
    %v875 = vsel %vm853, %v830, %v831
    %v876 = vsel %vm853, %v829, %v830
    %v877 = vsel %vm853, %v828, %v829
    %v878 = vsel %vm853, %v827, %v828
    %v879 = vsel %vm853, %v826, %v827
    %v880 = vsel %vm853, %v825, %v826
    %v881 = vsel %vm853, %v824, %v825
    %v882 = vsel %vm853, %v823, %v824
    %v883 = vsel %vm853, %v822, %v823
    %v884 = vsel %vm853, %v821, %v822
    %v885 = vsel %vm853, %v820, %v821
    %v886 = vsel %vm853, %v819, %v820
    %v887 = vsel %vm853, %v818, %v819
    %v888 = vsel %vm853, %v817, %v818
    %v889 = vsel %vm853, %v816, %v817
    %v890 = vsel %vm853, %v815, %v816
    %v891 = vsel %vm853, %v814, %v815
    %v892 = vsel %vm853, %v813, %v814
    %v893 = vsel %vm853, %v812, %v813
    %v894 = vsel %vm853, %v811, %v812
    %v895 = vsel %vm853, %v810, %v811
    %v896 = vsel %vm853, %v809, %v810
    %v897 = vsel %vm853, %v808, %v809
    %v898 = vsel %vm853, %v852, %v808
    %v899 = vsel %vm302, 1, 0
    %v900 = vsel %vm303, 1, 0
    %v901 = vsel %vm304, 1, 0
    %v902 = vsel %vm305, 1, 0
    %v903 = vsel %vm306, 1, 0
    %v904 = vsel %vm307, 1, 0
    %v905 = vsel %vm308, 1, 0
    %v906 = vsel %vm309, 1, 0
    %v907 = vsel %vm310, 1, 0
    %v908 = vsel %vm311, 1, 0
    %v909 = vsel %vm312, 1, 0
    %v910 = vsel %vm313, 1, 0
    %v911 = vsel %vm314, 1, 0
    %v912 = vsel %vm315, 1, 0
    %v913 = vsel %vm316, 1, 0
    %v914 = vsel %vm317, 1, 0
    %v915 = vsel %vm318, 1, 0
    %v916 = vsel %vm319, 1, 0
    %v917 = vsel %vm320, 1, 0
    %v918 = vsel %vm321, 1, 0
    %v919 = vsel %vm322, 1, 0
    %v920 = vsel %vm323, 1, 0
    %v921 = vsel %vm324, 1, 0
    %v922 = vsel %vm325, 1, 0
    %v923 = vsel %vm326, 1, 0
    %v924 = vsel %vm327, 1, 0
    %v925 = vsel %vm328, 1, 0
    %v926 = vsel %vm329, 1, 0
    %v927 = vsel %vm330, 1, 0
    %v928 = vsel %vm331, 1, 0
    %v929 = vsel %vm332, 1, 0
    %v930 = vsel %vm333, 1, 0
    %v931 = vsel %vm334, 1, 0
    %v932 = vsel %vm335, 1, 0
    %v933 = vsel %vm336, 1, 0
    %v934 = vsel %vm337, 1, 0
    %v935 = vsel %vm338, 1, 0
    %v936 = vsel %vm339, 1, 0
    %v937 = vsel %vm340, 1, 0
    %v938 = vsel %vm341, 1, 0
    %v939 = vsel %vm342, 1, 0
    %v940 = vsel %vm343, 1, 0
    %v941 = vsel %vm344, 1, 0
    %v942 = vsel %vm345, 1, 0
    %v943 = vsel %vm346, 1, 0
    %vm944 = vcmp.eq.s32.totalorder %v899, 1
    %vm945 = vcmp.eq.s32.totalorder %v900, 1
    %vm946 = vcmp.eq.s32.totalorder %v901, 1
    %vm947 = vcmp.eq.s32.totalorder %v902, 1
    %vm948 = vcmp.eq.s32.totalorder %v903, 1
    %vm949 = vcmp.eq.s32.totalorder %v904, 1
    %vm950 = vcmp.eq.s32.totalorder %v905, 1
    %vm951 = vcmp.eq.s32.totalorder %v906, 1
    %vm952 = vcmp.eq.s32.totalorder %v907, 1
    %vm953 = vcmp.eq.s32.totalorder %v908, 1
    %vm954 = vcmp.eq.s32.totalorder %v909, 1
    %vm955 = vcmp.eq.s32.totalorder %v910, 1
    %vm956 = vcmp.eq.s32.totalorder %v911, 1
    %vm957 = vcmp.eq.s32.totalorder %v912, 1
    %vm958 = vcmp.eq.s32.totalorder %v913, 1
    %vm959 = vcmp.eq.s32.totalorder %v914, 1
    %vm960 = vcmp.eq.s32.totalorder %v915, 1
    %vm961 = vcmp.eq.s32.totalorder %v916, 1
    %vm962 = vcmp.eq.s32.totalorder %v917, 1
    %vm963 = vcmp.eq.s32.totalorder %v918, 1
    %vm964 = vcmp.eq.s32.totalorder %v919, 1
    %vm965 = vcmp.eq.s32.totalorder %v920, 1
    %vm966 = vcmp.eq.s32.totalorder %v921, 1
    %vm967 = vcmp.eq.s32.totalorder %v922, 1
    %vm968 = vcmp.eq.s32.totalorder %v923, 1
    %vm969 = vcmp.eq.s32.totalorder %v924, 1
    %vm970 = vcmp.eq.s32.totalorder %v925, 1
    %vm971 = vcmp.eq.s32.totalorder %v926, 1
    %vm972 = vcmp.eq.s32.totalorder %v927, 1
    %vm973 = vcmp.eq.s32.totalorder %v928, 1
    %vm974 = vcmp.eq.s32.totalorder %v929, 1
    %vm975 = vcmp.eq.s32.totalorder %v930, 1
    %vm976 = vcmp.eq.s32.totalorder %v931, 1
    %vm977 = vcmp.eq.s32.totalorder %v932, 1
    %vm978 = vcmp.eq.s32.totalorder %v933, 1
    %vm979 = vcmp.eq.s32.totalorder %v934, 1
    %vm980 = vcmp.eq.s32.totalorder %v935, 1
    %vm981 = vcmp.eq.s32.totalorder %v936, 1
    %vm982 = vcmp.eq.s32.totalorder %v937, 1
    %vm983 = vcmp.eq.s32.totalorder %v938, 1
    %vm984 = vcmp.eq.s32.totalorder %v939, 1
    %vm985 = vcmp.eq.s32.totalorder %v940, 1
    %vm986 = vcmp.eq.s32.totalorder %v941, 1
    %vm987 = vcmp.eq.s32.totalorder %v942, 1
    %vm988 = vcmp.eq.s32.totalorder %v943, 1
    %v989 = vsel %vm944, 0.0, %v897
    %v990 = vsel %vm945, 0.0, %v896
    %v991 = vsel %vm946, 0.0, %v895
    %v992 = vsel %vm947, 0.0, %v894
    %v993 = vsel %vm948, 0.0, %v893
    %v994 = vsel %vm949, 0.0, %v892
    %v995 = vsel %vm950, 0.0, %v891
    %v996 = vsel %vm951, 0.0, %v890
    %v997 = vsel %vm952, 0.0, %v889
    %v998 = vsel %vm953, 0.0, %v888
    %v999 = vsel %vm954, 0.0, %v887
    %v1000 = vsel %vm955, 0.0, %v886
    %v1001 = vsel %vm956, 0.0, %v885
    %v1002 = vsel %vm957, 0.0, %v884
    %v1003 = vsel %vm958, 0.0, %v883
    %v1004 = vsel %vm959, 0.0, %v882
    %v1005 = vsel %vm960, 0.0, %v881
    %v1006 = vsel %vm961, 0.0, %v880
    %v1007 = vsel %vm962, 0.0, %v879
    %v1008 = vsel %vm963, 0.0, %v878
    %v1009 = vsel %vm964, 0.0, %v877
    %v1010 = vsel %vm965, 0.0, %v876
    %v1011 = vsel %vm966, 0.0, %v875
    %v1012 = vsel %vm967, 0.0, %v874
    %v1013 = vsel %vm968, 0.0, %v873
    %v1014 = vsel %vm969, 0.0, %v872
    %v1015 = vsel %vm970, 0.0, %v871
    %v1016 = vsel %vm971, 0.0, %v870
    %v1017 = vsel %vm972, 0.0, %v869
    %v1018 = vsel %vm973, 0.0, %v868
    %v1019 = vsel %vm974, 0.0, %v867
    %v1020 = vsel %vm975, 0.0, %v866
    %v1021 = vsel %vm976, 0.0, %v865
    %v1022 = vsel %vm977, 0.0, %v864
    %v1023 = vsel %vm978, 0.0, %v863
    %v1024 = vsel %vm979, 0.0, %v862
    %v1025 = vsel %vm980, 0.0, %v861
    %v1026 = vsel %vm981, 0.0, %v860
    %v1027 = vsel %vm982, 0.0, %v859
    %v1028 = vsel %vm983, 0.0, %v858
    %v1029 = vsel %vm984, 0.0, %v857
    %v1030 = vsel %vm985, 0.0, %v856
    %v1031 = vsel %vm986, 0.0, %v855
    %v1032 = vsel %vm987, 0.0, %v854
    %v1033 = vsel %vm988, 0.0, %v898
    %1079 = vrot.lane.b32.xlu0 %v533, 8
    %v1080 = vpop.permute.xlu0 %1079
    %1081 = vrot.lane.b32.xlu0 %v534, 8
    %v1082 = vpop.permute.xlu0 %1081
    %1083 = vrot.lane.b32.xlu0 %v535, 8
    %v1084 = vpop.permute.xlu0 %1083
    %1085 = vrot.lane.b32.xlu0 %v536, 8
    %v1086 = vpop.permute.xlu0 %1085
    %1087 = vrot.lane.b32.xlu0 %v537, 8
    %v1088 = vpop.permute.xlu0 %1087
    %1089 = vrot.lane.b32.xlu0 %v538, 8
    %v1090 = vpop.permute.xlu0 %1089
    %1091 = vrot.lane.b32.xlu0 %v539, 8
    %v1092 = vpop.permute.xlu0 %1091
    %1093 = vrot.lane.b32.xlu0 %v540, 8
    %v1094 = vpop.permute.xlu0 %1093
    %1095 = vrot.lane.b32.xlu0 %v541, 8
    %v1096 = vpop.permute.xlu0 %1095
    %1097 = vrot.lane.b32.xlu0 %v542, 8
    %v1098 = vpop.permute.xlu0 %1097
    %1099 = vrot.lane.b32.xlu0 %v543, 8
    %v1100 = vpop.permute.xlu0 %1099
    %1101 = vrot.lane.b32.xlu0 %v544, 8
    %v1102 = vpop.permute.xlu0 %1101
    %1103 = vrot.lane.b32.xlu0 %v545, 8
    %v1104 = vpop.permute.xlu0 %1103
    %1105 = vrot.lane.b32.xlu0 %v546, 8
    %v1106 = vpop.permute.xlu0 %1105
    %1107 = vrot.lane.b32.xlu0 %v547, 8
    %v1108 = vpop.permute.xlu0 %1107
    %1109 = vrot.lane.b32.xlu0 %v548, 8
    %v1110 = vpop.permute.xlu0 %1109
    %1111 = vrot.lane.b32.xlu0 %v549, 8
    %v1112 = vpop.permute.xlu0 %1111
    %1113 = vrot.lane.b32.xlu0 %v550, 8
    %v1114 = vpop.permute.xlu0 %1113
    %1115 = vrot.lane.b32.xlu0 %v551, 8
    %v1116 = vpop.permute.xlu0 %1115
    %1117 = vrot.lane.b32.xlu0 %v552, 8
    %v1118 = vpop.permute.xlu0 %1117
    %1119 = vrot.lane.b32.xlu0 %v553, 8
    %v1120 = vpop.permute.xlu0 %1119
    %1121 = vrot.lane.b32.xlu0 %v554, 8
    %v1122 = vpop.permute.xlu0 %1121
    %1123 = vrot.lane.b32.xlu0 %v555, 8
    %v1124 = vpop.permute.xlu0 %1123
    %1125 = vrot.lane.b32.xlu0 %v556, 8
    %v1126 = vpop.permute.xlu0 %1125
    %1127 = vrot.lane.b32.xlu0 %v557, 8
    %v1128 = vpop.permute.xlu0 %1127
    %1129 = vrot.lane.b32.xlu0 %v558, 8
    %v1130 = vpop.permute.xlu0 %1129
    %1131 = vrot.lane.b32.xlu0 %v559, 8
    %v1132 = vpop.permute.xlu0 %1131
    %1133 = vrot.lane.b32.xlu0 %v560, 8
    %v1134 = vpop.permute.xlu0 %1133
    %1135 = vrot.lane.b32.xlu0 %v561, 8
    %v1136 = vpop.permute.xlu0 %1135
    %1137 = vrot.lane.b32.xlu0 %v562, 8
    %v1138 = vpop.permute.xlu0 %1137
    %1139 = vrot.lane.b32.xlu0 %v563, 8
    %v1140 = vpop.permute.xlu0 %1139
    %1141 = vrot.lane.b32.xlu0 %v564, 8
    %v1142 = vpop.permute.xlu0 %1141
    %1143 = vrot.lane.b32.xlu0 %v565, 8
    %v1144 = vpop.permute.xlu0 %1143
    %1145 = vrot.lane.b32.xlu0 %v566, 8
    %v1146 = vpop.permute.xlu0 %1145
    %1147 = vrot.lane.b32.xlu0 %v567, 8
    %v1148 = vpop.permute.xlu0 %1147
    %1149 = vrot.lane.b32.xlu0 %v568, 8
    %v1150 = vpop.permute.xlu0 %1149
    %1151 = vrot.lane.b32.xlu0 %v569, 8
    %v1152 = vpop.permute.xlu0 %1151
    %1153 = vrot.lane.b32.xlu0 %v570, 8
    %v1154 = vpop.permute.xlu0 %1153
    %1155 = vrot.lane.b32.xlu0 %v571, 8
    %v1156 = vpop.permute.xlu0 %1155
    %1157 = vrot.lane.b32.xlu0 %v572, 8
    %v1158 = vpop.permute.xlu0 %1157
    %1159 = vrot.lane.b32.xlu0 %v573, 8
    %v1160 = vpop.permute.xlu0 %1159
    %1161 = vrot.lane.b32.xlu0 %v574, 8
    %v1162 = vpop.permute.xlu0 %1161
    %1163 = vrot.lane.b32.xlu0 %v575, 8
    %v1164 = vpop.permute.xlu0 %1163
    %1165 = vrot.lane.b32.xlu0 %v576, 8
    %v1166 = vpop.permute.xlu0 %1165
    %1167 = vrot.lane.b32.xlu0 %v577, 8
    %v1168 = vpop.permute.xlu0 %1167
    %1259 = vrot.lane.b32.xlu0 %v989, 16
    %v1260 = vpop.permute.xlu0 %1259
    %1261 = vrot.lane.b32.xlu0 %v990, 16
    %v1262 = vpop.permute.xlu0 %1261
    %1263 = vrot.lane.b32.xlu0 %v991, 16
    %v1264 = vpop.permute.xlu0 %1263
    %1265 = vrot.lane.b32.xlu0 %v992, 16
    %v1266 = vpop.permute.xlu0 %1265
    %1267 = vrot.lane.b32.xlu0 %v993, 16
    %v1268 = vpop.permute.xlu0 %1267
    %1269 = vrot.lane.b32.xlu0 %v994, 16
    %v1270 = vpop.permute.xlu0 %1269
    %1271 = vrot.lane.b32.xlu0 %v995, 16
    %v1272 = vpop.permute.xlu0 %1271
    %1273 = vrot.lane.b32.xlu0 %v996, 16
    %v1274 = vpop.permute.xlu0 %1273
    %1275 = vrot.lane.b32.xlu0 %v997, 16
    %v1276 = vpop.permute.xlu0 %1275
    %1277 = vrot.lane.b32.xlu0 %v998, 16
    %v1278 = vpop.permute.xlu0 %1277
    %1279 = vrot.lane.b32.xlu0 %v999, 16
    %v1280 = vpop.permute.xlu0 %1279
    %1281 = vrot.lane.b32.xlu0 %v1000, 16
    %v1282 = vpop.permute.xlu0 %1281
    %1283 = vrot.lane.b32.xlu0 %v1001, 16
    %v1284 = vpop.permute.xlu0 %1283
    %1285 = vrot.lane.b32.xlu0 %v1002, 16
    %v1286 = vpop.permute.xlu0 %1285
    %1287 = vrot.lane.b32.xlu0 %v1003, 16
    %v1288 = vpop.permute.xlu0 %1287
    %1289 = vrot.lane.b32.xlu0 %v1004, 16
    %v1290 = vpop.permute.xlu0 %1289
    %1291 = vrot.lane.b32.xlu0 %v1005, 16
    %v1292 = vpop.permute.xlu0 %1291
    %1293 = vrot.lane.b32.xlu0 %v1006, 16
    %v1294 = vpop.permute.xlu0 %1293
    %1295 = vrot.lane.b32.xlu0 %v1007, 16
    %v1296 = vpop.permute.xlu0 %1295
    %1297 = vrot.lane.b32.xlu0 %v1008, 16
    %v1298 = vpop.permute.xlu0 %1297
    %1299 = vrot.lane.b32.xlu0 %v1009, 16
    %v1300 = vpop.permute.xlu0 %1299
    %1301 = vrot.lane.b32.xlu0 %v1010, 16
    %v1302 = vpop.permute.xlu0 %1301
    %1303 = vrot.lane.b32.xlu0 %v1011, 16
    %v1304 = vpop.permute.xlu0 %1303
    %1305 = vrot.lane.b32.xlu0 %v1012, 16
    %v1306 = vpop.permute.xlu0 %1305
    %1307 = vrot.lane.b32.xlu0 %v1013, 16
    %v1308 = vpop.permute.xlu0 %1307
    %1309 = vrot.lane.b32.xlu0 %v1014, 16
    %v1310 = vpop.permute.xlu0 %1309
    %1311 = vrot.lane.b32.xlu0 %v1015, 16
    %v1312 = vpop.permute.xlu0 %1311
    %1313 = vrot.lane.b32.xlu0 %v1016, 16
    %v1314 = vpop.permute.xlu0 %1313
    %1315 = vrot.lane.b32.xlu0 %v1017, 16
    %v1316 = vpop.permute.xlu0 %1315
    %1317 = vrot.lane.b32.xlu0 %v1018, 16
    %v1318 = vpop.permute.xlu0 %1317
    %1319 = vrot.lane.b32.xlu0 %v1019, 16
    %v1320 = vpop.permute.xlu0 %1319
    %1321 = vrot.lane.b32.xlu0 %v1020, 16
    %v1322 = vpop.permute.xlu0 %1321
    %1323 = vrot.lane.b32.xlu0 %v1021, 16
    %v1324 = vpop.permute.xlu0 %1323
    %1325 = vrot.lane.b32.xlu0 %v1022, 16
    %v1326 = vpop.permute.xlu0 %1325
    %1327 = vrot.lane.b32.xlu0 %v1023, 16
    %v1328 = vpop.permute.xlu0 %1327
    %1329 = vrot.lane.b32.xlu0 %v1024, 16
    %v1330 = vpop.permute.xlu0 %1329
    %1331 = vrot.lane.b32.xlu0 %v1025, 16
    %v1332 = vpop.permute.xlu0 %1331
    %1333 = vrot.lane.b32.xlu0 %v1026, 16
    %v1334 = vpop.permute.xlu0 %1333
    %1335 = vrot.lane.b32.xlu0 %v1027, 16
    %v1336 = vpop.permute.xlu0 %1335
    %1337 = vrot.lane.b32.xlu0 %v1028, 16
    %v1338 = vpop.permute.xlu0 %1337
    %1339 = vrot.lane.b32.xlu0 %v1029, 16
    %v1340 = vpop.permute.xlu0 %1339
    %1341 = vrot.lane.b32.xlu0 %v1030, 16
    %v1342 = vpop.permute.xlu0 %1341
    %1343 = vrot.lane.b32.xlu0 %v1031, 16
    %v1344 = vpop.permute.xlu0 %1343
    %1345 = vrot.lane.b32.xlu0 %v1032, 16
    %v1346 = vpop.permute.xlu0 %1345
    %1347 = vrot.lane.b32.xlu0 %v1033, 16
    %v1348 = vpop.permute.xlu0 %1347
    %vm1394 = vcmask 64512
    %v1395 = vsel %vm1394, %v763, %v1080
    %v1396 = vsel %vm1394, %v764, %v1082
    %v1397 = vsel %vm1394, %v765, %v1084
    %v1398 = vsel %vm1394, %v766, %v1086
    %v1399 = vsel %vm1394, %v767, %v1088
    %v1400 = vsel %vm1394, %v768, %v1090
    %v1401 = vsel %vm1394, %v769, %v1092
    %v1402 = vsel %vm1394, %v770, %v1094
    %v1403 = vsel %vm1394, %v771, %v1096
    %v1404 = vsel %vm1394, %v772, %v1098
    %v1405 = vsel %vm1394, %v773, %v1100
    %v1406 = vsel %vm1394, %v774, %v1102
    %v1407 = vsel %vm1394, %v775, %v1104
    %v1408 = vsel %vm1394, %v776, %v1106
    %v1409 = vsel %vm1394, %v777, %v1108
    %v1410 = vsel %vm1394, %v778, %v1110
    %v1411 = vsel %vm1394, %v779, %v1112
    %v1412 = vsel %vm1394, %v780, %v1114
    %v1413 = vsel %vm1394, %v781, %v1116
    %v1414 = vsel %vm1394, %v782, %v1118
    %v1415 = vsel %vm1394, %v783, %v1120
    %v1416 = vsel %vm1394, %v784, %v1122
    %v1417 = vsel %vm1394, %v785, %v1124
    %v1418 = vsel %vm1394, %v786, %v1126
    %v1419 = vsel %vm1394, %v787, %v1128
    %v1420 = vsel %vm1394, %v788, %v1130
    %v1421 = vsel %vm1394, %v789, %v1132
    %v1422 = vsel %vm1394, %v790, %v1134
    %v1423 = vsel %vm1394, %v791, %v1136
    %v1424 = vsel %vm1394, %v792, %v1138
    %v1425 = vsel %vm1394, %v793, %v1140
    %v1426 = vsel %vm1394, %v794, %v1142
    %v1427 = vsel %vm1394, %v795, %v1144
    %v1428 = vsel %vm1394, %v796, %v1146
    %v1429 = vsel %vm1394, %v797, %v1148
    %v1430 = vsel %vm1394, %v798, %v1150
    %v1431 = vsel %vm1394, %v799, %v1152
    %v1432 = vsel %vm1394, %v800, %v1154
    %v1433 = vsel %vm1394, %v801, %v1156
    %v1434 = vsel %vm1394, %v802, %v1158
    %v1435 = vsel %vm1394, %v803, %v1160
    %v1436 = vsel %vm1394, %v804, %v1162
    %v1437 = vsel %vm1394, %v805, %v1164
    %v1438 = vsel %vm1394, %v806, %v1166
    %v1439 = vsel %vm1394, %v807, %v1168
    %vm1440 = vcmask 130048
    %v1441 = vsel %vm1440, %v1395, %v1260
    %v1442 = vsel %vm1440, %v1396, %v1262
    %v1443 = vsel %vm1440, %v1397, %v1264
    %v1444 = vsel %vm1440, %v1398, %v1266
    %v1445 = vsel %vm1440, %v1399, %v1268
    %v1446 = vsel %vm1440, %v1400, %v1270
    %v1447 = vsel %vm1440, %v1401, %v1272
    %v1448 = vsel %vm1440, %v1402, %v1274
    %v1449 = vsel %vm1440, %v1403, %v1276
    %v1450 = vsel %vm1440, %v1404, %v1278
    %v1451 = vsel %vm1440, %v1405, %v1280
    %v1452 = vsel %vm1440, %v1406, %v1282
    %v1453 = vsel %vm1440, %v1407, %v1284
    %v1454 = vsel %vm1440, %v1408, %v1286
    %v1455 = vsel %vm1440, %v1409, %v1288
    %v1456 = vsel %vm1440, %v1410, %v1290
    %v1457 = vsel %vm1440, %v1411, %v1292
    %v1458 = vsel %vm1440, %v1412, %v1294
    %v1459 = vsel %vm1440, %v1413, %v1296
    %v1460 = vsel %vm1440, %v1414, %v1298
    %v1461 = vsel %vm1440, %v1415, %v1300
    %v1462 = vsel %vm1440, %v1416, %v1302
    %v1463 = vsel %vm1440, %v1417, %v1304
    %v1464 = vsel %vm1440, %v1418, %v1306
    %v1465 = vsel %vm1440, %v1419, %v1308
    %v1466 = vsel %vm1440, %v1420, %v1310
    %v1467 = vsel %vm1440, %v1421, %v1312
    %v1468 = vsel %vm1440, %v1422, %v1314
    %v1469 = vsel %vm1440, %v1423, %v1316
    %v1470 = vsel %vm1440, %v1424, %v1318
    %v1471 = vsel %vm1440, %v1425, %v1320
    %v1472 = vsel %vm1440, %v1426, %v1322
    %v1473 = vsel %vm1440, %v1427, %v1324
    %v1474 = vsel %vm1440, %v1428, %v1326
    %v1475 = vsel %vm1440, %v1429, %v1328
    %v1476 = vsel %vm1440, %v1430, %v1330
    %v1477 = vsel %vm1440, %v1431, %v1332
    %v1478 = vsel %vm1440, %v1432, %v1334
    %v1479 = vsel %vm1440, %v1433, %v1336
    %v1480 = vsel %vm1440, %v1434, %v1338
    %v1481 = vsel %vm1440, %v1435, %v1340
    %v1482 = vsel %vm1440, %v1436, %v1342
    %v1483 = vsel %vm1440, %v1437, %v1344
    %v1484 = vsel %vm1440, %v1438, %v1346
    %v1485 = vsel %vm1440, %v1439, %v1348
    %v1486 = vpack.c.bf16 %v1442, %v1441
    %v1487 = vpack.c.bf16 %v1444, %v1443
    %v1488 = vpack.c.bf16 %v1446, %v1445
    %v1489 = vpack.c.bf16 %v1448, %v1447
    %v1490 = vpack.c.bf16 %v1450, %v1449
    %v1491 = vpack.c.bf16 %v1452, %v1451
    %v1492 = vpack.c.bf16 %v1454, %v1453
    %v1493 = vpack.c.bf16 %v1456, %v1455
    %v1494 = vpack.c.bf16 %v1458, %v1457
    %v1495 = vpack.c.bf16 %v1460, %v1459
    %v1496 = vpack.c.bf16 %v1462, %v1461
    %v1497 = vpack.c.bf16 %v1464, %v1463
    %v1498 = vpack.c.bf16 %v1466, %v1465
    %v1499 = vpack.c.bf16 %v1468, %v1467
    %v1500 = vpack.c.bf16 %v1470, %v1469
    %v1501 = vpack.c.bf16 %v1472, %v1471
    %v1502 = vpack.c.bf16 %v1474, %v1473
    %v1503 = vpack.c.bf16 %v1476, %v1475
    %v1504 = vpack.c.bf16 %v1478, %v1477
    %v1505 = vpack.c.bf16 %v1480, %v1479
    %v1506 = vpack.c.bf16 %v1482, %v1481
    %v1507 = vpack.c.bf16 %v1484, %v1483
    %v1508 = vpack.c.bf16 %v1485, %v1485
    %v1509 = vlaneseq
    %v1510 = vshrl.u32 %v1509, 7
    %v1511 = vsub.s32 0, %v1510
    %v1512 = vrot.slane %v581, %v1511
    %v1516 = vunpack.c.l.b16 %v578
    %v1517 = vunpack.c.l.b16 %v579
    %v1518 = vunpack.c.l.b16 %v580
    %v1519 = vpack.c.b16 %v1517, %v1516
    %v1520 = vpack.c.b16 %v1518, %v1518
    %vm1522 = vcmask 195584
    %v1524 = vsel %vm1522, %v1486, 0
    %v1527 = vsel %vm1522, %v1487, 0
    %v1530 = vsel %vm1522, %v1488, 0
    %v1533 = vsel %vm1522, %v1489, 0
    %v1536 = vsel %vm1522, %v1490, 0
    %v1539 = vsel %vm1522, %v1491, 0
    %v1542 = vsel %vm1522, %v1492, 0
    %v1545 = vsel %vm1522, %v1493, 0
    %v1548 = vsel %vm1522, %v1494, 0
    %v1551 = vsel %vm1522, %v1495, 0
    %v1554 = vsel %vm1522, %v1496, 0
    %v1557 = vsel %vm1522, %v1497, 0
    %v1560 = vsel %vm1522, %v1498, 0
    %v1563 = vsel %vm1522, %v1499, 0
    %v1566 = vsel %vm1522, %v1500, 0
    %v1569 = vsel %vm1522, %v1501, 0
    %v1572 = vsel %vm1522, %v1502, 0
    %v1575 = vsel %vm1522, %v1503, 0
    %v1578 = vsel %vm1522, %v1504, 0
    %v1581 = vsel %vm1522, %v1505, 0
    %v1584 = vsel %vm1522, %v1506, 0
    %v1587 = vsel %vm1522, %v1507, 0
    %v1590 = vsel %vm1522, %v1508, 0
    %vm1592 = vcmask 1043456
    %v1594 = vsel %vm1592, %v1520, 0
    %1596 = vmatprep.subr.bf16.mxu0 0
    %1597 = vmatpush1.bf16.msra.mxu0 %v1519
    %1598 = vmatprep.subr.bf16.mxu0 0
    %1599 = vmatpush1.bf16.msra.mxu0 %v1594
    %1600 = vmatprep.subr.bf16.mxu0 0
    %1601 = vmatpush1.bf16.msra.mxu0 0
    %1602 = vmatprep.subr.bf16.mxu0 0
    %1603 = vmatpush1.bf16.msra.mxu0 0
    %1604 = vmatprep.subr.bf16.mxu0 0
    %1605 = vmatpush1.bf16.msra.mxu0 0
    %1606 = vmatprep.subr.bf16.mxu0 0
    %1607 = vmatpush1.bf16.msra.mxu0 0
    %1608 = vmatprep.subr.bf16.mxu0 0
    %1609 = vmatpush1.bf16.msra.mxu0 0
    %1610 = vmatprep.subr.bf16.mxu0 0
    %1611 = vmatpush1.bf16.msra.mxu0 0
    %1612 = vmatprep.subr.bf16.mxu0 0
    %1613 = vmatpush1.bf16.msra.mxu0 0
    %1614 = vmatprep.subr.bf16.mxu0 0
    %1615 = vmatpush1.bf16.msra.mxu0 0
    %1616 = vmatprep.subr.bf16.mxu0 0
    %1617 = vmatpush1.bf16.msra.mxu0 0
    %1618 = vmatprep.subr.bf16.mxu0 0
    %1619 = vmatpush1.bf16.msra.mxu0 0
    %1620 = vmatprep.subr.bf16.mxu0 0
    %1621 = vmatpush1.bf16.msra.mxu0 0
    %1622 = vmatprep.subr.bf16.mxu0 0
    %1623 = vmatpush1.bf16.msra.mxu0 0
    %1624 = vmatprep.subr.bf16.mxu0 0
    %1625 = vmatpush1.bf16.msra.mxu0 0
    %1626 = vmatprep.subr.bf16.mxu0 0
    %1627 = vmatpush1.bf16.msra.mxu0 0
    %1628 = vmatprep.mubr.bf16.mxu0 0
    %1629 = vmatmul.mubr.bf16.gmra.mrb[0].mxu0 %v1524
    %v1630 = vpop.f32.mrb[0].mxu0
    %v1631 = vadd.f32 %v1512, %v1630
    %v1632 = vpop.f32.mrb[0].mxu0
    %v1633 = vpop.f32.mrb[0].mxu0
    %v1634 = vadd.f32 %v1512, %v1633
    %v1635 = vpop.f32.mrb[0].mxu0
    %1636 = vmatprep.mubr.bf16.mxu0 0
    %1637 = vmatmul.mubr.bf16.gmra.mrb[0].mxu0 %v1527
    %v1638 = vpop.f32.mrb[0].mxu0
    %v1639 = vadd.f32 %v1512, %v1638
    %v1640 = vpop.f32.mrb[0].mxu0
    %v1641 = vpop.f32.mrb[0].mxu0
    %v1642 = vadd.f32 %v1512, %v1641
    %v1643 = vpop.f32.mrb[0].mxu0
    %1644 = vmatprep.mubr.bf16.mxu0 0
    %1645 = vmatmul.mubr.bf16.gmra.mrb[0].mxu0 %v1530
    %v1646 = vpop.f32.mrb[0].mxu0
    %v1647 = vadd.f32 %v1512, %v1646
    %v1648 = vpop.f32.mrb[0].mxu0
    %v1649 = vpop.f32.mrb[0].mxu0
    %v1650 = vadd.f32 %v1512, %v1649
    %v1651 = vpop.f32.mrb[0].mxu0
    %1652 = vmatprep.mubr.bf16.mxu0 0
    %1653 = vmatmul.mubr.bf16.gmra.mrb[0].mxu0 %v1533
    %v1654 = vpop.f32.mrb[0].mxu0
    %v1655 = vadd.f32 %v1512, %v1654
    %v1656 = vpop.f32.mrb[0].mxu0
    %v1657 = vpop.f32.mrb[0].mxu0
    %v1658 = vadd.f32 %v1512, %v1657
    %v1659 = vpop.f32.mrb[0].mxu0
    %1660 = vmatprep.mubr.bf16.mxu0 0
    %1661 = vmatmul.mubr.bf16.gmra.mrb[0].mxu0 %v1536
    %v1662 = vpop.f32.mrb[0].mxu0
    %v1663 = vadd.f32 %v1512, %v1662
    %v1664 = vpop.f32.mrb[0].mxu0
    %v1665 = vpop.f32.mrb[0].mxu0
    %v1666 = vadd.f32 %v1512, %v1665
    %v1667 = vpop.f32.mrb[0].mxu0
    %1668 = vmatprep.mubr.bf16.mxu0 0
    %1669 = vmatmul.mubr.bf16.gmra.mrb[0].mxu0 %v1539
    %v1670 = vpop.f32.mrb[0].mxu0
    %v1671 = vadd.f32 %v1512, %v1670
    %v1672 = vpop.f32.mrb[0].mxu0
    %v1673 = vpop.f32.mrb[0].mxu0
    %v1674 = vadd.f32 %v1512, %v1673
    %v1675 = vpop.f32.mrb[0].mxu0
    %1676 = vmatprep.mubr.bf16.mxu0 0
    %1677 = vmatmul.mubr.bf16.gmra.mrb[0].mxu0 %v1542
    %v1678 = vpop.f32.mrb[0].mxu0
    %v1679 = vadd.f32 %v1512, %v1678
    %v1680 = vpop.f32.mrb[0].mxu0
    %v1681 = vpop.f32.mrb[0].mxu0
    %v1682 = vadd.f32 %v1512, %v1681
    %v1683 = vpop.f32.mrb[0].mxu0
    %1684 = vmatprep.mubr.bf16.mxu0 0
    %1685 = vmatmul.mubr.bf16.gmra.mrb[0].mxu0 %v1545
    %v1686 = vpop.f32.mrb[0].mxu0
    %v1687 = vadd.f32 %v1512, %v1686
    %v1688 = vpop.f32.mrb[0].mxu0
    %v1689 = vpop.f32.mrb[0].mxu0
    %v1690 = vadd.f32 %v1512, %v1689
    %v1691 = vpop.f32.mrb[0].mxu0
    %1692 = vmatprep.mubr.bf16.mxu0 0
    %1693 = vmatmul.mubr.bf16.gmra.mrb[0].mxu0 %v1548
    %v1694 = vpop.f32.mrb[0].mxu0
    %v1695 = vadd.f32 %v1512, %v1694
    %v1696 = vpop.f32.mrb[0].mxu0
    %v1697 = vpop.f32.mrb[0].mxu0
    %v1698 = vadd.f32 %v1512, %v1697
    %v1699 = vpop.f32.mrb[0].mxu0
    %1700 = vmatprep.mubr.bf16.mxu0 0
    %1701 = vmatmul.mubr.bf16.gmra.mrb[0].mxu0 %v1551
    %v1702 = vpop.f32.mrb[0].mxu0
    %v1703 = vadd.f32 %v1512, %v1702
    %v1704 = vpop.f32.mrb[0].mxu0
    %v1705 = vpop.f32.mrb[0].mxu0
    %v1706 = vadd.f32 %v1512, %v1705
    %v1707 = vpop.f32.mrb[0].mxu0
    %1708 = vmatprep.mubr.bf16.mxu0 0
    %1709 = vmatmul.mubr.bf16.gmra.mrb[0].mxu0 %v1554
    %v1710 = vpop.f32.mrb[0].mxu0
    %v1711 = vadd.f32 %v1512, %v1710
    %v1712 = vpop.f32.mrb[0].mxu0
    %v1713 = vpop.f32.mrb[0].mxu0
    %v1714 = vadd.f32 %v1512, %v1713
    %v1715 = vpop.f32.mrb[0].mxu0
    %1716 = vmatprep.mubr.bf16.mxu0 0
    %1717 = vmatmul.mubr.bf16.gmra.mrb[0].mxu0 %v1557
    %v1718 = vpop.f32.mrb[0].mxu0
    %v1719 = vadd.f32 %v1512, %v1718
    %v1720 = vpop.f32.mrb[0].mxu0
    %v1721 = vpop.f32.mrb[0].mxu0
    %v1722 = vadd.f32 %v1512, %v1721
    %v1723 = vpop.f32.mrb[0].mxu0
    %1724 = vmatprep.mubr.bf16.mxu0 0
    %1725 = vmatmul.mubr.bf16.gmra.mrb[0].mxu0 %v1560
    %v1726 = vpop.f32.mrb[0].mxu0
    %v1727 = vadd.f32 %v1512, %v1726
    %v1728 = vpop.f32.mrb[0].mxu0
    %v1729 = vpop.f32.mrb[0].mxu0
    %v1730 = vadd.f32 %v1512, %v1729
    %v1731 = vpop.f32.mrb[0].mxu0
    %1732 = vmatprep.mubr.bf16.mxu0 0
    %1733 = vmatmul.mubr.bf16.gmra.mrb[0].mxu0 %v1563
    %v1734 = vpop.f32.mrb[0].mxu0
    %v1735 = vadd.f32 %v1512, %v1734
    %v1736 = vpop.f32.mrb[0].mxu0
    %v1737 = vpop.f32.mrb[0].mxu0
    %v1738 = vadd.f32 %v1512, %v1737
    %v1739 = vpop.f32.mrb[0].mxu0
    %1740 = vmatprep.mubr.bf16.mxu0 0
    %1741 = vmatmul.mubr.bf16.gmra.mrb[0].mxu0 %v1566
    %v1742 = vpop.f32.mrb[0].mxu0
    %v1743 = vadd.f32 %v1512, %v1742
    %v1744 = vpop.f32.mrb[0].mxu0
    %v1745 = vpop.f32.mrb[0].mxu0
    %v1746 = vadd.f32 %v1512, %v1745
    %v1747 = vpop.f32.mrb[0].mxu0
    %1748 = vmatprep.mubr.bf16.mxu0 0
    %1749 = vmatmul.mubr.bf16.gmra.mrb[0].mxu0 %v1569
    %v1750 = vpop.f32.mrb[0].mxu0
    %v1751 = vadd.f32 %v1512, %v1750
    %v1752 = vpop.f32.mrb[0].mxu0
    %v1753 = vpop.f32.mrb[0].mxu0
    %v1754 = vadd.f32 %v1512, %v1753
    %v1755 = vpop.f32.mrb[0].mxu0
    %1756 = vmatprep.mubr.bf16.mxu0 0
    %1757 = vmatmul.mubr.bf16.gmra.mrb[0].mxu0 %v1572
    %v1758 = vpop.f32.mrb[0].mxu0
    %v1759 = vadd.f32 %v1512, %v1758
    %v1760 = vpop.f32.mrb[0].mxu0
    %v1761 = vpop.f32.mrb[0].mxu0
    %v1762 = vadd.f32 %v1512, %v1761
    %v1763 = vpop.f32.mrb[0].mxu0
    %1764 = vmatprep.mubr.bf16.mxu0 0
    %1765 = vmatmul.mubr.bf16.gmra.mrb[0].mxu0 %v1575
    %v1766 = vpop.f32.mrb[0].mxu0
    %v1767 = vadd.f32 %v1512, %v1766
    %v1768 = vpop.f32.mrb[0].mxu0
    %v1769 = vpop.f32.mrb[0].mxu0
    %v1770 = vadd.f32 %v1512, %v1769
    %v1771 = vpop.f32.mrb[0].mxu0
    %1772 = vmatprep.mubr.bf16.mxu0 0
    %1773 = vmatmul.mubr.bf16.gmra.mrb[0].mxu0 %v1578
    %v1774 = vpop.f32.mrb[0].mxu0
    %v1775 = vadd.f32 %v1512, %v1774
    %v1776 = vpop.f32.mrb[0].mxu0
    %v1777 = vpop.f32.mrb[0].mxu0
    %v1778 = vadd.f32 %v1512, %v1777
    %v1779 = vpop.f32.mrb[0].mxu0
    %1780 = vmatprep.mubr.bf16.mxu0 0
    %1781 = vmatmul.mubr.bf16.gmra.mrb[0].mxu0 %v1581
    %v1782 = vpop.f32.mrb[0].mxu0
    %v1783 = vadd.f32 %v1512, %v1782
    %v1784 = vpop.f32.mrb[0].mxu0
    %v1785 = vpop.f32.mrb[0].mxu0
    %v1786 = vadd.f32 %v1512, %v1785
    %v1787 = vpop.f32.mrb[0].mxu0
    %1788 = vmatprep.mubr.bf16.mxu0 0
    %1789 = vmatmul.mubr.bf16.gmra.mrb[0].mxu0 %v1584
    %v1790 = vpop.f32.mrb[0].mxu0
    %v1791 = vadd.f32 %v1512, %v1790
    %v1792 = vpop.f32.mrb[0].mxu0
    %v1793 = vpop.f32.mrb[0].mxu0
    %v1794 = vadd.f32 %v1512, %v1793
    %v1795 = vpop.f32.mrb[0].mxu0
    %1796 = vmatprep.mubr.bf16.mxu0 0
    %1797 = vmatmul.mubr.bf16.gmra.mrb[0].mxu0 %v1587
    %v1798 = vpop.f32.mrb[0].mxu0
    %v1799 = vadd.f32 %v1512, %v1798
    %v1800 = vpop.f32.mrb[0].mxu0
    %v1801 = vpop.f32.mrb[0].mxu0
    %v1802 = vadd.f32 %v1512, %v1801
    %v1803 = vpop.f32.mrb[0].mxu0
    %1804 = vmatprep.mubr.bf16.mxu0 0
    %1805 = vmatmul.mubr.bf16.gmra.mrb[0].mxu0 %v1590
    %v1806 = vpop.f32.mrb[0].mxu0
    %v1807 = vadd.f32 %v1512, %v1806
    %v1808 = vpop.f32.mrb[0].mxu0
    %v1809 = vpop.f32.mrb[0].mxu0
    %v1810 = vpop.f32.mrb[0].mxu0
    %1811 = vdwg.mxu0
    %v1812 = vmax.f32 %v1631, 0.0
    %v1813 = vmax.f32 %v1634, 0.0
    %v1814 = vmax.f32 %v1639, 0.0
    %v1815 = vmax.f32 %v1642, 0.0
    %v1816 = vmax.f32 %v1647, 0.0
    %v1817 = vmax.f32 %v1650, 0.0
    %v1818 = vmax.f32 %v1655, 0.0
    %v1819 = vmax.f32 %v1658, 0.0
    %v1820 = vmax.f32 %v1663, 0.0
    %v1821 = vmax.f32 %v1666, 0.0
    %v1822 = vmax.f32 %v1671, 0.0
    %v1823 = vmax.f32 %v1674, 0.0
    %v1824 = vmax.f32 %v1679, 0.0
    %v1825 = vmax.f32 %v1682, 0.0
    %v1826 = vmax.f32 %v1687, 0.0
    %v1827 = vmax.f32 %v1690, 0.0
    %v1828 = vmax.f32 %v1695, 0.0
    %v1829 = vmax.f32 %v1698, 0.0
    %v1830 = vmax.f32 %v1703, 0.0
    %v1831 = vmax.f32 %v1706, 0.0
    %v1832 = vmax.f32 %v1711, 0.0
    %v1833 = vmax.f32 %v1714, 0.0
    %v1834 = vmax.f32 %v1719, 0.0
    %v1835 = vmax.f32 %v1722, 0.0
    %v1836 = vmax.f32 %v1727, 0.0
    %v1837 = vmax.f32 %v1730, 0.0
    %v1838 = vmax.f32 %v1735, 0.0
    %v1839 = vmax.f32 %v1738, 0.0
    %v1840 = vmax.f32 %v1743, 0.0
    %v1841 = vmax.f32 %v1746, 0.0
    %v1842 = vmax.f32 %v1751, 0.0
    %v1843 = vmax.f32 %v1754, 0.0
    %v1844 = vmax.f32 %v1759, 0.0
    %v1845 = vmax.f32 %v1762, 0.0
    %v1846 = vmax.f32 %v1767, 0.0
    %v1847 = vmax.f32 %v1770, 0.0
    %v1848 = vmax.f32 %v1775, 0.0
    %v1849 = vmax.f32 %v1778, 0.0
    %v1850 = vmax.f32 %v1783, 0.0
    %v1851 = vmax.f32 %v1786, 0.0
    %v1852 = vmax.f32 %v1791, 0.0
    %v1853 = vmax.f32 %v1794, 0.0
    %v1854 = vmax.f32 %v1799, 0.0
    %v1855 = vmax.f32 %v1802, 0.0
    %v1856 = vmax.f32 %v1807, 0.0
    %v1857 = vld [vmem:[%s2 + $0x10] sm:$0xf]
    %v1858 = vld [vmem:[%s2 + $0x14] sm:$0xf]
    %v1859 = vld [vmem:[%s2 + $0x18] sm:$0xf]
    %v1860 = vld [vmem:[%s2 + $0x1c] sm:$0xf]
    %v1861 = vld [vmem:[%s2 + $0x20] sm:$0xf]
    %v1862 = vld [vmem:[%s2 + $0x24] sm:$0xf]
    %v1863 = vld [vmem:[%s2 + $0x28] sm:$0xf]
    %v1864 = vld [vmem:[%s2 + $0x2c] sm:$0xf]
    %v1865 = vld [vmem:[%s2 + $0x30] sm:$0xf]
    %v1866 = vld [vmem:[%s2 + $0x34] sm:$0xf]
    %v1867 = vld [vmem:[%s2 + $0x38] sm:$0xf]
    %v1868 = vld [vmem:[%s2 + $0x3c] sm:$0xf]
    %v1869 = vld [vmem:[%s3 + $0x1] sm:$0x1]
    %v1870 = vrot.slane %v1812, 7
    %v1871 = vrot.slane %v1813, 7
    %v1872 = vrot.slane %v1814, 7
    %v1873 = vrot.slane %v1815, 7
    %v1874 = vrot.slane %v1816, 7
    %v1875 = vrot.slane %v1817, 7
    %v1876 = vrot.slane %v1818, 7
    %v1877 = vrot.slane %v1819, 7
    %v1878 = vrot.slane %v1820, 7
    %v1879 = vrot.slane %v1821, 7
    %v1880 = vrot.slane %v1822, 7
    %v1881 = vrot.slane %v1823, 7
    %v1882 = vrot.slane %v1824, 7
    %v1883 = vrot.slane %v1825, 7
    %v1884 = vrot.slane %v1826, 7
    %v1885 = vrot.slane %v1827, 7
    %v1886 = vrot.slane %v1828, 7
    %v1887 = vrot.slane %v1829, 7
    %v1888 = vrot.slane %v1830, 7
    %v1889 = vrot.slane %v1831, 7
    %v1890 = vrot.slane %v1832, 7
    %v1891 = vrot.slane %v1833, 7
    %v1892 = vrot.slane %v1834, 7
    %v1893 = vrot.slane %v1835, 7
    %v1894 = vrot.slane %v1836, 7
    %v1895 = vrot.slane %v1837, 7
    %v1896 = vrot.slane %v1838, 7
    %v1897 = vrot.slane %v1839, 7
    %v1898 = vrot.slane %v1840, 7
    %v1899 = vrot.slane %v1841, 7
    %v1900 = vrot.slane %v1842, 7
    %v1901 = vrot.slane %v1843, 7
    %v1902 = vrot.slane %v1844, 7
    %v1903 = vrot.slane %v1845, 7
    %v1904 = vrot.slane %v1846, 7
    %v1905 = vrot.slane %v1847, 7
    %v1906 = vrot.slane %v1848, 7
    %v1907 = vrot.slane %v1849, 7
    %v1908 = vrot.slane %v1850, 7
    %v1909 = vrot.slane %v1851, 7
    %v1910 = vrot.slane %v1852, 7
    %v1911 = vrot.slane %v1853, 7
    %v1912 = vrot.slane %v1854, 7
    %v1913 = vrot.slane %v1855, 7
    %v1914 = vrot.slane %v1856, 7
    %v1915 = vsel %vm627, %v1913, %v1914
    %v1916 = vsel %vm627, %v1912, %v1913
    %v1917 = vsel %vm627, %v1911, %v1912
    %v1918 = vsel %vm627, %v1910, %v1911
    %v1919 = vsel %vm627, %v1909, %v1910
    %v1920 = vsel %vm627, %v1908, %v1909
    %v1921 = vsel %vm627, %v1907, %v1908
    %v1922 = vsel %vm627, %v1906, %v1907
    %v1923 = vsel %vm627, %v1905, %v1906
    %v1924 = vsel %vm627, %v1904, %v1905
    %v1925 = vsel %vm627, %v1903, %v1904
    %v1926 = vsel %vm627, %v1902, %v1903
    %v1927 = vsel %vm627, %v1901, %v1902
    %v1928 = vsel %vm627, %v1900, %v1901
    %v1929 = vsel %vm627, %v1899, %v1900
    %v1930 = vsel %vm627, %v1898, %v1899
    %v1931 = vsel %vm627, %v1897, %v1898
    %v1932 = vsel %vm627, %v1896, %v1897
    %v1933 = vsel %vm627, %v1895, %v1896
    %v1934 = vsel %vm627, %v1894, %v1895
    %v1935 = vsel %vm627, %v1893, %v1894
    %v1936 = vsel %vm627, %v1892, %v1893
    %v1937 = vsel %vm627, %v1891, %v1892
    %v1938 = vsel %vm627, %v1890, %v1891
    %v1939 = vsel %vm627, %v1889, %v1890
    %v1940 = vsel %vm627, %v1888, %v1889
    %v1941 = vsel %vm627, %v1887, %v1888
    %v1942 = vsel %vm627, %v1886, %v1887
    %v1943 = vsel %vm627, %v1885, %v1886
    %v1944 = vsel %vm627, %v1884, %v1885
    %v1945 = vsel %vm627, %v1883, %v1884
    %v1946 = vsel %vm627, %v1882, %v1883
    %v1947 = vsel %vm627, %v1881, %v1882
    %v1948 = vsel %vm627, %v1880, %v1881
    %v1949 = vsel %vm627, %v1879, %v1880
    %v1950 = vsel %vm627, %v1878, %v1879
    %v1951 = vsel %vm627, %v1877, %v1878
    %v1952 = vsel %vm627, %v1876, %v1877
    %v1953 = vsel %vm627, %v1875, %v1876
    %v1954 = vsel %vm627, %v1874, %v1875
    %v1955 = vsel %vm627, %v1873, %v1874
    %v1956 = vsel %vm627, %v1872, %v1873
    %v1957 = vsel %vm627, %v1871, %v1872
    %v1958 = vsel %vm627, %v1870, %v1871
    %v1959 = vsel %vm627, %v1914, %v1870
    %v1960 = vsel %vm718, 0.0, %v1959
    %v1961 = vsel %vm719, 0.0, %v1958
    %v1962 = vsel %vm720, 0.0, %v1957
    %v1963 = vsel %vm721, 0.0, %v1956
    %v1964 = vsel %vm722, 0.0, %v1955
    %v1965 = vsel %vm723, 0.0, %v1954
    %v1966 = vsel %vm724, 0.0, %v1953
    %v1967 = vsel %vm725, 0.0, %v1952
    %v1968 = vsel %vm726, 0.0, %v1951
    %v1969 = vsel %vm727, 0.0, %v1950
    %v1970 = vsel %vm728, 0.0, %v1949
    %v1971 = vsel %vm729, 0.0, %v1948
    %v1972 = vsel %vm730, 0.0, %v1947
    %v1973 = vsel %vm731, 0.0, %v1946
    %v1974 = vsel %vm732, 0.0, %v1945
    %v1975 = vsel %vm733, 0.0, %v1944
    %v1976 = vsel %vm734, 0.0, %v1943
    %v1977 = vsel %vm735, 0.0, %v1942
    %v1978 = vsel %vm736, 0.0, %v1941
    %v1979 = vsel %vm737, 0.0, %v1940
    %v1980 = vsel %vm738, 0.0, %v1939
    %v1981 = vsel %vm739, 0.0, %v1938
    %v1982 = vsel %vm740, 0.0, %v1937
    %v1983 = vsel %vm741, 0.0, %v1936
    %v1984 = vsel %vm742, 0.0, %v1935
    %v1985 = vsel %vm743, 0.0, %v1934
    %v1986 = vsel %vm744, 0.0, %v1933
    %v1987 = vsel %vm745, 0.0, %v1932
    %v1988 = vsel %vm746, 0.0, %v1931
    %v1989 = vsel %vm747, 0.0, %v1930
    %v1990 = vsel %vm748, 0.0, %v1929
    %v1991 = vsel %vm749, 0.0, %v1928
    %v1992 = vsel %vm750, 0.0, %v1927
    %v1993 = vsel %vm751, 0.0, %v1926
    %v1994 = vsel %vm752, 0.0, %v1925
    %v1995 = vsel %vm753, 0.0, %v1924
    %v1996 = vsel %vm754, 0.0, %v1923
    %v1997 = vsel %vm755, 0.0, %v1922
    %v1998 = vsel %vm756, 0.0, %v1921
    %v1999 = vsel %vm757, 0.0, %v1920
    %v2000 = vsel %vm758, 0.0, %v1919
    %v2001 = vsel %vm759, 0.0, %v1918
    %v2002 = vsel %vm760, 0.0, %v1917
    %v2003 = vsel %vm761, 0.0, %v1916
    %v2004 = vsel %vm762, 0.0, %v1915
    %v2005 = vrot.slane %v1812, 1
    %v2006 = vrot.slane %v1813, 1
    %v2007 = vrot.slane %v1814, 1
    %v2008 = vrot.slane %v1815, 1
    %v2009 = vrot.slane %v1816, 1
    %v2010 = vrot.slane %v1817, 1
    %v2011 = vrot.slane %v1818, 1
    %v2012 = vrot.slane %v1819, 1
    %v2013 = vrot.slane %v1820, 1
    %v2014 = vrot.slane %v1821, 1
    %v2015 = vrot.slane %v1822, 1
    %v2016 = vrot.slane %v1823, 1
    %v2017 = vrot.slane %v1824, 1
    %v2018 = vrot.slane %v1825, 1
    %v2019 = vrot.slane %v1826, 1
    %v2020 = vrot.slane %v1827, 1
    %v2021 = vrot.slane %v1828, 1
    %v2022 = vrot.slane %v1829, 1
    %v2023 = vrot.slane %v1830, 1
    %v2024 = vrot.slane %v1831, 1
    %v2025 = vrot.slane %v1832, 1
    %v2026 = vrot.slane %v1833, 1
    %v2027 = vrot.slane %v1834, 1
    %v2028 = vrot.slane %v1835, 1
    %v2029 = vrot.slane %v1836, 1
    %v2030 = vrot.slane %v1837, 1
    %v2031 = vrot.slane %v1838, 1
    %v2032 = vrot.slane %v1839, 1
    %v2033 = vrot.slane %v1840, 1
    %v2034 = vrot.slane %v1841, 1
    %v2035 = vrot.slane %v1842, 1
    %v2036 = vrot.slane %v1843, 1
    %v2037 = vrot.slane %v1844, 1
    %v2038 = vrot.slane %v1845, 1
    %v2039 = vrot.slane %v1846, 1
    %v2040 = vrot.slane %v1847, 1
    %v2041 = vrot.slane %v1848, 1
    %v2042 = vrot.slane %v1849, 1
    %v2043 = vrot.slane %v1850, 1
    %v2044 = vrot.slane %v1851, 1
    %v2045 = vrot.slane %v1852, 1
    %v2046 = vrot.slane %v1853, 1
    %v2047 = vrot.slane %v1854, 1
    %v2048 = vrot.slane %v1855, 1
    %v2049 = vrot.slane %v1856, 1
    %v2050 = vsel %vm853, %v2048, %v2049
    %v2051 = vsel %vm853, %v2047, %v2048
    %v2052 = vsel %vm853, %v2046, %v2047
    %v2053 = vsel %vm853, %v2045, %v2046
    %v2054 = vsel %vm853, %v2044, %v2045
    %v2055 = vsel %vm853, %v2043, %v2044
    %v2056 = vsel %vm853, %v2042, %v2043
    %v2057 = vsel %vm853, %v2041, %v2042
    %v2058 = vsel %vm853, %v2040, %v2041
    %v2059 = vsel %vm853, %v2039, %v2040
    %v2060 = vsel %vm853, %v2038, %v2039
    %v2061 = vsel %vm853, %v2037, %v2038
    %v2062 = vsel %vm853, %v2036, %v2037
    %v2063 = vsel %vm853, %v2035, %v2036
    %v2064 = vsel %vm853, %v2034, %v2035
    %v2065 = vsel %vm853, %v2033, %v2034
    %v2066 = vsel %vm853, %v2032, %v2033
    %v2067 = vsel %vm853, %v2031, %v2032
    %v2068 = vsel %vm853, %v2030, %v2031
    %v2069 = vsel %vm853, %v2029, %v2030
    %v2070 = vsel %vm853, %v2028, %v2029
    %v2071 = vsel %vm853, %v2027, %v2028
    %v2072 = vsel %vm853, %v2026, %v2027
    %v2073 = vsel %vm853, %v2025, %v2026
    %v2074 = vsel %vm853, %v2024, %v2025
    %v2075 = vsel %vm853, %v2023, %v2024
    %v2076 = vsel %vm853, %v2022, %v2023
    %v2077 = vsel %vm853, %v2021, %v2022
    %v2078 = vsel %vm853, %v2020, %v2021
    %v2079 = vsel %vm853, %v2019, %v2020
    %v2080 = vsel %vm853, %v2018, %v2019
    %v2081 = vsel %vm853, %v2017, %v2018
    %v2082 = vsel %vm853, %v2016, %v2017
    %v2083 = vsel %vm853, %v2015, %v2016
    %v2084 = vsel %vm853, %v2014, %v2015
    %v2085 = vsel %vm853, %v2013, %v2014
    %v2086 = vsel %vm853, %v2012, %v2013
    %v2087 = vsel %vm853, %v2011, %v2012
    %v2088 = vsel %vm853, %v2010, %v2011
    %v2089 = vsel %vm853, %v2009, %v2010
    %v2090 = vsel %vm853, %v2008, %v2009
    %v2091 = vsel %vm853, %v2007, %v2008
    %v2092 = vsel %vm853, %v2006, %v2007
    %v2093 = vsel %vm853, %v2005, %v2006
    %v2094 = vsel %vm853, %v2049, %v2005
    %v2095 = vsel %vm944, 0.0, %v2093
    %v2096 = vsel %vm945, 0.0, %v2092
    %v2097 = vsel %vm946, 0.0, %v2091
    %v2098 = vsel %vm947, 0.0, %v2090
    %v2099 = vsel %vm948, 0.0, %v2089
    %v2100 = vsel %vm949, 0.0, %v2088
    %v2101 = vsel %vm950, 0.0, %v2087
    %v2102 = vsel %vm951, 0.0, %v2086
    %v2103 = vsel %vm952, 0.0, %v2085
    %v2104 = vsel %vm953, 0.0, %v2084
    %v2105 = vsel %vm954, 0.0, %v2083
    %v2106 = vsel %vm955, 0.0, %v2082
    %v2107 = vsel %vm956, 0.0, %v2081
    %v2108 = vsel %vm957, 0.0, %v2080
    %v2109 = vsel %vm958, 0.0, %v2079
    %v2110 = vsel %vm959, 0.0, %v2078
    %v2111 = vsel %vm960, 0.0, %v2077
    %v2112 = vsel %vm961, 0.0, %v2076
    %v2113 = vsel %vm962, 0.0, %v2075
    %v2114 = vsel %vm963, 0.0, %v2074
    %v2115 = vsel %vm964, 0.0, %v2073
    %v2116 = vsel %vm965, 0.0, %v2072
    %v2117 = vsel %vm966, 0.0, %v2071
    %v2118 = vsel %vm967, 0.0, %v2070
    %v2119 = vsel %vm968, 0.0, %v2069
    %v2120 = vsel %vm969, 0.0, %v2068
    %v2121 = vsel %vm970, 0.0, %v2067
    %v2122 = vsel %vm971, 0.0, %v2066
    %v2123 = vsel %vm972, 0.0, %v2065
    %v2124 = vsel %vm973, 0.0, %v2064
    %v2125 = vsel %vm974, 0.0, %v2063
    %v2126 = vsel %vm975, 0.0, %v2062
    %v2127 = vsel %vm976, 0.0, %v2061
    %v2128 = vsel %vm977, 0.0, %v2060
    %v2129 = vsel %vm978, 0.0, %v2059
    %v2130 = vsel %vm979, 0.0, %v2058
    %v2131 = vsel %vm980, 0.0, %v2057
    %v2132 = vsel %vm981, 0.0, %v2056
    %v2133 = vsel %vm982, 0.0, %v2055
    %v2134 = vsel %vm983, 0.0, %v2054
    %v2135 = vsel %vm984, 0.0, %v2053
    %v2136 = vsel %vm985, 0.0, %v2052
    %v2137 = vsel %vm986, 0.0, %v2051
    %v2138 = vsel %vm987, 0.0, %v2050
    %v2139 = vsel %vm988, 0.0, %v2094
    %2185 = vrot.lane.b32.xlu0 %v1812, 32
    %v2186 = vpop.permute.xlu0 %2185
    %2187 = vrot.lane.b32.xlu0 %v1813, 32
    %v2188 = vpop.permute.xlu0 %2187
    %2189 = vrot.lane.b32.xlu0 %v1814, 32
    %v2190 = vpop.permute.xlu0 %2189
    %2191 = vrot.lane.b32.xlu0 %v1815, 32
    %v2192 = vpop.permute.xlu0 %2191
    %2193 = vrot.lane.b32.xlu0 %v1816, 32
    %v2194 = vpop.permute.xlu0 %2193
    %2195 = vrot.lane.b32.xlu0 %v1817, 32
    %v2196 = vpop.permute.xlu0 %2195
    %2197 = vrot.lane.b32.xlu0 %v1818, 32
    %v2198 = vpop.permute.xlu0 %2197
    %2199 = vrot.lane.b32.xlu0 %v1819, 32
    %v2200 = vpop.permute.xlu0 %2199
    %2201 = vrot.lane.b32.xlu0 %v1820, 32
    %v2202 = vpop.permute.xlu0 %2201
    %2203 = vrot.lane.b32.xlu0 %v1821, 32
    %v2204 = vpop.permute.xlu0 %2203
    %2205 = vrot.lane.b32.xlu0 %v1822, 32
    %v2206 = vpop.permute.xlu0 %2205
    %2207 = vrot.lane.b32.xlu0 %v1823, 32
    %v2208 = vpop.permute.xlu0 %2207
    %2209 = vrot.lane.b32.xlu0 %v1824, 32
    %v2210 = vpop.permute.xlu0 %2209
    %2211 = vrot.lane.b32.xlu0 %v1825, 32
    %v2212 = vpop.permute.xlu0 %2211
    %2213 = vrot.lane.b32.xlu0 %v1826, 32
    %v2214 = vpop.permute.xlu0 %2213
    %2215 = vrot.lane.b32.xlu0 %v1827, 32
    %v2216 = vpop.permute.xlu0 %2215
    %2217 = vrot.lane.b32.xlu0 %v1828, 32
    %v2218 = vpop.permute.xlu0 %2217
    %2219 = vrot.lane.b32.xlu0 %v1829, 32
    %v2220 = vpop.permute.xlu0 %2219
    %2221 = vrot.lane.b32.xlu0 %v1830, 32
    %v2222 = vpop.permute.xlu0 %2221
    %2223 = vrot.lane.b32.xlu0 %v1831, 32
    %v2224 = vpop.permute.xlu0 %2223
    %2225 = vrot.lane.b32.xlu0 %v1832, 32
    %v2226 = vpop.permute.xlu0 %2225
    %2227 = vrot.lane.b32.xlu0 %v1833, 32
    %v2228 = vpop.permute.xlu0 %2227
    %2229 = vrot.lane.b32.xlu0 %v1834, 32
    %v2230 = vpop.permute.xlu0 %2229
    %2231 = vrot.lane.b32.xlu0 %v1835, 32
    %v2232 = vpop.permute.xlu0 %2231
    %2233 = vrot.lane.b32.xlu0 %v1836, 32
    %v2234 = vpop.permute.xlu0 %2233
    %2235 = vrot.lane.b32.xlu0 %v1837, 32
    %v2236 = vpop.permute.xlu0 %2235
    %2237 = vrot.lane.b32.xlu0 %v1838, 32
    %v2238 = vpop.permute.xlu0 %2237
    %2239 = vrot.lane.b32.xlu0 %v1839, 32
    %v2240 = vpop.permute.xlu0 %2239
    %2241 = vrot.lane.b32.xlu0 %v1840, 32
    %v2242 = vpop.permute.xlu0 %2241
    %2243 = vrot.lane.b32.xlu0 %v1841, 32
    %v2244 = vpop.permute.xlu0 %2243
    %2245 = vrot.lane.b32.xlu0 %v1842, 32
    %v2246 = vpop.permute.xlu0 %2245
    %2247 = vrot.lane.b32.xlu0 %v1843, 32
    %v2248 = vpop.permute.xlu0 %2247
    %2249 = vrot.lane.b32.xlu0 %v1844, 32
    %v2250 = vpop.permute.xlu0 %2249
    %2251 = vrot.lane.b32.xlu0 %v1845, 32
    %v2252 = vpop.permute.xlu0 %2251
    %2253 = vrot.lane.b32.xlu0 %v1846, 32
    %v2254 = vpop.permute.xlu0 %2253
    %2255 = vrot.lane.b32.xlu0 %v1847, 32
    %v2256 = vpop.permute.xlu0 %2255
    %2257 = vrot.lane.b32.xlu0 %v1848, 32
    %v2258 = vpop.permute.xlu0 %2257
    %2259 = vrot.lane.b32.xlu0 %v1849, 32
    %v2260 = vpop.permute.xlu0 %2259
    %2261 = vrot.lane.b32.xlu0 %v1850, 32
    %v2262 = vpop.permute.xlu0 %2261
    %2263 = vrot.lane.b32.xlu0 %v1851, 32
    %v2264 = vpop.permute.xlu0 %2263
    %2265 = vrot.lane.b32.xlu0 %v1852, 32
    %v2266 = vpop.permute.xlu0 %2265
    %2267 = vrot.lane.b32.xlu0 %v1853, 32
    %v2268 = vpop.permute.xlu0 %2267
    %2269 = vrot.lane.b32.xlu0 %v1854, 32
    %v2270 = vpop.permute.xlu0 %2269
    %2271 = vrot.lane.b32.xlu0 %v1855, 32
    %v2272 = vpop.permute.xlu0 %2271
    %2273 = vrot.lane.b32.xlu0 %v1856, 32
    %v2274 = vpop.permute.xlu0 %2273
    %2365 = vrot.lane.b32.xlu0 %v2095, 64
    %v2366 = vpop.permute.xlu0 %2365
    %2367 = vrot.lane.b32.xlu0 %v2096, 64
    %v2368 = vpop.permute.xlu0 %2367
    %2369 = vrot.lane.b32.xlu0 %v2097, 64
    %v2370 = vpop.permute.xlu0 %2369
    %2371 = vrot.lane.b32.xlu0 %v2098, 64
    %v2372 = vpop.permute.xlu0 %2371
    %2373 = vrot.lane.b32.xlu0 %v2099, 64
    %v2374 = vpop.permute.xlu0 %2373
    %2375 = vrot.lane.b32.xlu0 %v2100, 64
    %v2376 = vpop.permute.xlu0 %2375
    %2377 = vrot.lane.b32.xlu0 %v2101, 64
    %v2378 = vpop.permute.xlu0 %2377
    %2379 = vrot.lane.b32.xlu0 %v2102, 64
    %v2380 = vpop.permute.xlu0 %2379
    %2381 = vrot.lane.b32.xlu0 %v2103, 64
    %v2382 = vpop.permute.xlu0 %2381
    %2383 = vrot.lane.b32.xlu0 %v2104, 64
    %v2384 = vpop.permute.xlu0 %2383
    %2385 = vrot.lane.b32.xlu0 %v2105, 64
    %v2386 = vpop.permute.xlu0 %2385
    %2387 = vrot.lane.b32.xlu0 %v2106, 64
    %v2388 = vpop.permute.xlu0 %2387
    %2389 = vrot.lane.b32.xlu0 %v2107, 64
    %v2390 = vpop.permute.xlu0 %2389
    %2391 = vrot.lane.b32.xlu0 %v2108, 64
    %v2392 = vpop.permute.xlu0 %2391
    %2393 = vrot.lane.b32.xlu0 %v2109, 64
    %v2394 = vpop.permute.xlu0 %2393
    %2395 = vrot.lane.b32.xlu0 %v2110, 64
    %v2396 = vpop.permute.xlu0 %2395
    %2397 = vrot.lane.b32.xlu0 %v2111, 64
    %v2398 = vpop.permute.xlu0 %2397
    %2399 = vrot.lane.b32.xlu0 %v2112, 64
    %v2400 = vpop.permute.xlu0 %2399
    %2401 = vrot.lane.b32.xlu0 %v2113, 64
    %v2402 = vpop.permute.xlu0 %2401
    %2403 = vrot.lane.b32.xlu0 %v2114, 64
    %v2404 = vpop.permute.xlu0 %2403
    %2405 = vrot.lane.b32.xlu0 %v2115, 64
    %v2406 = vpop.permute.xlu0 %2405
    %2407 = vrot.lane.b32.xlu0 %v2116, 64
    %v2408 = vpop.permute.xlu0 %2407
    %2409 = vrot.lane.b32.xlu0 %v2117, 64
    %v2410 = vpop.permute.xlu0 %2409
    %2411 = vrot.lane.b32.xlu0 %v2118, 64
    %v2412 = vpop.permute.xlu0 %2411
    %2413 = vrot.lane.b32.xlu0 %v2119, 64
    %v2414 = vpop.permute.xlu0 %2413
    %2415 = vrot.lane.b32.xlu0 %v2120, 64
    %v2416 = vpop.permute.xlu0 %2415
    %2417 = vrot.lane.b32.xlu0 %v2121, 64
    %v2418 = vpop.permute.xlu0 %2417
    %2419 = vrot.lane.b32.xlu0 %v2122, 64
    %v2420 = vpop.permute.xlu0 %2419
    %2421 = vrot.lane.b32.xlu0 %v2123, 64
    %v2422 = vpop.permute.xlu0 %2421
    %2423 = vrot.lane.b32.xlu0 %v2124, 64
    %v2424 = vpop.permute.xlu0 %2423
    %2425 = vrot.lane.b32.xlu0 %v2125, 64
    %v2426 = vpop.permute.xlu0 %2425
    %2427 = vrot.lane.b32.xlu0 %v2126, 64
    %v2428 = vpop.permute.xlu0 %2427
    %2429 = vrot.lane.b32.xlu0 %v2127, 64
    %v2430 = vpop.permute.xlu0 %2429
    %2431 = vrot.lane.b32.xlu0 %v2128, 64
    %v2432 = vpop.permute.xlu0 %2431
    %2433 = vrot.lane.b32.xlu0 %v2129, 64
    %v2434 = vpop.permute.xlu0 %2433
    %2435 = vrot.lane.b32.xlu0 %v2130, 64
    %v2436 = vpop.permute.xlu0 %2435
    %2437 = vrot.lane.b32.xlu0 %v2131, 64
    %v2438 = vpop.permute.xlu0 %2437
    %2439 = vrot.lane.b32.xlu0 %v2132, 64
    %v2440 = vpop.permute.xlu0 %2439
    %2441 = vrot.lane.b32.xlu0 %v2133, 64
    %v2442 = vpop.permute.xlu0 %2441
    %2443 = vrot.lane.b32.xlu0 %v2134, 64
    %v2444 = vpop.permute.xlu0 %2443
    %2445 = vrot.lane.b32.xlu0 %v2135, 64
    %v2446 = vpop.permute.xlu0 %2445
    %2447 = vrot.lane.b32.xlu0 %v2136, 64
    %v2448 = vpop.permute.xlu0 %2447
    %2449 = vrot.lane.b32.xlu0 %v2137, 64
    %v2450 = vpop.permute.xlu0 %2449
    %2451 = vrot.lane.b32.xlu0 %v2138, 64
    %v2452 = vpop.permute.xlu0 %2451
    %2453 = vrot.lane.b32.xlu0 %v2139, 64
    %v2454 = vpop.permute.xlu0 %2453
    %vm2500 = vcmask 261120
    %v2501 = vsel %vm2500, %v1960, %v2186
    %v2502 = vsel %vm2500, %v1961, %v2188
    %v2503 = vsel %vm2500, %v1962, %v2190
    %v2504 = vsel %vm2500, %v1963, %v2192
    %v2505 = vsel %vm2500, %v1964, %v2194
    %v2506 = vsel %vm2500, %v1965, %v2196
    %v2507 = vsel %vm2500, %v1966, %v2198
    %v2508 = vsel %vm2500, %v1967, %v2200
    %v2509 = vsel %vm2500, %v1968, %v2202
    %v2510 = vsel %vm2500, %v1969, %v2204
    %v2511 = vsel %vm2500, %v1970, %v2206
    %v2512 = vsel %vm2500, %v1971, %v2208
    %v2513 = vsel %vm2500, %v1972, %v2210
    %v2514 = vsel %vm2500, %v1973, %v2212
    %v2515 = vsel %vm2500, %v1974, %v2214
    %v2516 = vsel %vm2500, %v1975, %v2216
    %v2517 = vsel %vm2500, %v1976, %v2218
    %v2518 = vsel %vm2500, %v1977, %v2220
    %v2519 = vsel %vm2500, %v1978, %v2222
    %v2520 = vsel %vm2500, %v1979, %v2224
    %v2521 = vsel %vm2500, %v1980, %v2226
    %v2522 = vsel %vm2500, %v1981, %v2228
    %v2523 = vsel %vm2500, %v1982, %v2230
    %v2524 = vsel %vm2500, %v1983, %v2232
    %v2525 = vsel %vm2500, %v1984, %v2234
    %v2526 = vsel %vm2500, %v1985, %v2236
    %v2527 = vsel %vm2500, %v1986, %v2238
    %v2528 = vsel %vm2500, %v1987, %v2240
    %v2529 = vsel %vm2500, %v1988, %v2242
    %v2530 = vsel %vm2500, %v1989, %v2244
    %v2531 = vsel %vm2500, %v1990, %v2246
    %v2532 = vsel %vm2500, %v1991, %v2248
    %v2533 = vsel %vm2500, %v1992, %v2250
    %v2534 = vsel %vm2500, %v1993, %v2252
    %v2535 = vsel %vm2500, %v1994, %v2254
    %v2536 = vsel %vm2500, %v1995, %v2256
    %v2537 = vsel %vm2500, %v1996, %v2258
    %v2538 = vsel %vm2500, %v1997, %v2260
    %v2539 = vsel %vm2500, %v1998, %v2262
    %v2540 = vsel %vm2500, %v1999, %v2264
    %v2541 = vsel %vm2500, %v2000, %v2266
    %v2542 = vsel %vm2500, %v2001, %v2268
    %v2543 = vsel %vm2500, %v2002, %v2270
    %v2544 = vsel %vm2500, %v2003, %v2272
    %v2545 = vsel %vm2500, %v2004, %v2274
    %vm2546 = vcmask 523264
    %v2547 = vsel %vm2546, %v2501, %v2366
    %v2548 = vsel %vm2546, %v2502, %v2368
    %v2549 = vsel %vm2546, %v2503, %v2370
    %v2550 = vsel %vm2546, %v2504, %v2372
    %v2551 = vsel %vm2546, %v2505, %v2374
    %v2552 = vsel %vm2546, %v2506, %v2376
    %v2553 = vsel %vm2546, %v2507, %v2378
    %v2554 = vsel %vm2546, %v2508, %v2380
    %v2555 = vsel %vm2546, %v2509, %v2382
    %v2556 = vsel %vm2546, %v2510, %v2384
    %v2557 = vsel %vm2546, %v2511, %v2386
    %v2558 = vsel %vm2546, %v2512, %v2388
    %v2559 = vsel %vm2546, %v2513, %v2390
    %v2560 = vsel %vm2546, %v2514, %v2392
    %v2561 = vsel %vm2546, %v2515, %v2394
    %v2562 = vsel %vm2546, %v2516, %v2396
    %v2563 = vsel %vm2546, %v2517, %v2398
    %v2564 = vsel %vm2546, %v2518, %v2400
    %v2565 = vsel %vm2546, %v2519, %v2402
    %v2566 = vsel %vm2546, %v2520, %v2404
    %v2567 = vsel %vm2546, %v2521, %v2406
    %v2568 = vsel %vm2546, %v2522, %v2408
    %v2569 = vsel %vm2546, %v2523, %v2410
    %v2570 = vsel %vm2546, %v2524, %v2412
    %v2571 = vsel %vm2546, %v2525, %v2414
    %v2572 = vsel %vm2546, %v2526, %v2416
    %v2573 = vsel %vm2546, %v2527, %v2418
    %v2574 = vsel %vm2546, %v2528, %v2420
    %v2575 = vsel %vm2546, %v2529, %v2422
    %v2576 = vsel %vm2546, %v2530, %v2424
    %v2577 = vsel %vm2546, %v2531, %v2426
    %v2578 = vsel %vm2546, %v2532, %v2428
    %v2579 = vsel %vm2546, %v2533, %v2430
    %v2580 = vsel %vm2546, %v2534, %v2432
    %v2581 = vsel %vm2546, %v2535, %v2434
    %v2582 = vsel %vm2546, %v2536, %v2436
    %v2583 = vsel %vm2546, %v2537, %v2438
    %v2584 = vsel %vm2546, %v2538, %v2440
    %v2585 = vsel %vm2546, %v2539, %v2442
    %v2586 = vsel %vm2546, %v2540, %v2444
    %v2587 = vsel %vm2546, %v2541, %v2446
    %v2588 = vsel %vm2546, %v2542, %v2448
    %v2589 = vsel %vm2546, %v2543, %v2450
    %v2590 = vsel %vm2546, %v2544, %v2452
    %v2591 = vsel %vm2546, %v2545, %v2454
    %v2592 = vpack.c.bf16 %v2548, %v2547
    %v2593 = vpack.c.bf16 %v2550, %v2549
    %v2594 = vpack.c.bf16 %v2552, %v2551
    %v2595 = vpack.c.bf16 %v2554, %v2553
    %v2596 = vpack.c.bf16 %v2556, %v2555
    %v2597 = vpack.c.bf16 %v2558, %v2557
    %v2598 = vpack.c.bf16 %v2560, %v2559
    %v2599 = vpack.c.bf16 %v2562, %v2561
    %v2600 = vpack.c.bf16 %v2564, %v2563
    %v2601 = vpack.c.bf16 %v2566, %v2565
    %v2602 = vpack.c.bf16 %v2568, %v2567
    %v2603 = vpack.c.bf16 %v2570, %v2569
    %v2604 = vpack.c.bf16 %v2572, %v2571
    %v2605 = vpack.c.bf16 %v2574, %v2573
    %v2606 = vpack.c.bf16 %v2576, %v2575
    %v2607 = vpack.c.bf16 %v2578, %v2577
    %v2608 = vpack.c.bf16 %v2580, %v2579
    %v2609 = vpack.c.bf16 %v2582, %v2581
    %v2610 = vpack.c.bf16 %v2584, %v2583
    %v2611 = vpack.c.bf16 %v2586, %v2585
    %v2612 = vpack.c.bf16 %v2588, %v2587
    %v2613 = vpack.c.bf16 %v2590, %v2589
    %v2614 = vpack.c.bf16 %v2591, %v2591
    %v2615 = vlaneseq
    %v2616 = vshrl.u32 %v2615, 7
    %v2617 = vsub.s32 0, %v2616
    %v2618 = vrot.slane %v1869, %v2617
    %v2631 = vunpack.c.l.b16 %v1857
    %v2632 = vunpack.c.l.b16 %v1858
    %v2633 = vunpack.c.l.b16 %v1859
    %v2634 = vunpack.c.l.b16 %v1860
    %v2635 = vunpack.c.l.b16 %v1861
    %v2636 = vunpack.c.l.b16 %v1862
    %v2637 = vunpack.c.l.b16 %v1863
    %v2638 = vunpack.c.l.b16 %v1864
    %v2639 = vunpack.c.l.b16 %v1865
    %v2640 = vunpack.c.l.b16 %v1866
    %v2641 = vunpack.c.l.b16 %v1867
    %v2642 = vunpack.c.l.b16 %v1868
    %v2643 = vpack.c.b16 %v2632, %v2631
    %v2644 = vpack.c.b16 %v2634, %v2633
    %v2645 = vpack.c.b16 %v2636, %v2635
    %v2646 = vpack.c.b16 %v2638, %v2637
    %v2647 = vpack.c.b16 %v2640, %v2639
    %v2648 = vpack.c.b16 %v2642, %v2641
    %vm2655 = vcmask 785408
    %v2657 = vsel %vm2655, %v2592, 0
    %v2660 = vsel %vm2655, %v2593, 0
    %v2663 = vsel %vm2655, %v2594, 0
    %v2666 = vsel %vm2655, %v2595, 0
    %v2669 = vsel %vm2655, %v2596, 0
    %v2672 = vsel %vm2655, %v2597, 0
    %v2675 = vsel %vm2655, %v2598, 0
    %v2678 = vsel %vm2655, %v2599, 0
    %v2681 = vsel %vm2655, %v2600, 0
    %v2684 = vsel %vm2655, %v2601, 0
    %v2687 = vsel %vm2655, %v2602, 0
    %v2690 = vsel %vm2655, %v2603, 0
    %v2693 = vsel %vm2655, %v2604, 0
    %v2696 = vsel %vm2655, %v2605, 0
    %v2699 = vsel %vm2655, %v2606, 0
    %v2702 = vsel %vm2655, %v2607, 0
    %v2705 = vsel %vm2655, %v2608, 0
    %v2708 = vsel %vm2655, %v2609, 0
    %v2711 = vsel %vm2655, %v2610, 0
    %v2714 = vsel %vm2655, %v2611, 0
    %v2717 = vsel %vm2655, %v2612, 0
    %v2720 = vsel %vm2655, %v2613, 0
    %v2723 = vsel %vm2655, %v2614, 0
    %2725 = vmatprep.subr.bf16.mxu0 0
    %2726 = vmatpush1.bf16.msra.mxu0 %v2643
    %2727 = vmatprep.subr.bf16.mxu0 0
    %2728 = vmatpush1.bf16.msra.mxu0 %v2644
    %2729 = vmatprep.subr.bf16.mxu0 0
    %2730 = vmatpush1.bf16.msra.mxu0 %v2645
    %2731 = vmatprep.subr.bf16.mxu0 0
    %2732 = vmatpush1.bf16.msra.mxu0 %v2646
    %2733 = vmatprep.subr.bf16.mxu0 0
    %2734 = vmatpush1.bf16.msra.mxu0 %v2647
    %2735 = vmatprep.subr.bf16.mxu0 0
    %2736 = vmatpush1.bf16.msra.mxu0 %v2648
    %2737 = vmatprep.subr.bf16.mxu0 0
    %2738 = vmatpush1.bf16.msra.mxu0 0
    %2739 = vmatprep.subr.bf16.mxu0 0
    %2740 = vmatpush1.bf16.msra.mxu0 0
    %2741 = vmatprep.subr.bf16.mxu0 0
    %2742 = vmatpush1.bf16.msra.mxu0 0
    %2743 = vmatprep.subr.bf16.mxu0 0
    %2744 = vmatpush1.bf16.msra.mxu0 0
    %2745 = vmatprep.subr.bf16.mxu0 0
    %2746 = vmatpush1.bf16.msra.mxu0 0
    %2747 = vmatprep.subr.bf16.mxu0 0
    %2748 = vmatpush1.bf16.msra.mxu0 0
    %2749 = vmatprep.subr.bf16.mxu0 0
    %2750 = vmatpush1.bf16.msra.mxu0 0
    %2751 = vmatprep.subr.bf16.mxu0 0
    %2752 = vmatpush1.bf16.msra.mxu0 0
    %2753 = vmatprep.subr.bf16.mxu0 0
    %2754 = vmatpush1.bf16.msra.mxu0 0
    %2755 = vmatprep.subr.bf16.mxu0 0
    %2756 = vmatpush1.bf16.msra.mxu0 0
    %2757 = vmatprep.mubr.bf16.mxu0 0
    %2758 = vmatmul.mubr.bf16.gmra.mrb[0].mxu0 %v2657
    %v2759 = vpop.f32.mrb[0].mxu0
    %v2760 = vadd.f32 %v2618, %v2759
    %v2761 = vpop.f32.mrb[0].mxu0
    %v2762 = vpop.f32.mrb[0].mxu0
    %v2763 = vadd.f32 %v2618, %v2762
    %v2764 = vpop.f32.mrb[0].mxu0
    %2765 = vmatprep.mubr.bf16.mxu0 0
    %2766 = vmatmul.mubr.bf16.gmra.mrb[0].mxu0 %v2660
    %v2767 = vpop.f32.mrb[0].mxu0
    %v2768 = vadd.f32 %v2618, %v2767
    %v2769 = vpop.f32.mrb[0].mxu0
    %v2770 = vpop.f32.mrb[0].mxu0
    %v2771 = vadd.f32 %v2618, %v2770
    %v2772 = vpop.f32.mrb[0].mxu0
    %2773 = vmatprep.mubr.bf16.mxu0 0
    %2774 = vmatmul.mubr.bf16.gmra.mrb[0].mxu0 %v2663
    %v2775 = vpop.f32.mrb[0].mxu0
    %v2776 = vadd.f32 %v2618, %v2775
    %v2777 = vpop.f32.mrb[0].mxu0
    %v2778 = vpop.f32.mrb[0].mxu0
    %v2779 = vadd.f32 %v2618, %v2778
    %v2780 = vpop.f32.mrb[0].mxu0
    %2781 = vmatprep.mubr.bf16.mxu0 0
    %2782 = vmatmul.mubr.bf16.gmra.mrb[0].mxu0 %v2666
    %v2783 = vpop.f32.mrb[0].mxu0
    %v2784 = vadd.f32 %v2618, %v2783
    %v2785 = vpop.f32.mrb[0].mxu0
    %v2786 = vpop.f32.mrb[0].mxu0
    %v2787 = vadd.f32 %v2618, %v2786
    %v2788 = vpop.f32.mrb[0].mxu0
    %2789 = vmatprep.mubr.bf16.mxu0 0
    %2790 = vmatmul.mubr.bf16.gmra.mrb[0].mxu0 %v2669
    %v2791 = vpop.f32.mrb[0].mxu0
    %v2792 = vadd.f32 %v2618, %v2791
    %v2793 = vpop.f32.mrb[0].mxu0
    %v2794 = vpop.f32.mrb[0].mxu0
    %v2795 = vadd.f32 %v2618, %v2794
    %v2796 = vpop.f32.mrb[0].mxu0
    %2797 = vmatprep.mubr.bf16.mxu0 0
    %2798 = vmatmul.mubr.bf16.gmra.mrb[0].mxu0 %v2672
    %v2799 = vpop.f32.mrb[0].mxu0
    %v2800 = vadd.f32 %v2618, %v2799
    %v2801 = vpop.f32.mrb[0].mxu0
    %v2802 = vpop.f32.mrb[0].mxu0
    %v2803 = vadd.f32 %v2618, %v2802
    %v2804 = vpop.f32.mrb[0].mxu0
    %2805 = vmatprep.mubr.bf16.mxu0 0
    %2806 = vmatmul.mubr.bf16.gmra.mrb[0].mxu0 %v2675
    %v2807 = vpop.f32.mrb[0].mxu0
    %v2808 = vadd.f32 %v2618, %v2807
    %v2809 = vpop.f32.mrb[0].mxu0
    %v2810 = vpop.f32.mrb[0].mxu0
    %v2811 = vadd.f32 %v2618, %v2810
    %v2812 = vpop.f32.mrb[0].mxu0
    %2813 = vmatprep.mubr.bf16.mxu0 0
    %2814 = vmatmul.mubr.bf16.gmra.mrb[0].mxu0 %v2678
    %v2815 = vpop.f32.mrb[0].mxu0
    %v2816 = vadd.f32 %v2618, %v2815
    %v2817 = vpop.f32.mrb[0].mxu0
    %v2818 = vpop.f32.mrb[0].mxu0
    %v2819 = vadd.f32 %v2618, %v2818
    %v2820 = vpop.f32.mrb[0].mxu0
    %2821 = vmatprep.mubr.bf16.mxu0 0
    %2822 = vmatmul.mubr.bf16.gmra.mrb[0].mxu0 %v2681
    %v2823 = vpop.f32.mrb[0].mxu0
    %v2824 = vadd.f32 %v2618, %v2823
    %v2825 = vpop.f32.mrb[0].mxu0
    %v2826 = vpop.f32.mrb[0].mxu0
    %v2827 = vadd.f32 %v2618, %v2826
    %v2828 = vpop.f32.mrb[0].mxu0
    %2829 = vmatprep.mubr.bf16.mxu0 0
    %2830 = vmatmul.mubr.bf16.gmra.mrb[0].mxu0 %v2684
    %v2831 = vpop.f32.mrb[0].mxu0
    %v2832 = vadd.f32 %v2618, %v2831
    %v2833 = vpop.f32.mrb[0].mxu0
    %v2834 = vpop.f32.mrb[0].mxu0
    %v2835 = vadd.f32 %v2618, %v2834
    %v2836 = vpop.f32.mrb[0].mxu0
    %2837 = vmatprep.mubr.bf16.mxu0 0
    %2838 = vmatmul.mubr.bf16.gmra.mrb[0].mxu0 %v2687
    %v2839 = vpop.f32.mrb[0].mxu0
    %v2840 = vadd.f32 %v2618, %v2839
    %v2841 = vpop.f32.mrb[0].mxu0
    %v2842 = vpop.f32.mrb[0].mxu0
    %v2843 = vadd.f32 %v2618, %v2842
    %v2844 = vpop.f32.mrb[0].mxu0
    %2845 = vmatprep.mubr.bf16.mxu0 0
    %2846 = vmatmul.mubr.bf16.gmra.mrb[0].mxu0 %v2690
    %v2847 = vpop.f32.mrb[0].mxu0
    %v2848 = vadd.f32 %v2618, %v2847
    %v2849 = vpop.f32.mrb[0].mxu0
    %v2850 = vpop.f32.mrb[0].mxu0
    %v2851 = vadd.f32 %v2618, %v2850
    %v2852 = vpop.f32.mrb[0].mxu0
    %2853 = vmatprep.mubr.bf16.mxu0 0
    %2854 = vmatmul.mubr.bf16.gmra.mrb[0].mxu0 %v2693
    %v2855 = vpop.f32.mrb[0].mxu0
    %v2856 = vadd.f32 %v2618, %v2855
    %v2857 = vpop.f32.mrb[0].mxu0
    %v2858 = vpop.f32.mrb[0].mxu0
    %v2859 = vadd.f32 %v2618, %v2858
    %v2860 = vpop.f32.mrb[0].mxu0
    %2861 = vmatprep.mubr.bf16.mxu0 0
    %2862 = vmatmul.mubr.bf16.gmra.mrb[0].mxu0 %v2696
    %v2863 = vpop.f32.mrb[0].mxu0
    %v2864 = vadd.f32 %v2618, %v2863
    %v2865 = vpop.f32.mrb[0].mxu0
    %v2866 = vpop.f32.mrb[0].mxu0
    %v2867 = vadd.f32 %v2618, %v2866
    %v2868 = vpop.f32.mrb[0].mxu0
    %2869 = vmatprep.mubr.bf16.mxu0 0
    %2870 = vmatmul.mubr.bf16.gmra.mrb[0].mxu0 %v2699
    %v2871 = vpop.f32.mrb[0].mxu0
    %v2872 = vadd.f32 %v2618, %v2871
    %v2873 = vpop.f32.mrb[0].mxu0
    %v2874 = vpop.f32.mrb[0].mxu0
    %v2875 = vadd.f32 %v2618, %v2874
    %v2876 = vpop.f32.mrb[0].mxu0
    %2877 = vmatprep.mubr.bf16.mxu0 0
    %2878 = vmatmul.mubr.bf16.gmra.mrb[0].mxu0 %v2702
    %v2879 = vpop.f32.mrb[0].mxu0
    %v2880 = vadd.f32 %v2618, %v2879
    %v2881 = vpop.f32.mrb[0].mxu0
    %v2882 = vpop.f32.mrb[0].mxu0
    %v2883 = vadd.f32 %v2618, %v2882
    %v2884 = vpop.f32.mrb[0].mxu0
    %2885 = vmatprep.mubr.bf16.mxu0 0
    %2886 = vmatmul.mubr.bf16.gmra.mrb[0].mxu0 %v2705
    %v2887 = vpop.f32.mrb[0].mxu0
    %v2888 = vadd.f32 %v2618, %v2887
    %v2889 = vpop.f32.mrb[0].mxu0
    %v2890 = vpop.f32.mrb[0].mxu0
    %v2891 = vadd.f32 %v2618, %v2890
    %v2892 = vpop.f32.mrb[0].mxu0
    %2893 = vmatprep.mubr.bf16.mxu0 0
    %2894 = vmatmul.mubr.bf16.gmra.mrb[0].mxu0 %v2708
    %v2895 = vpop.f32.mrb[0].mxu0
    %v2896 = vadd.f32 %v2618, %v2895
    %v2897 = vpop.f32.mrb[0].mxu0
    %v2898 = vpop.f32.mrb[0].mxu0
    %v2899 = vadd.f32 %v2618, %v2898
    %v2900 = vpop.f32.mrb[0].mxu0
    %2901 = vmatprep.mubr.bf16.mxu0 0
    %2902 = vmatmul.mubr.bf16.gmra.mrb[0].mxu0 %v2711
    %v2903 = vpop.f32.mrb[0].mxu0
    %v2904 = vadd.f32 %v2618, %v2903
    %v2905 = vpop.f32.mrb[0].mxu0
    %v2906 = vpop.f32.mrb[0].mxu0
    %v2907 = vadd.f32 %v2618, %v2906
    %v2908 = vpop.f32.mrb[0].mxu0
    %2909 = vmatprep.mubr.bf16.mxu0 0
    %2910 = vmatmul.mubr.bf16.gmra.mrb[0].mxu0 %v2714
    %v2911 = vpop.f32.mrb[0].mxu0
    %v2912 = vadd.f32 %v2618, %v2911
    %v2913 = vpop.f32.mrb[0].mxu0
    %v2914 = vpop.f32.mrb[0].mxu0
    %v2915 = vadd.f32 %v2618, %v2914
    %v2916 = vpop.f32.mrb[0].mxu0
    %2917 = vmatprep.mubr.bf16.mxu0 0
    %2918 = vmatmul.mubr.bf16.gmra.mrb[0].mxu0 %v2717
    %v2919 = vpop.f32.mrb[0].mxu0
    %v2920 = vadd.f32 %v2618, %v2919
    %v2921 = vpop.f32.mrb[0].mxu0
    %v2922 = vpop.f32.mrb[0].mxu0
    %v2923 = vadd.f32 %v2618, %v2922
    %v2924 = vpop.f32.mrb[0].mxu0
    %2925 = vmatprep.mubr.bf16.mxu0 0
    %2926 = vmatmul.mubr.bf16.gmra.mrb[0].mxu0 %v2720
    %v2927 = vpop.f32.mrb[0].mxu0
    %v2928 = vadd.f32 %v2618, %v2927
    %v2929 = vpop.f32.mrb[0].mxu0
    %v2930 = vpop.f32.mrb[0].mxu0
    %v2931 = vadd.f32 %v2618, %v2930
    %v2932 = vpop.f32.mrb[0].mxu0
    %2933 = vmatprep.mubr.bf16.mxu0 0
    %2934 = vmatmul.mubr.bf16.gmra.mrb[0].mxu0 %v2723
    %v2935 = vpop.f32.mrb[0].mxu0
    %v2936 = vadd.f32 %v2618, %v2935
    %v2937 = vpop.f32.mrb[0].mxu0
    %v2938 = vpop.f32.mrb[0].mxu0
    %v2939 = vpop.f32.mrb[0].mxu0
    %2940 = vdwg.mxu0
    %v2941 = vmax.f32 %v2760, 0.0
    %v2942 = vmax.f32 %v2763, 0.0
    %v2943 = vmax.f32 %v2768, 0.0
    %v2944 = vmax.f32 %v2771, 0.0
    %v2945 = vmax.f32 %v2776, 0.0
    %v2946 = vmax.f32 %v2779, 0.0
    %v2947 = vmax.f32 %v2784, 0.0
    %v2948 = vmax.f32 %v2787, 0.0
    %v2949 = vmax.f32 %v2792, 0.0
    %v2950 = vmax.f32 %v2795, 0.0
    %v2951 = vmax.f32 %v2800, 0.0
    %v2952 = vmax.f32 %v2803, 0.0
    %v2953 = vmax.f32 %v2808, 0.0
    %v2954 = vmax.f32 %v2811, 0.0
    %v2955 = vmax.f32 %v2816, 0.0
    %v2956 = vmax.f32 %v2819, 0.0
    %v2957 = vmax.f32 %v2824, 0.0
    %v2958 = vmax.f32 %v2827, 0.0
    %v2959 = vmax.f32 %v2832, 0.0
    %v2960 = vmax.f32 %v2835, 0.0
    %v2961 = vmax.f32 %v2840, 0.0
    %v2962 = vmax.f32 %v2843, 0.0
    %v2963 = vmax.f32 %v2848, 0.0
    %v2964 = vmax.f32 %v2851, 0.0
    %v2965 = vmax.f32 %v2856, 0.0
    %v2966 = vmax.f32 %v2859, 0.0
    %v2967 = vmax.f32 %v2864, 0.0
    %v2968 = vmax.f32 %v2867, 0.0
    %v2969 = vmax.f32 %v2872, 0.0
    %v2970 = vmax.f32 %v2875, 0.0
    %v2971 = vmax.f32 %v2880, 0.0
    %v2972 = vmax.f32 %v2883, 0.0
    %v2973 = vmax.f32 %v2888, 0.0
    %v2974 = vmax.f32 %v2891, 0.0
    %v2975 = vmax.f32 %v2896, 0.0
    %v2976 = vmax.f32 %v2899, 0.0
    %v2977 = vmax.f32 %v2904, 0.0
    %v2978 = vmax.f32 %v2907, 0.0
    %v2979 = vmax.f32 %v2912, 0.0
    %v2980 = vmax.f32 %v2915, 0.0
    %v2981 = vmax.f32 %v2920, 0.0
    %v2982 = vmax.f32 %v2923, 0.0
    %v2983 = vmax.f32 %v2928, 0.0
    %v2984 = vmax.f32 %v2931, 0.0
    %v2985 = vmax.f32 %v2936, 0.0
    %v2986 = vld [vmem:[%s2 + $0x40] sm:$0xf]
    %v2987 = vld [vmem:[%s2 + $0x44] sm:$0xf]
    %v2988 = vld [vmem:[%s2 + $0x48] sm:$0xf]
    %v2989 = vld [vmem:[%s2 + $0x4c] sm:$0xf]
    %v2990 = vld [vmem:[%s2 + $0x50] sm:$0xf]
    %v2991 = vld [vmem:[%s2 + $0x54] sm:$0xf]
    %v2992 = vld [vmem:[%s2 + $0x58] sm:$0xf]
    %v2993 = vld [vmem:[%s2 + $0x5c] sm:$0xf]
    %v2994 = vld [vmem:[%s2 + $0x60] sm:$0xf]
    %v2995 = vld [vmem:[%s2 + $0x64] sm:$0xf]
    %v2996 = vld [vmem:[%s2 + $0x68] sm:$0xf]
    %v2997 = vld [vmem:[%s2 + $0x6c] sm:$0xf]
    %v2998 = vld [vmem:[%s2 + $0x70] sm:$0xf]
    %v2999 = vld [vmem:[%s2 + $0x74] sm:$0xf]
    %v3000 = vld [vmem:[%s2 + $0x78] sm:$0xf]
    %v3001 = vld [vmem:[%s2 + $0x7c] sm:$0xf]
    %v3002 = vld [vmem:[%s2 + $0x80] sm:$0xf]
    %v3003 = vld [vmem:[%s2 + $0x84] sm:$0xf]
    %v3004 = vld [vmem:[%s2 + $0x88] sm:$0xf]
    %v3005 = vld [vmem:[%s2 + $0x8c] sm:$0xf]
    %v3006 = vld [vmem:[%s2 + $0x90] sm:$0xf]
    %v3007 = vld [vmem:[%s2 + $0x94] sm:$0xf]
    %v3008 = vld [vmem:[%s2 + $0x98] sm:$0xf]
    %v3009 = vld [vmem:[%s2 + $0x9c] sm:$0xf]
    %v3010 = vld [vmem:[%s3 + $0x2] sm:$0x1]
    %v3011 = vrot.slane %v2941, 7
    %v3012 = vrot.slane %v2942, 7
    %v3013 = vrot.slane %v2943, 7
    %v3014 = vrot.slane %v2944, 7
    %v3015 = vrot.slane %v2945, 7
    %v3016 = vrot.slane %v2946, 7
    %v3017 = vrot.slane %v2947, 7
    %v3018 = vrot.slane %v2948, 7
    %v3019 = vrot.slane %v2949, 7
    %v3020 = vrot.slane %v2950, 7
    %v3021 = vrot.slane %v2951, 7
    %v3022 = vrot.slane %v2952, 7
    %v3023 = vrot.slane %v2953, 7
    %v3024 = vrot.slane %v2954, 7
    %v3025 = vrot.slane %v2955, 7
    %v3026 = vrot.slane %v2956, 7
    %v3027 = vrot.slane %v2957, 7
    %v3028 = vrot.slane %v2958, 7
    %v3029 = vrot.slane %v2959, 7
    %v3030 = vrot.slane %v2960, 7
    %v3031 = vrot.slane %v2961, 7
    %v3032 = vrot.slane %v2962, 7
    %v3033 = vrot.slane %v2963, 7
    %v3034 = vrot.slane %v2964, 7
    %v3035 = vrot.slane %v2965, 7
    %v3036 = vrot.slane %v2966, 7
    %v3037 = vrot.slane %v2967, 7
    %v3038 = vrot.slane %v2968, 7
    %v3039 = vrot.slane %v2969, 7
    %v3040 = vrot.slane %v2970, 7
    %v3041 = vrot.slane %v2971, 7
    %v3042 = vrot.slane %v2972, 7
    %v3043 = vrot.slane %v2973, 7
    %v3044 = vrot.slane %v2974, 7
    %v3045 = vrot.slane %v2975, 7
    %v3046 = vrot.slane %v2976, 7
    %v3047 = vrot.slane %v2977, 7
    %v3048 = vrot.slane %v2978, 7
    %v3049 = vrot.slane %v2979, 7
    %v3050 = vrot.slane %v2980, 7
    %v3051 = vrot.slane %v2981, 7
    %v3052 = vrot.slane %v2982, 7
    %v3053 = vrot.slane %v2983, 7
    %v3054 = vrot.slane %v2984, 7
    %v3055 = vrot.slane %v2985, 7
    %v3056 = vsel %vm627, %v3054, %v3055
    %v3057 = vsel %vm627, %v3053, %v3054
    %v3058 = vsel %vm627, %v3052, %v3053
    %v3059 = vsel %vm627, %v3051, %v3052
    %v3060 = vsel %vm627, %v3050, %v3051
    %v3061 = vsel %vm627, %v3049, %v3050
    %v3062 = vsel %vm627, %v3048, %v3049
    %v3063 = vsel %vm627, %v3047, %v3048
    %v3064 = vsel %vm627, %v3046, %v3047
    %v3065 = vsel %vm627, %v3045, %v3046
    %v3066 = vsel %vm627, %v3044, %v3045
    %v3067 = vsel %vm627, %v3043, %v3044
    %v3068 = vsel %vm627, %v3042, %v3043
    %v3069 = vsel %vm627, %v3041, %v3042
    %v3070 = vsel %vm627, %v3040, %v3041
    %v3071 = vsel %vm627, %v3039, %v3040
    %v3072 = vsel %vm627, %v3038, %v3039
    %v3073 = vsel %vm627, %v3037, %v3038
    %v3074 = vsel %vm627, %v3036, %v3037
    %v3075 = vsel %vm627, %v3035, %v3036
    %v3076 = vsel %vm627, %v3034, %v3035
    %v3077 = vsel %vm627, %v3033, %v3034
    %v3078 = vsel %vm627, %v3032, %v3033
    %v3079 = vsel %vm627, %v3031, %v3032
    %v3080 = vsel %vm627, %v3030, %v3031
    %v3081 = vsel %vm627, %v3029, %v3030
    %v3082 = vsel %vm627, %v3028, %v3029
    %v3083 = vsel %vm627, %v3027, %v3028
    %v3084 = vsel %vm627, %v3026, %v3027
    %v3085 = vsel %vm627, %v3025, %v3026
    %v3086 = vsel %vm627, %v3024, %v3025
    %v3087 = vsel %vm627, %v3023, %v3024
    %v3088 = vsel %vm627, %v3022, %v3023
    %v3089 = vsel %vm627, %v3021, %v3022
    %v3090 = vsel %vm627, %v3020, %v3021
    %v3091 = vsel %vm627, %v3019, %v3020
    %v3092 = vsel %vm627, %v3018, %v3019
    %v3093 = vsel %vm627, %v3017, %v3018
    %v3094 = vsel %vm627, %v3016, %v3017
    %v3095 = vsel %vm627, %v3015, %v3016
    %v3096 = vsel %vm627, %v3014, %v3015
    %v3097 = vsel %vm627, %v3013, %v3014
    %v3098 = vsel %vm627, %v3012, %v3013
    %v3099 = vsel %vm627, %v3011, %v3012
    %v3100 = vsel %vm627, %v3055, %v3011
    %v3101 = vsel %vm718, 0.0, %v3100
    %v3102 = vsel %vm719, 0.0, %v3099
    %v3103 = vsel %vm720, 0.0, %v3098
    %v3104 = vsel %vm721, 0.0, %v3097
    %v3105 = vsel %vm722, 0.0, %v3096
    %v3106 = vsel %vm723, 0.0, %v3095
    %v3107 = vsel %vm724, 0.0, %v3094
    %v3108 = vsel %vm725, 0.0, %v3093
    %v3109 = vsel %vm726, 0.0, %v3092
    %v3110 = vsel %vm727, 0.0, %v3091
    %v3111 = vsel %vm728, 0.0, %v3090
    %v3112 = vsel %vm729, 0.0, %v3089
    %v3113 = vsel %vm730, 0.0, %v3088
    %v3114 = vsel %vm731, 0.0, %v3087
    %v3115 = vsel %vm732, 0.0, %v3086
    %v3116 = vsel %vm733, 0.0, %v3085
    %v3117 = vsel %vm734, 0.0, %v3084
    %v3118 = vsel %vm735, 0.0, %v3083
    %v3119 = vsel %vm736, 0.0, %v3082
    %v3120 = vsel %vm737, 0.0, %v3081
    %v3121 = vsel %vm738, 0.0, %v3080
    %v3122 = vsel %vm739, 0.0, %v3079
    %v3123 = vsel %vm740, 0.0, %v3078
    %v3124 = vsel %vm741, 0.0, %v3077
    %v3125 = vsel %vm742, 0.0, %v3076
    %v3126 = vsel %vm743, 0.0, %v3075
    %v3127 = vsel %vm744, 0.0, %v3074
    %v3128 = vsel %vm745, 0.0, %v3073
    %v3129 = vsel %vm746, 0.0, %v3072
    %v3130 = vsel %vm747, 0.0, %v3071
    %v3131 = vsel %vm748, 0.0, %v3070
    %v3132 = vsel %vm749, 0.0, %v3069
    %v3133 = vsel %vm750, 0.0, %v3068
    %v3134 = vsel %vm751, 0.0, %v3067
    %v3135 = vsel %vm752, 0.0, %v3066
    %v3136 = vsel %vm753, 0.0, %v3065
    %v3137 = vsel %vm754, 0.0, %v3064
    %v3138 = vsel %vm755, 0.0, %v3063
    %v3139 = vsel %vm756, 0.0, %v3062
    %v3140 = vsel %vm757, 0.0, %v3061
    %v3141 = vsel %vm758, 0.0, %v3060
    %v3142 = vsel %vm759, 0.0, %v3059
    %v3143 = vsel %vm760, 0.0, %v3058
    %v3144 = vsel %vm761, 0.0, %v3057
    %v3145 = vsel %vm762, 0.0, %v3056
    %v3146 = vrot.slane %v2941, 1
    %v3147 = vrot.slane %v2942, 1
    %v3148 = vrot.slane %v2943, 1
    %v3149 = vrot.slane %v2944, 1
    %v3150 = vrot.slane %v2945, 1
    %v3151 = vrot.slane %v2946, 1
    %v3152 = vrot.slane %v2947, 1
    %v3153 = vrot.slane %v2948, 1
    %v3154 = vrot.slane %v2949, 1
    %v3155 = vrot.slane %v2950, 1
    %v3156 = vrot.slane %v2951, 1
    %v3157 = vrot.slane %v2952, 1
    %v3158 = vrot.slane %v2953, 1
    %v3159 = vrot.slane %v2954, 1
    %v3160 = vrot.slane %v2955, 1
    %v3161 = vrot.slane %v2956, 1
    %v3162 = vrot.slane %v2957, 1
    %v3163 = vrot.slane %v2958, 1
    %v3164 = vrot.slane %v2959, 1
    %v3165 = vrot.slane %v2960, 1
    %v3166 = vrot.slane %v2961, 1
    %v3167 = vrot.slane %v2962, 1
    %v3168 = vrot.slane %v2963, 1
    %v3169 = vrot.slane %v2964, 1
    %v3170 = vrot.slane %v2965, 1
    %v3171 = vrot.slane %v2966, 1
    %v3172 = vrot.slane %v2967, 1
    %v3173 = vrot.slane %v2968, 1
    %v3174 = vrot.slane %v2969, 1
    %v3175 = vrot.slane %v2970, 1
    %v3176 = vrot.slane %v2971, 1
    %v3177 = vrot.slane %v2972, 1
    %v3178 = vrot.slane %v2973, 1
    %v3179 = vrot.slane %v2974, 1
    %v3180 = vrot.slane %v2975, 1
    %v3181 = vrot.slane %v2976, 1
    %v3182 = vrot.slane %v2977, 1
    %v3183 = vrot.slane %v2978, 1
    %v3184 = vrot.slane %v2979, 1
    %v3185 = vrot.slane %v2980, 1
    %v3186 = vrot.slane %v2981, 1
    %v3187 = vrot.slane %v2982, 1
    %v3188 = vrot.slane %v2983, 1
    %v3189 = vrot.slane %v2984, 1
    %v3190 = vrot.slane %v2985, 1
    %v3191 = vsel %vm853, %v3189, %v3190
    %v3192 = vsel %vm853, %v3188, %v3189
    %v3193 = vsel %vm853, %v3187, %v3188
    %v3194 = vsel %vm853, %v3186, %v3187
    %v3195 = vsel %vm853, %v3185, %v3186
    %v3196 = vsel %vm853, %v3184, %v3185
    %v3197 = vsel %vm853, %v3183, %v3184
    %v3198 = vsel %vm853, %v3182, %v3183
    %v3199 = vsel %vm853, %v3181, %v3182
    %v3200 = vsel %vm853, %v3180, %v3181
    %v3201 = vsel %vm853, %v3179, %v3180
    %v3202 = vsel %vm853, %v3178, %v3179
    %v3203 = vsel %vm853, %v3177, %v3178
    %v3204 = vsel %vm853, %v3176, %v3177
    %v3205 = vsel %vm853, %v3175, %v3176
    %v3206 = vsel %vm853, %v3174, %v3175
    %v3207 = vsel %vm853, %v3173, %v3174
    %v3208 = vsel %vm853, %v3172, %v3173
    %v3209 = vsel %vm853, %v3171, %v3172
    %v3210 = vsel %vm853, %v3170, %v3171
    %v3211 = vsel %vm853, %v3169, %v3170
    %v3212 = vsel %vm853, %v3168, %v3169
    %v3213 = vsel %vm853, %v3167, %v3168
    %v3214 = vsel %vm853, %v3166, %v3167
    %v3215 = vsel %vm853, %v3165, %v3166
    %v3216 = vsel %vm853, %v3164, %v3165
    %v3217 = vsel %vm853, %v3163, %v3164
    %v3218 = vsel %vm853, %v3162, %v3163
    %v3219 = vsel %vm853, %v3161, %v3162
    %v3220 = vsel %vm853, %v3160, %v3161
    %v3221 = vsel %vm853, %v3159, %v3160
    %v3222 = vsel %vm853, %v3158, %v3159
    %v3223 = vsel %vm853, %v3157, %v3158
    %v3224 = vsel %vm853, %v3156, %v3157
    %v3225 = vsel %vm853, %v3155, %v3156
    %v3226 = vsel %vm853, %v3154, %v3155
    %v3227 = vsel %vm853, %v3153, %v3154
    %v3228 = vsel %vm853, %v3152, %v3153
    %v3229 = vsel %vm853, %v3151, %v3152
    %v3230 = vsel %vm853, %v3150, %v3151
    %v3231 = vsel %vm853, %v3149, %v3150
    %v3232 = vsel %vm853, %v3148, %v3149
    %v3233 = vsel %vm853, %v3147, %v3148
    %v3234 = vsel %vm853, %v3146, %v3147
    %v3235 = vsel %vm853, %v3190, %v3146
    %v3236 = vsel %vm944, 0.0, %v3234
    %v3237 = vsel %vm945, 0.0, %v3233
    %v3238 = vsel %vm946, 0.0, %v3232
    %v3239 = vsel %vm947, 0.0, %v3231
    %v3240 = vsel %vm948, 0.0, %v3230
    %v3241 = vsel %vm949, 0.0, %v3229
    %v3242 = vsel %vm950, 0.0, %v3228
    %v3243 = vsel %vm951, 0.0, %v3227
    %v3244 = vsel %vm952, 0.0, %v3226
    %v3245 = vsel %vm953, 0.0, %v3225
    %v3246 = vsel %vm954, 0.0, %v3224
    %v3247 = vsel %vm955, 0.0, %v3223
    %v3248 = vsel %vm956, 0.0, %v3222
    %v3249 = vsel %vm957, 0.0, %v3221
    %v3250 = vsel %vm958, 0.0, %v3220
    %v3251 = vsel %vm959, 0.0, %v3219
    %v3252 = vsel %vm960, 0.0, %v3218
    %v3253 = vsel %vm961, 0.0, %v3217
    %v3254 = vsel %vm962, 0.0, %v3216
    %v3255 = vsel %vm963, 0.0, %v3215
    %v3256 = vsel %vm964, 0.0, %v3214
    %v3257 = vsel %vm965, 0.0, %v3213
    %v3258 = vsel %vm966, 0.0, %v3212
    %v3259 = vsel %vm967, 0.0, %v3211
    %v3260 = vsel %vm968, 0.0, %v3210
    %v3261 = vsel %vm969, 0.0, %v3209
    %v3262 = vsel %vm970, 0.0, %v3208
    %v3263 = vsel %vm971, 0.0, %v3207
    %v3264 = vsel %vm972, 0.0, %v3206
    %v3265 = vsel %vm973, 0.0, %v3205
    %v3266 = vsel %vm974, 0.0, %v3204
    %v3267 = vsel %vm975, 0.0, %v3203
    %v3268 = vsel %vm976, 0.0, %v3202
    %v3269 = vsel %vm977, 0.0, %v3201
    %v3270 = vsel %vm978, 0.0, %v3200
    %v3271 = vsel %vm979, 0.0, %v3199
    %v3272 = vsel %vm980, 0.0, %v3198
    %v3273 = vsel %vm981, 0.0, %v3197
    %v3274 = vsel %vm982, 0.0, %v3196
    %v3275 = vsel %vm983, 0.0, %v3195
    %v3276 = vsel %vm984, 0.0, %v3194
    %v3277 = vsel %vm985, 0.0, %v3193
    %v3278 = vsel %vm986, 0.0, %v3192
    %v3279 = vsel %vm987, 0.0, %v3191
    %v3280 = vsel %vm988, 0.0, %v3235
    %3326 = vrot.lane.b32.xlu0 %v2941, 64
    %v3327 = vpop.permute.xlu0 %3326
    %3328 = vrot.lane.b32.xlu0 %v2942, 64
    %v3329 = vpop.permute.xlu0 %3328
    %3330 = vrot.lane.b32.xlu0 %v2943, 64
    %v3331 = vpop.permute.xlu0 %3330
    %3332 = vrot.lane.b32.xlu0 %v2944, 64
    %v3333 = vpop.permute.xlu0 %3332
    %3334 = vrot.lane.b32.xlu0 %v2945, 64
    %v3335 = vpop.permute.xlu0 %3334
    %3336 = vrot.lane.b32.xlu0 %v2946, 64
    %v3337 = vpop.permute.xlu0 %3336
    %3338 = vrot.lane.b32.xlu0 %v2947, 64
    %v3339 = vpop.permute.xlu0 %3338
    %3340 = vrot.lane.b32.xlu0 %v2948, 64
    %v3341 = vpop.permute.xlu0 %3340
    %3342 = vrot.lane.b32.xlu0 %v2949, 64
    %v3343 = vpop.permute.xlu0 %3342
    %3344 = vrot.lane.b32.xlu0 %v2950, 64
    %v3345 = vpop.permute.xlu0 %3344
    %3346 = vrot.lane.b32.xlu0 %v2951, 64
    %v3347 = vpop.permute.xlu0 %3346
    %3348 = vrot.lane.b32.xlu0 %v2952, 64
    %v3349 = vpop.permute.xlu0 %3348
    %3350 = vrot.lane.b32.xlu0 %v2953, 64
    %v3351 = vpop.permute.xlu0 %3350
    %3352 = vrot.lane.b32.xlu0 %v2954, 64
    %v3353 = vpop.permute.xlu0 %3352
    %3354 = vrot.lane.b32.xlu0 %v2955, 64
    %v3355 = vpop.permute.xlu0 %3354
    %3356 = vrot.lane.b32.xlu0 %v2956, 64
    %v3357 = vpop.permute.xlu0 %3356
    %3358 = vrot.lane.b32.xlu0 %v2957, 64
    %v3359 = vpop.permute.xlu0 %3358
    %3360 = vrot.lane.b32.xlu0 %v2958, 64
    %v3361 = vpop.permute.xlu0 %3360
    %3362 = vrot.lane.b32.xlu0 %v2959, 64
    %v3363 = vpop.permute.xlu0 %3362
    %3364 = vrot.lane.b32.xlu0 %v2960, 64
    %v3365 = vpop.permute.xlu0 %3364
    %3366 = vrot.lane.b32.xlu0 %v2961, 64
    %v3367 = vpop.permute.xlu0 %3366
    %3368 = vrot.lane.b32.xlu0 %v2962, 64
    %v3369 = vpop.permute.xlu0 %3368
    %3370 = vrot.lane.b32.xlu0 %v2963, 64
    %v3371 = vpop.permute.xlu0 %3370
    %3372 = vrot.lane.b32.xlu0 %v2964, 64
    %v3373 = vpop.permute.xlu0 %3372
    %3374 = vrot.lane.b32.xlu0 %v2965, 64
    %v3375 = vpop.permute.xlu0 %3374
    %3376 = vrot.lane.b32.xlu0 %v2966, 64
    %v3377 = vpop.permute.xlu0 %3376
    %3378 = vrot.lane.b32.xlu0 %v2967, 64
    %v3379 = vpop.permute.xlu0 %3378
    %3380 = vrot.lane.b32.xlu0 %v2968, 64
    %v3381 = vpop.permute.xlu0 %3380
    %3382 = vrot.lane.b32.xlu0 %v2969, 64
    %v3383 = vpop.permute.xlu0 %3382
    %3384 = vrot.lane.b32.xlu0 %v2970, 64
    %v3385 = vpop.permute.xlu0 %3384
    %3386 = vrot.lane.b32.xlu0 %v2971, 64
    %v3387 = vpop.permute.xlu0 %3386
    %3388 = vrot.lane.b32.xlu0 %v2972, 64
    %v3389 = vpop.permute.xlu0 %3388
    %3390 = vrot.lane.b32.xlu0 %v2973, 64
    %v3391 = vpop.permute.xlu0 %3390
    %3392 = vrot.lane.b32.xlu0 %v2974, 64
    %v3393 = vpop.permute.xlu0 %3392
    %3394 = vrot.lane.b32.xlu0 %v2975, 64
    %v3395 = vpop.permute.xlu0 %3394
    %3396 = vrot.lane.b32.xlu0 %v2976, 64
    %v3397 = vpop.permute.xlu0 %3396
    %3398 = vrot.lane.b32.xlu0 %v2977, 64
    %v3399 = vpop.permute.xlu0 %3398
    %3400 = vrot.lane.b32.xlu0 %v2978, 64
    %v3401 = vpop.permute.xlu0 %3400
    %3402 = vrot.lane.b32.xlu0 %v2979, 64
    %v3403 = vpop.permute.xlu0 %3402
    %3404 = vrot.lane.b32.xlu0 %v2980, 64
    %v3405 = vpop.permute.xlu0 %3404
    %3406 = vrot.lane.b32.xlu0 %v2981, 64
    %v3407 = vpop.permute.xlu0 %3406
    %3408 = vrot.lane.b32.xlu0 %v2982, 64
    %v3409 = vpop.permute.xlu0 %3408
    %3410 = vrot.lane.b32.xlu0 %v2983, 64
    %v3411 = vpop.permute.xlu0 %3410
    %3412 = vrot.lane.b32.xlu0 %v2984, 64
    %v3413 = vpop.permute.xlu0 %3412
    %3414 = vrot.lane.b32.xlu0 %v2985, 64
    %v3415 = vpop.permute.xlu0 %3414
    %v3461 = vsel %vm2546, %v3101, %v3327
    %v3462 = vsel %vm2546, %v3102, %v3329
    %v3463 = vsel %vm2546, %v3103, %v3331
    %v3464 = vsel %vm2546, %v3104, %v3333
    %v3465 = vsel %vm2546, %v3105, %v3335
    %v3466 = vsel %vm2546, %v3106, %v3337
    %v3467 = vsel %vm2546, %v3107, %v3339
    %v3468 = vsel %vm2546, %v3108, %v3341
    %v3469 = vsel %vm2546, %v3109, %v3343
    %v3470 = vsel %vm2546, %v3110, %v3345
    %v3471 = vsel %vm2546, %v3111, %v3347
    %v3472 = vsel %vm2546, %v3112, %v3349
    %v3473 = vsel %vm2546, %v3113, %v3351
    %v3474 = vsel %vm2546, %v3114, %v3353
    %v3475 = vsel %vm2546, %v3115, %v3355
    %v3476 = vsel %vm2546, %v3116, %v3357
    %v3477 = vsel %vm2546, %v3117, %v3359
    %v3478 = vsel %vm2546, %v3118, %v3361
    %v3479 = vsel %vm2546, %v3119, %v3363
    %v3480 = vsel %vm2546, %v3120, %v3365
    %v3481 = vsel %vm2546, %v3121, %v3367
    %v3482 = vsel %vm2546, %v3122, %v3369
    %v3483 = vsel %vm2546, %v3123, %v3371
    %v3484 = vsel %vm2546, %v3124, %v3373
    %v3485 = vsel %vm2546, %v3125, %v3375
    %v3486 = vsel %vm2546, %v3126, %v3377
    %v3487 = vsel %vm2546, %v3127, %v3379
    %v3488 = vsel %vm2546, %v3128, %v3381
    %v3489 = vsel %vm2546, %v3129, %v3383
    %v3490 = vsel %vm2546, %v3130, %v3385
    %v3491 = vsel %vm2546, %v3131, %v3387
    %v3492 = vsel %vm2546, %v3132, %v3389
    %v3493 = vsel %vm2546, %v3133, %v3391
    %v3494 = vsel %vm2546, %v3134, %v3393
    %v3495 = vsel %vm2546, %v3135, %v3395
    %v3496 = vsel %vm2546, %v3136, %v3397
    %v3497 = vsel %vm2546, %v3137, %v3399
    %v3498 = vsel %vm2546, %v3138, %v3401
    %v3499 = vsel %vm2546, %v3139, %v3403
    %v3500 = vsel %vm2546, %v3140, %v3405
    %v3501 = vsel %vm2546, %v3141, %v3407
    %v3502 = vsel %vm2546, %v3142, %v3409
    %v3503 = vsel %vm2546, %v3143, %v3411
    %v3504 = vsel %vm2546, %v3144, %v3413
    %v3505 = vsel %vm2546, %v3145, %v3415
    %v3506 = vpack.c.bf16 %v3462, %v3461
    %v3507 = vpack.c.bf16 %v3237, %v3236
    %v3508 = vpack.c.bf16 %v3464, %v3463
    %v3509 = vpack.c.bf16 %v3239, %v3238
    %v3510 = vpack.c.bf16 %v3466, %v3465
    %v3511 = vpack.c.bf16 %v3241, %v3240
    %v3512 = vpack.c.bf16 %v3468, %v3467
    %v3513 = vpack.c.bf16 %v3243, %v3242
    %v3514 = vpack.c.bf16 %v3470, %v3469
    %v3515 = vpack.c.bf16 %v3245, %v3244
    %v3516 = vpack.c.bf16 %v3472, %v3471
    %v3517 = vpack.c.bf16 %v3247, %v3246
    %v3518 = vpack.c.bf16 %v3474, %v3473
    %v3519 = vpack.c.bf16 %v3249, %v3248
    %v3520 = vpack.c.bf16 %v3476, %v3475
    %v3521 = vpack.c.bf16 %v3251, %v3250
    %v3522 = vpack.c.bf16 %v3478, %v3477
    %v3523 = vpack.c.bf16 %v3253, %v3252
    %v3524 = vpack.c.bf16 %v3480, %v3479
    %v3525 = vpack.c.bf16 %v3255, %v3254
    %v3526 = vpack.c.bf16 %v3482, %v3481
    %v3527 = vpack.c.bf16 %v3257, %v3256
    %v3528 = vpack.c.bf16 %v3484, %v3483
    %v3529 = vpack.c.bf16 %v3259, %v3258
    %v3530 = vpack.c.bf16 %v3486, %v3485
    %v3531 = vpack.c.bf16 %v3261, %v3260
    %v3532 = vpack.c.bf16 %v3488, %v3487
    %v3533 = vpack.c.bf16 %v3263, %v3262
    %v3534 = vpack.c.bf16 %v3490, %v3489
    %v3535 = vpack.c.bf16 %v3265, %v3264
    %v3536 = vpack.c.bf16 %v3492, %v3491
    %v3537 = vpack.c.bf16 %v3267, %v3266
    %v3538 = vpack.c.bf16 %v3494, %v3493
    %v3539 = vpack.c.bf16 %v3269, %v3268
    %v3540 = vpack.c.bf16 %v3496, %v3495
    %v3541 = vpack.c.bf16 %v3271, %v3270
    %v3542 = vpack.c.bf16 %v3498, %v3497
    %v3543 = vpack.c.bf16 %v3273, %v3272
    %v3544 = vpack.c.bf16 %v3500, %v3499
    %v3545 = vpack.c.bf16 %v3275, %v3274
    %v3546 = vpack.c.bf16 %v3502, %v3501
    %v3547 = vpack.c.bf16 %v3277, %v3276
    %v3548 = vpack.c.bf16 %v3504, %v3503
    %v3549 = vpack.c.bf16 %v3279, %v3278
    %v3550 = vpack.c.bf16 %v3505, %v3505
    %v3551 = vpack.c.bf16 %v3280, %v3280
    %v3552 = vlaneseq
    %v3553 = vshrl.u32 %v3552, 7
    %v3554 = vsub.s32 0, %v3553
    %v3555 = vrot.slane %v3010, %v3554
    %v3580 = vunpack.c.l.b16 %v2986
    %v3581 = vunpack.c.l.b16 %v2987
    %v3582 = vunpack.c.l.b16 %v2988
    %v3583 = vunpack.c.l.b16 %v2989
    %v3584 = vunpack.c.l.b16 %v2990
    %v3585 = vunpack.c.l.b16 %v2991
    %v3586 = vunpack.c.l.b16 %v2992
    %v3587 = vunpack.c.l.b16 %v2993
    %v3588 = vunpack.c.l.b16 %v2994
    %v3589 = vunpack.c.l.b16 %v2995
    %v3590 = vunpack.c.l.b16 %v2996
    %v3591 = vunpack.c.l.b16 %v2997
    %v3592 = vunpack.c.l.b16 %v2998
    %v3593 = vunpack.c.l.b16 %v2999
    %v3594 = vunpack.c.l.b16 %v3000
    %v3595 = vunpack.c.l.b16 %v3001
    %v3596 = vunpack.c.l.b16 %v3002
    %v3597 = vunpack.c.l.b16 %v3003
    %v3598 = vunpack.c.l.b16 %v3004
    %v3599 = vunpack.c.l.b16 %v3005
    %v3600 = vunpack.c.l.b16 %v3006
    %v3601 = vunpack.c.l.b16 %v3007
    %v3602 = vunpack.c.l.b16 %v3008
    %v3603 = vunpack.c.l.b16 %v3009
    %v3604 = vpack.c.b16 %v3581, %v3580
    %v3605 = vpack.c.b16 %v3583, %v3582
    %v3606 = vpack.c.b16 %v3585, %v3584
    %v3607 = vpack.c.b16 %v3587, %v3586
    %v3608 = vpack.c.b16 %v3589, %v3588
    %v3609 = vpack.c.b16 %v3591, %v3590
    %v3610 = vpack.c.b16 %v3593, %v3592
    %v3611 = vpack.c.b16 %v3595, %v3594
    %v3612 = vpack.c.b16 %v3597, %v3596
    %v3613 = vpack.c.b16 %v3599, %v3598
    %v3614 = vpack.c.b16 %v3601, %v3600
    %v3615 = vpack.c.b16 %v3603, %v3602
    %v3629 = vsel %vm2546, %v3507, 0
    %v3632 = vsel %vm2546, %v3509, 0
    %v3635 = vsel %vm2546, %v3511, 0
    %v3638 = vsel %vm2546, %v3513, 0
    %v3641 = vsel %vm2546, %v3515, 0
    %v3644 = vsel %vm2546, %v3517, 0
    %v3647 = vsel %vm2546, %v3519, 0
    %v3650 = vsel %vm2546, %v3521, 0
    %v3653 = vsel %vm2546, %v3523, 0
    %v3656 = vsel %vm2546, %v3525, 0
    %v3659 = vsel %vm2546, %v3527, 0
    %v3662 = vsel %vm2546, %v3529, 0
    %v3665 = vsel %vm2546, %v3531, 0
    %v3668 = vsel %vm2546, %v3533, 0
    %v3671 = vsel %vm2546, %v3535, 0
    %v3674 = vsel %vm2546, %v3537, 0
    %v3677 = vsel %vm2546, %v3539, 0
    %v3680 = vsel %vm2546, %v3541, 0
    %v3683 = vsel %vm2546, %v3543, 0
    %v3686 = vsel %vm2546, %v3545, 0
    %v3689 = vsel %vm2546, %v3547, 0
    %v3692 = vsel %vm2546, %v3549, 0
    %v3695 = vsel %vm2546, %v3551, 0
    %3697 = vmatprep.subr.bf16.mxu0 0
    %3698 = vmatpush1.bf16.msra.mxu0 %v3604
    %3699 = vmatprep.subr.bf16.mxu0 0
    %3700 = vmatpush1.bf16.msra.mxu0 %v3605
    %3701 = vmatprep.subr.bf16.mxu0 0
    %3702 = vmatpush1.bf16.msra.mxu0 %v3606
    %3703 = vmatprep.subr.bf16.mxu0 0
    %3704 = vmatpush1.bf16.msra.mxu0 %v3607
    %3705 = vmatprep.subr.bf16.mxu0 0
    %3706 = vmatpush1.bf16.msra.mxu0 %v3608
    %3707 = vmatprep.subr.bf16.mxu0 0
    %3708 = vmatpush1.bf16.msra.mxu0 %v3609
    %3709 = vmatprep.subr.bf16.mxu0 0
    %3710 = vmatpush1.bf16.msra.mxu0 %v3610
    %3711 = vmatprep.subr.bf16.mxu0 0
    %3712 = vmatpush1.bf16.msra.mxu0 %v3611
    %3713 = vmatprep.subr.bf16.mxu0 0
    %3714 = vmatpush1.bf16.msra.mxu0 %v3612
    %3715 = vmatprep.subr.bf16.mxu0 0
    %3716 = vmatpush1.bf16.msra.mxu0 %v3613
    %3717 = vmatprep.subr.bf16.mxu0 0
    %3718 = vmatpush1.bf16.msra.mxu0 %v3614
    %3719 = vmatprep.subr.bf16.mxu0 0
    %3720 = vmatpush1.bf16.msra.mxu0 %v3615
    %3721 = vmatprep.subr.bf16.mxu0 0
    %3722 = vmatpush1.bf16.msra.mxu0 0
    %3723 = vmatprep.subr.bf16.mxu0 0
    %3724 = vmatpush1.bf16.msra.mxu0 0
    %3725 = vmatprep.subr.bf16.mxu0 0
    %3726 = vmatpush1.bf16.msra.mxu0 0
    %3727 = vmatprep.subr.bf16.mxu0 0
    %3728 = vmatpush1.bf16.msra.mxu0 0
    %3729 = vmatprep.mubr.bf16.mxu0 %v3629
    %3730 = vmatmul.mubr.bf16.gmra.mrb[0].mxu0 %v3506
    %v3731 = vpop.f32.mrb[0].mxu0
    %v3732 = vadd.f32 %v3555, %v3731
    %v3733 = vpop.f32.mrb[0].mxu0
    %v3734 = vpop.f32.mrb[0].mxu0
    %v3735 = vadd.f32 %v3555, %v3734
    %v3736 = vpop.f32.mrb[0].mxu0
    %3737 = vmatprep.mubr.bf16.mxu0 %v3632
    %3738 = vmatmul.mubr.bf16.gmra.mrb[0].mxu0 %v3508
    %v3739 = vpop.f32.mrb[0].mxu0
    %v3740 = vadd.f32 %v3555, %v3739
    %v3741 = vpop.f32.mrb[0].mxu0
    %v3742 = vpop.f32.mrb[0].mxu0
    %v3743 = vadd.f32 %v3555, %v3742
    %v3744 = vpop.f32.mrb[0].mxu0
    %3745 = vmatprep.mubr.bf16.mxu0 %v3635
    %3746 = vmatmul.mubr.bf16.gmra.mrb[0].mxu0 %v3510
    %v3747 = vpop.f32.mrb[0].mxu0
    %v3748 = vadd.f32 %v3555, %v3747
    %v3749 = vpop.f32.mrb[0].mxu0
    %v3750 = vpop.f32.mrb[0].mxu0
    %v3751 = vadd.f32 %v3555, %v3750
    %v3752 = vpop.f32.mrb[0].mxu0
    %3753 = vmatprep.mubr.bf16.mxu0 %v3638
    %3754 = vmatmul.mubr.bf16.gmra.mrb[0].mxu0 %v3512
    %v3755 = vpop.f32.mrb[0].mxu0
    %v3756 = vadd.f32 %v3555, %v3755
    %v3757 = vpop.f32.mrb[0].mxu0
    %v3758 = vpop.f32.mrb[0].mxu0
    %v3759 = vadd.f32 %v3555, %v3758
    %v3760 = vpop.f32.mrb[0].mxu0
    %3761 = vmatprep.mubr.bf16.mxu0 %v3641
    %3762 = vmatmul.mubr.bf16.gmra.mrb[0].mxu0 %v3514
    %v3763 = vpop.f32.mrb[0].mxu0
    %v3764 = vadd.f32 %v3555, %v3763
    %v3765 = vpop.f32.mrb[0].mxu0
    %v3766 = vpop.f32.mrb[0].mxu0
    %v3767 = vadd.f32 %v3555, %v3766
    %v3768 = vpop.f32.mrb[0].mxu0
    %3769 = vmatprep.mubr.bf16.mxu0 %v3644
    %3770 = vmatmul.mubr.bf16.gmra.mrb[0].mxu0 %v3516
    %v3771 = vpop.f32.mrb[0].mxu0
    %v3772 = vadd.f32 %v3555, %v3771
    %v3773 = vpop.f32.mrb[0].mxu0
    %v3774 = vpop.f32.mrb[0].mxu0
    %v3775 = vadd.f32 %v3555, %v3774
    %v3776 = vpop.f32.mrb[0].mxu0
    %3777 = vmatprep.mubr.bf16.mxu0 %v3647
    %3778 = vmatmul.mubr.bf16.gmra.mrb[0].mxu0 %v3518
    %v3779 = vpop.f32.mrb[0].mxu0
    %v3780 = vadd.f32 %v3555, %v3779
    %v3781 = vpop.f32.mrb[0].mxu0
    %v3782 = vpop.f32.mrb[0].mxu0
    %v3783 = vadd.f32 %v3555, %v3782
    %v3784 = vpop.f32.mrb[0].mxu0
    %3785 = vmatprep.mubr.bf16.mxu0 %v3650
    %3786 = vmatmul.mubr.bf16.gmra.mrb[0].mxu0 %v3520
    %v3787 = vpop.f32.mrb[0].mxu0
    %v3788 = vadd.f32 %v3555, %v3787
    %v3789 = vpop.f32.mrb[0].mxu0
    %v3790 = vpop.f32.mrb[0].mxu0
    %v3791 = vadd.f32 %v3555, %v3790
    %v3792 = vpop.f32.mrb[0].mxu0
    %3793 = vmatprep.mubr.bf16.mxu0 %v3653
    %3794 = vmatmul.mubr.bf16.gmra.mrb[0].mxu0 %v3522
    %v3795 = vpop.f32.mrb[0].mxu0
    %v3796 = vadd.f32 %v3555, %v3795
    %v3797 = vpop.f32.mrb[0].mxu0
    %v3798 = vpop.f32.mrb[0].mxu0
    %v3799 = vadd.f32 %v3555, %v3798
    %v3800 = vpop.f32.mrb[0].mxu0
    %3801 = vmatprep.mubr.bf16.mxu0 %v3656
    %3802 = vmatmul.mubr.bf16.gmra.mrb[0].mxu0 %v3524
    %v3803 = vpop.f32.mrb[0].mxu0
    %v3804 = vadd.f32 %v3555, %v3803
    %v3805 = vpop.f32.mrb[0].mxu0
    %v3806 = vpop.f32.mrb[0].mxu0
    %v3807 = vadd.f32 %v3555, %v3806
    %v3808 = vpop.f32.mrb[0].mxu0
    %3809 = vmatprep.mubr.bf16.mxu0 %v3659
    %3810 = vmatmul.mubr.bf16.gmra.mrb[0].mxu0 %v3526
    %v3811 = vpop.f32.mrb[0].mxu0
    %v3812 = vadd.f32 %v3555, %v3811
    %v3813 = vpop.f32.mrb[0].mxu0
    %v3814 = vpop.f32.mrb[0].mxu0
    %v3815 = vadd.f32 %v3555, %v3814
    %v3816 = vpop.f32.mrb[0].mxu0
    %3817 = vmatprep.mubr.bf16.mxu0 %v3662
    %3818 = vmatmul.mubr.bf16.gmra.mrb[0].mxu0 %v3528
    %v3819 = vpop.f32.mrb[0].mxu0
    %v3820 = vadd.f32 %v3555, %v3819
    %v3821 = vpop.f32.mrb[0].mxu0
    %v3822 = vpop.f32.mrb[0].mxu0
    %v3823 = vadd.f32 %v3555, %v3822
    %v3824 = vpop.f32.mrb[0].mxu0
    %3825 = vmatprep.mubr.bf16.mxu0 %v3665
    %3826 = vmatmul.mubr.bf16.gmra.mrb[0].mxu0 %v3530
    %v3827 = vpop.f32.mrb[0].mxu0
    %v3828 = vadd.f32 %v3555, %v3827
    %v3829 = vpop.f32.mrb[0].mxu0
    %v3830 = vpop.f32.mrb[0].mxu0
    %v3831 = vadd.f32 %v3555, %v3830
    %v3832 = vpop.f32.mrb[0].mxu0
    %3833 = vmatprep.mubr.bf16.mxu0 %v3668
    %3834 = vmatmul.mubr.bf16.gmra.mrb[0].mxu0 %v3532
    %v3835 = vpop.f32.mrb[0].mxu0
    %v3836 = vadd.f32 %v3555, %v3835
    %v3837 = vpop.f32.mrb[0].mxu0
    %v3838 = vpop.f32.mrb[0].mxu0
    %v3839 = vadd.f32 %v3555, %v3838
    %v3840 = vpop.f32.mrb[0].mxu0
    %3841 = vmatprep.mubr.bf16.mxu0 %v3671
    %3842 = vmatmul.mubr.bf16.gmra.mrb[0].mxu0 %v3534
    %v3843 = vpop.f32.mrb[0].mxu0
    %v3844 = vadd.f32 %v3555, %v3843
    %v3845 = vpop.f32.mrb[0].mxu0
    %v3846 = vpop.f32.mrb[0].mxu0
    %v3847 = vadd.f32 %v3555, %v3846
    %v3848 = vpop.f32.mrb[0].mxu0
    %3849 = vmatprep.mubr.bf16.mxu0 %v3674
    %3850 = vmatmul.mubr.bf16.gmra.mrb[0].mxu0 %v3536
    %v3851 = vpop.f32.mrb[0].mxu0
    %v3852 = vadd.f32 %v3555, %v3851
    %v3853 = vpop.f32.mrb[0].mxu0
    %v3854 = vpop.f32.mrb[0].mxu0
    %v3855 = vadd.f32 %v3555, %v3854
    %v3856 = vpop.f32.mrb[0].mxu0
    %3857 = vmatprep.mubr.bf16.mxu0 %v3677
    %3858 = vmatmul.mubr.bf16.gmra.mrb[0].mxu0 %v3538
    %v3859 = vpop.f32.mrb[0].mxu0
    %v3860 = vadd.f32 %v3555, %v3859
    %v3861 = vpop.f32.mrb[0].mxu0
    %v3862 = vpop.f32.mrb[0].mxu0
    %v3863 = vadd.f32 %v3555, %v3862
    %v3864 = vpop.f32.mrb[0].mxu0
    %3865 = vmatprep.mubr.bf16.mxu0 %v3680
    %3866 = vmatmul.mubr.bf16.gmra.mrb[0].mxu0 %v3540
    %v3867 = vpop.f32.mrb[0].mxu0
    %v3868 = vadd.f32 %v3555, %v3867
    %v3869 = vpop.f32.mrb[0].mxu0
    %v3870 = vpop.f32.mrb[0].mxu0
    %v3871 = vadd.f32 %v3555, %v3870
    %v3872 = vpop.f32.mrb[0].mxu0
    %3873 = vmatprep.mubr.bf16.mxu0 %v3683
    %3874 = vmatmul.mubr.bf16.gmra.mrb[0].mxu0 %v3542
    %v3875 = vpop.f32.mrb[0].mxu0
    %v3876 = vadd.f32 %v3555, %v3875
    %v3877 = vpop.f32.mrb[0].mxu0
    %v3878 = vpop.f32.mrb[0].mxu0
    %v3879 = vadd.f32 %v3555, %v3878
    %v3880 = vpop.f32.mrb[0].mxu0
    %3881 = vmatprep.mubr.bf16.mxu0 %v3686
    %3882 = vmatmul.mubr.bf16.gmra.mrb[0].mxu0 %v3544
    %v3883 = vpop.f32.mrb[0].mxu0
    %v3884 = vadd.f32 %v3555, %v3883
    %v3885 = vpop.f32.mrb[0].mxu0
    %v3886 = vpop.f32.mrb[0].mxu0
    %v3887 = vadd.f32 %v3555, %v3886
    %v3888 = vpop.f32.mrb[0].mxu0
    %3889 = vmatprep.mubr.bf16.mxu0 %v3689
    %3890 = vmatmul.mubr.bf16.gmra.mrb[0].mxu0 %v3546
    %v3891 = vpop.f32.mrb[0].mxu0
    %v3892 = vadd.f32 %v3555, %v3891
    %v3893 = vpop.f32.mrb[0].mxu0
    %v3894 = vpop.f32.mrb[0].mxu0
    %v3895 = vadd.f32 %v3555, %v3894
    %v3896 = vpop.f32.mrb[0].mxu0
    %3897 = vmatprep.mubr.bf16.mxu0 %v3692
    %3898 = vmatmul.mubr.bf16.gmra.mrb[0].mxu0 %v3548
    %v3899 = vpop.f32.mrb[0].mxu0
    %v3900 = vadd.f32 %v3555, %v3899
    %v3901 = vpop.f32.mrb[0].mxu0
    %v3902 = vpop.f32.mrb[0].mxu0
    %v3903 = vadd.f32 %v3555, %v3902
    %v3904 = vpop.f32.mrb[0].mxu0
    %3905 = vmatprep.mubr.bf16.mxu0 %v3695
    %3906 = vmatmul.mubr.bf16.gmra.mrb[0].mxu0 %v3550
    %v3907 = vpop.f32.mrb[0].mxu0
    %v3908 = vadd.f32 %v3555, %v3907
    %v3909 = vpop.f32.mrb[0].mxu0
    %v3910 = vpop.f32.mrb[0].mxu0
    %v3911 = vpop.f32.mrb[0].mxu0
    %3912 = vdwg.mxu0
    %v3913 = vmax.f32 %v3732, 0.0
    %v3914 = vmax.f32 %v3735, 0.0
    %v3915 = vmax.f32 %v3740, 0.0
    %v3916 = vmax.f32 %v3743, 0.0
    %v3917 = vmax.f32 %v3748, 0.0
    %v3918 = vmax.f32 %v3751, 0.0
    %v3919 = vmax.f32 %v3756, 0.0
    %v3920 = vmax.f32 %v3759, 0.0
    %v3921 = vmax.f32 %v3764, 0.0
    %v3922 = vmax.f32 %v3767, 0.0
    %v3923 = vmax.f32 %v3772, 0.0
    %v3924 = vmax.f32 %v3775, 0.0
    %v3925 = vmax.f32 %v3780, 0.0
    %v3926 = vmax.f32 %v3783, 0.0
    %v3927 = vmax.f32 %v3788, 0.0
    %v3928 = vmax.f32 %v3791, 0.0
    %v3929 = vmax.f32 %v3796, 0.0
    %v3930 = vmax.f32 %v3799, 0.0
    %v3931 = vmax.f32 %v3804, 0.0
    %v3932 = vmax.f32 %v3807, 0.0
    %v3933 = vmax.f32 %v3812, 0.0
    %v3934 = vmax.f32 %v3815, 0.0
    %v3935 = vmax.f32 %v3820, 0.0
    %v3936 = vmax.f32 %v3823, 0.0
    %v3937 = vmax.f32 %v3828, 0.0
    %v3938 = vmax.f32 %v3831, 0.0
    %v3939 = vmax.f32 %v3836, 0.0
    %v3940 = vmax.f32 %v3839, 0.0
    %v3941 = vmax.f32 %v3844, 0.0
    %v3942 = vmax.f32 %v3847, 0.0
    %v3943 = vmax.f32 %v3852, 0.0
    %v3944 = vmax.f32 %v3855, 0.0
    %v3945 = vmax.f32 %v3860, 0.0
    %v3946 = vmax.f32 %v3863, 0.0
    %v3947 = vmax.f32 %v3868, 0.0
    %v3948 = vmax.f32 %v3871, 0.0
    %v3949 = vmax.f32 %v3876, 0.0
    %v3950 = vmax.f32 %v3879, 0.0
    %v3951 = vmax.f32 %v3884, 0.0
    %v3952 = vmax.f32 %v3887, 0.0
    %v3953 = vmax.f32 %v3892, 0.0
    %v3954 = vmax.f32 %v3895, 0.0
    %v3955 = vmax.f32 %v3900, 0.0
    %v3956 = vmax.f32 %v3903, 0.0
    %v3957 = vmax.f32 %v3908, 0.0
    %v3958 = vld [vmem:[%s2 + $0xa0] sm:$0xf]
    %v3959 = vld [vmem:[%s2 + $0xa4] sm:$0xf]
    %v3960 = vld [vmem:[%s2 + $0xa8] sm:$0xf]
    %v3961 = vld [vmem:[%s2 + $0xac] sm:$0xf]
    %v3962 = vld [vmem:[%s2 + $0xb0] sm:$0xf]
    %v3963 = vld [vmem:[%s2 + $0xb4] sm:$0xf]
    %v3964 = vld [vmem:[%s2 + $0xb8] sm:$0xf]
    %v3965 = vld [vmem:[%s2 + $0xbc] sm:$0xf]
    %v3966 = vld [vmem:[%s2 + $0xc0] sm:$0xf]
    %v3967 = vld [vmem:[%s2 + $0xc4] sm:$0xf]
    %v3968 = vld [vmem:[%s2 + $0xc8] sm:$0xf]
    %v3969 = vld [vmem:[%s2 + $0xcc] sm:$0xf]
    %v3970 = vld [vmem:[%s2 + $0xd0] sm:$0xf]
    %v3971 = vld [vmem:[%s2 + $0xd4] sm:$0xf]
    %v3972 = vld [vmem:[%s2 + $0xd8] sm:$0xf]
    %v3973 = vld [vmem:[%s2 + $0xdc] sm:$0xf]
    %v3974 = vld [vmem:[%s3 + $0x3] sm:$0x1]
    %v3975 = vpack.c.bf16 %v3914, %v3913
    %v3976 = vpack.c.bf16 %v3916, %v3915
    %v3977 = vpack.c.bf16 %v3918, %v3917
    %v3978 = vpack.c.bf16 %v3920, %v3919
    %v3979 = vpack.c.bf16 %v3922, %v3921
    %v3980 = vpack.c.bf16 %v3924, %v3923
    %v3981 = vpack.c.bf16 %v3926, %v3925
    %v3982 = vpack.c.bf16 %v3928, %v3927
    %v3983 = vpack.c.bf16 %v3930, %v3929
    %v3984 = vpack.c.bf16 %v3932, %v3931
    %v3985 = vpack.c.bf16 %v3934, %v3933
    %v3986 = vpack.c.bf16 %v3936, %v3935
    %v3987 = vpack.c.bf16 %v3938, %v3937
    %v3988 = vpack.c.bf16 %v3940, %v3939
    %v3989 = vpack.c.bf16 %v3942, %v3941
    %v3990 = vpack.c.bf16 %v3944, %v3943
    %v3991 = vpack.c.bf16 %v3946, %v3945
    %v3992 = vpack.c.bf16 %v3948, %v3947
    %v3993 = vpack.c.bf16 %v3950, %v3949
    %v3994 = vpack.c.bf16 %v3952, %v3951
    %v3995 = vpack.c.bf16 %v3954, %v3953
    %v3996 = vpack.c.bf16 %v3956, %v3955
    %v3997 = vpack.c.bf16 %v3957, %v3957
    %v3998 = vlaneseq
    %v3999 = vshrl.u32 %v3998, 7
    %v4000 = vsub.s32 0, %v3999
    %v4001 = vrot.slane %v3974, %v4000
    %v4018 = vunpack.c.l.b16 %v3958
    %v4019 = vunpack.c.l.b16 %v3959
    %v4020 = vunpack.c.l.b16 %v3960
    %v4021 = vunpack.c.l.b16 %v3961
    %v4022 = vunpack.c.l.b16 %v3962
    %v4023 = vunpack.c.l.b16 %v3963
    %v4024 = vunpack.c.l.b16 %v3964
    %v4025 = vunpack.c.l.b16 %v3965
    %v4026 = vunpack.c.l.b16 %v3966
    %v4027 = vunpack.c.l.b16 %v3967
    %v4028 = vunpack.c.l.b16 %v3968
    %v4029 = vunpack.c.l.b16 %v3969
    %v4030 = vunpack.c.l.b16 %v3970
    %v4031 = vunpack.c.l.b16 %v3971
    %v4032 = vunpack.c.l.b16 %v3972
    %v4033 = vunpack.c.l.b16 %v3973
    %v4034 = vpack.c.b16 %v4019, %v4018
    %v4035 = vpack.c.b16 %v4021, %v4020
    %v4036 = vpack.c.b16 %v4023, %v4022
    %v4037 = vpack.c.b16 %v4025, %v4024
    %v4038 = vpack.c.b16 %v4027, %v4026
    %v4039 = vpack.c.b16 %v4029, %v4028
    %v4040 = vpack.c.b16 %v4031, %v4030
    %v4041 = vpack.c.b16 %v4033, %v4032
    %4050 = vmatprep.subr.bf16.mxu0 0
    %4051 = vmatpush1.bf16.msra.mxu0 %v4034
    %4052 = vmatprep.subr.bf16.mxu0 0
    %4053 = vmatpush1.bf16.msra.mxu0 %v4035
    %4054 = vmatprep.subr.bf16.mxu0 0
    %4055 = vmatpush1.bf16.msra.mxu0 %v4036
    %4056 = vmatprep.subr.bf16.mxu0 0
    %4057 = vmatpush1.bf16.msra.mxu0 %v4037
    %4058 = vmatprep.subr.bf16.mxu0 0
    %4059 = vmatpush1.bf16.msra.mxu0 %v4038
    %4060 = vmatprep.subr.bf16.mxu0 0
    %4061 = vmatpush1.bf16.msra.mxu0 %v4039
    %4062 = vmatprep.subr.bf16.mxu0 0
    %4063 = vmatpush1.bf16.msra.mxu0 %v4040
    %4064 = vmatprep.subr.bf16.mxu0 0
    %4065 = vmatpush1.bf16.msra.mxu0 %v4041
    %4066 = vmatprep.subr.bf16.mxu0 0
    %4067 = vmatpush1.bf16.msra.mxu0 0
    %4068 = vmatprep.subr.bf16.mxu0 0
    %4069 = vmatpush1.bf16.msra.mxu0 0
    %4070 = vmatprep.subr.bf16.mxu0 0
    %4071 = vmatpush1.bf16.msra.mxu0 0
    %4072 = vmatprep.subr.bf16.mxu0 0
    %4073 = vmatpush1.bf16.msra.mxu0 0
    %4074 = vmatprep.subr.bf16.mxu0 0
    %4075 = vmatpush1.bf16.msra.mxu0 0
    %4076 = vmatprep.subr.bf16.mxu0 0
    %4077 = vmatpush1.bf16.msra.mxu0 0
    %4078 = vmatprep.subr.bf16.mxu0 0
    %4079 = vmatpush1.bf16.msra.mxu0 0
    %4080 = vmatprep.subr.bf16.mxu0 0
    %4081 = vmatpush1.bf16.msra.mxu0 0
    %4082 = vmatprep.mubr.bf16.mxu0 0
    %4083 = vmatmul.mubr.bf16.gmra.mrb[0].mxu0 %v3975
    %v4084 = vpop.f32.mrb[0].mxu0
    %v4085 = vadd.f32 %v4001, %v4084
    %v4086 = vpop.f32.mrb[0].mxu0
    %v4087 = vpop.f32.mrb[0].mxu0
    %v4088 = vadd.f32 %v4001, %v4087
    %v4089 = vpop.f32.mrb[0].mxu0
    %4090 = vmatprep.mubr.bf16.mxu0 0
    %4091 = vmatmul.mubr.bf16.gmra.mrb[0].mxu0 %v3976
    %v4092 = vpop.f32.mrb[0].mxu0
    %v4093 = vadd.f32 %v4001, %v4092
    %v4094 = vpop.f32.mrb[0].mxu0
    %v4095 = vpop.f32.mrb[0].mxu0
    %v4096 = vadd.f32 %v4001, %v4095
    %v4097 = vpop.f32.mrb[0].mxu0
    %4098 = vmatprep.mubr.bf16.mxu0 0
    %4099 = vmatmul.mubr.bf16.gmra.mrb[0].mxu0 %v3977
    %v4100 = vpop.f32.mrb[0].mxu0
    %v4101 = vadd.f32 %v4001, %v4100
    %v4102 = vpop.f32.mrb[0].mxu0
    %v4103 = vpop.f32.mrb[0].mxu0
    %v4104 = vadd.f32 %v4001, %v4103
    %v4105 = vpop.f32.mrb[0].mxu0
    %4106 = vmatprep.mubr.bf16.mxu0 0
    %4107 = vmatmul.mubr.bf16.gmra.mrb[0].mxu0 %v3978
    %v4108 = vpop.f32.mrb[0].mxu0
    %v4109 = vadd.f32 %v4001, %v4108
    %v4110 = vpop.f32.mrb[0].mxu0
    %v4111 = vpop.f32.mrb[0].mxu0
    %v4112 = vadd.f32 %v4001, %v4111
    %v4113 = vpop.f32.mrb[0].mxu0
    %4114 = vmatprep.mubr.bf16.mxu0 0
    %4115 = vmatmul.mubr.bf16.gmra.mrb[0].mxu0 %v3979
    %v4116 = vpop.f32.mrb[0].mxu0
    %v4117 = vadd.f32 %v4001, %v4116
    %v4118 = vpop.f32.mrb[0].mxu0
    %v4119 = vpop.f32.mrb[0].mxu0
    %v4120 = vadd.f32 %v4001, %v4119
    %v4121 = vpop.f32.mrb[0].mxu0
    %4122 = vmatprep.mubr.bf16.mxu0 0
    %4123 = vmatmul.mubr.bf16.gmra.mrb[0].mxu0 %v3980
    %v4124 = vpop.f32.mrb[0].mxu0
    %v4125 = vadd.f32 %v4001, %v4124
    %v4126 = vpop.f32.mrb[0].mxu0
    %v4127 = vpop.f32.mrb[0].mxu0
    %v4128 = vadd.f32 %v4001, %v4127
    %v4129 = vpop.f32.mrb[0].mxu0
    %4130 = vmatprep.mubr.bf16.mxu0 0
    %4131 = vmatmul.mubr.bf16.gmra.mrb[0].mxu0 %v3981
    %v4132 = vpop.f32.mrb[0].mxu0
    %v4133 = vadd.f32 %v4001, %v4132
    %v4134 = vpop.f32.mrb[0].mxu0
    %v4135 = vpop.f32.mrb[0].mxu0
    %v4136 = vadd.f32 %v4001, %v4135
    %v4137 = vpop.f32.mrb[0].mxu0
    %4138 = vmatprep.mubr.bf16.mxu0 0
    %4139 = vmatmul.mubr.bf16.gmra.mrb[0].mxu0 %v3982
    %v4140 = vpop.f32.mrb[0].mxu0
    %v4141 = vadd.f32 %v4001, %v4140
    %v4142 = vpop.f32.mrb[0].mxu0
    %v4143 = vpop.f32.mrb[0].mxu0
    %v4144 = vadd.f32 %v4001, %v4143
    %v4145 = vpop.f32.mrb[0].mxu0
    %4146 = vmatprep.mubr.bf16.mxu0 0
    %4147 = vmatmul.mubr.bf16.gmra.mrb[0].mxu0 %v3983
    %v4148 = vpop.f32.mrb[0].mxu0
    %v4149 = vadd.f32 %v4001, %v4148
    %v4150 = vpop.f32.mrb[0].mxu0
    %v4151 = vpop.f32.mrb[0].mxu0
    %v4152 = vadd.f32 %v4001, %v4151
    %v4153 = vpop.f32.mrb[0].mxu0
    %4154 = vmatprep.mubr.bf16.mxu0 0
    %4155 = vmatmul.mubr.bf16.gmra.mrb[0].mxu0 %v3984
    %v4156 = vpop.f32.mrb[0].mxu0
    %v4157 = vadd.f32 %v4001, %v4156
    %v4158 = vpop.f32.mrb[0].mxu0
    %v4159 = vpop.f32.mrb[0].mxu0
    %v4160 = vadd.f32 %v4001, %v4159
    %v4161 = vpop.f32.mrb[0].mxu0
    %4162 = vmatprep.mubr.bf16.mxu0 0
    %4163 = vmatmul.mubr.bf16.gmra.mrb[0].mxu0 %v3985
    %v4164 = vpop.f32.mrb[0].mxu0
    %v4165 = vadd.f32 %v4001, %v4164
    %v4166 = vpop.f32.mrb[0].mxu0
    %v4167 = vpop.f32.mrb[0].mxu0
    %v4168 = vadd.f32 %v4001, %v4167
    %v4169 = vpop.f32.mrb[0].mxu0
    %4170 = vmatprep.mubr.bf16.mxu0 0
    %4171 = vmatmul.mubr.bf16.gmra.mrb[0].mxu0 %v3986
    %v4172 = vpop.f32.mrb[0].mxu0
    %v4173 = vadd.f32 %v4001, %v4172
    %v4174 = vpop.f32.mrb[0].mxu0
    %v4175 = vpop.f32.mrb[0].mxu0
    %v4176 = vadd.f32 %v4001, %v4175
    %v4177 = vpop.f32.mrb[0].mxu0
    %4178 = vmatprep.mubr.bf16.mxu0 0
    %4179 = vmatmul.mubr.bf16.gmra.mrb[0].mxu0 %v3987
    %v4180 = vpop.f32.mrb[0].mxu0
    %v4181 = vadd.f32 %v4001, %v4180
    %v4182 = vpop.f32.mrb[0].mxu0
    %v4183 = vpop.f32.mrb[0].mxu0
    %v4184 = vadd.f32 %v4001, %v4183
    %v4185 = vpop.f32.mrb[0].mxu0
    %4186 = vmatprep.mubr.bf16.mxu0 0
    %4187 = vmatmul.mubr.bf16.gmra.mrb[0].mxu0 %v3988
    %v4188 = vpop.f32.mrb[0].mxu0
    %v4189 = vadd.f32 %v4001, %v4188
    %v4190 = vpop.f32.mrb[0].mxu0
    %v4191 = vpop.f32.mrb[0].mxu0
    %v4192 = vadd.f32 %v4001, %v4191
    %v4193 = vpop.f32.mrb[0].mxu0
    %4194 = vmatprep.mubr.bf16.mxu0 0
    %4195 = vmatmul.mubr.bf16.gmra.mrb[0].mxu0 %v3989
    %v4196 = vpop.f32.mrb[0].mxu0
    %v4197 = vadd.f32 %v4001, %v4196
    %v4198 = vpop.f32.mrb[0].mxu0
    %v4199 = vpop.f32.mrb[0].mxu0
    %v4200 = vadd.f32 %v4001, %v4199
    %v4201 = vpop.f32.mrb[0].mxu0
    %4202 = vmatprep.mubr.bf16.mxu0 0
    %4203 = vmatmul.mubr.bf16.gmra.mrb[0].mxu0 %v3990
    %v4204 = vpop.f32.mrb[0].mxu0
    %v4205 = vadd.f32 %v4001, %v4204
    %v4206 = vpop.f32.mrb[0].mxu0
    %v4207 = vpop.f32.mrb[0].mxu0
    %v4208 = vadd.f32 %v4001, %v4207
    %v4209 = vpop.f32.mrb[0].mxu0
    %4210 = vmatprep.mubr.bf16.mxu0 0
    %4211 = vmatmul.mubr.bf16.gmra.mrb[0].mxu0 %v3991
    %v4212 = vpop.f32.mrb[0].mxu0
    %v4213 = vadd.f32 %v4001, %v4212
    %v4214 = vpop.f32.mrb[0].mxu0
    %v4215 = vpop.f32.mrb[0].mxu0
    %v4216 = vadd.f32 %v4001, %v4215
    %v4217 = vpop.f32.mrb[0].mxu0
    %4218 = vmatprep.mubr.bf16.mxu0 0
    %4219 = vmatmul.mubr.bf16.gmra.mrb[0].mxu0 %v3992
    %v4220 = vpop.f32.mrb[0].mxu0
    %v4221 = vadd.f32 %v4001, %v4220
    %v4222 = vpop.f32.mrb[0].mxu0
    %v4223 = vpop.f32.mrb[0].mxu0
    %v4224 = vadd.f32 %v4001, %v4223
    %v4225 = vpop.f32.mrb[0].mxu0
    %4226 = vmatprep.mubr.bf16.mxu0 0
    %4227 = vmatmul.mubr.bf16.gmra.mrb[0].mxu0 %v3993
    %v4228 = vpop.f32.mrb[0].mxu0
    %v4229 = vadd.f32 %v4001, %v4228
    %v4230 = vpop.f32.mrb[0].mxu0
    %v4231 = vpop.f32.mrb[0].mxu0
    %v4232 = vadd.f32 %v4001, %v4231
    %v4233 = vpop.f32.mrb[0].mxu0
    %4234 = vmatprep.mubr.bf16.mxu0 0
    %4235 = vmatmul.mubr.bf16.gmra.mrb[0].mxu0 %v3994
    %v4236 = vpop.f32.mrb[0].mxu0
    %v4237 = vadd.f32 %v4001, %v4236
    %v4238 = vpop.f32.mrb[0].mxu0
    %v4239 = vpop.f32.mrb[0].mxu0
    %v4240 = vadd.f32 %v4001, %v4239
    %v4241 = vpop.f32.mrb[0].mxu0
    %4242 = vmatprep.mubr.bf16.mxu0 0
    %4243 = vmatmul.mubr.bf16.gmra.mrb[0].mxu0 %v3995
    %v4244 = vpop.f32.mrb[0].mxu0
    %v4245 = vadd.f32 %v4001, %v4244
    %v4246 = vpop.f32.mrb[0].mxu0
    %v4247 = vpop.f32.mrb[0].mxu0
    %v4248 = vadd.f32 %v4001, %v4247
    %v4249 = vpop.f32.mrb[0].mxu0
    %4250 = vmatprep.mubr.bf16.mxu0 0
    %4251 = vmatmul.mubr.bf16.gmra.mrb[0].mxu0 %v3996
    %v4252 = vpop.f32.mrb[0].mxu0
    %v4253 = vadd.f32 %v4001, %v4252
    %v4254 = vpop.f32.mrb[0].mxu0
    %v4255 = vpop.f32.mrb[0].mxu0
    %v4256 = vadd.f32 %v4001, %v4255
    %v4257 = vpop.f32.mrb[0].mxu0
    %4258 = vmatprep.mubr.bf16.mxu0 0
    %4259 = vmatmul.mubr.bf16.gmra.mrb[0].mxu0 %v3997
    %v4260 = vpop.f32.mrb[0].mxu0
    %v4261 = vadd.f32 %v4001, %v4260
    %v4262 = vpop.f32.mrb[0].mxu0
    %v4263 = vpop.f32.mrb[0].mxu0
    %v4264 = vpop.f32.mrb[0].mxu0
    %4265 = vdwg.mxu0
    %4266 = vst.msk [vmem:[%s4] sm:$0xff] %vm486, %v4085
    %4267 = vst.msk [vmem:[%s4 + $0x8] sm:$0xff] %vm486, %v4088
    %4268 = vst.msk [vmem:[%s4 + $0x10] sm:$0xff] %vm486, %v4093
    %4269 = vst.msk [vmem:[%s4 + $0x18] sm:$0xff] %vm486, %v4096
    %4270 = vst.msk [vmem:[%s4 + $0x20] sm:$0xff] %vm486, %v4101
    %4271 = vst.msk [vmem:[%s4 + $0x28] sm:$0xff] %vm486, %v4104
    %4272 = vst.msk [vmem:[%s4 + $0x30] sm:$0xff] %vm486, %v4109
    %4273 = vst.msk [vmem:[%s4 + $0x38] sm:$0xff] %vm486, %v4112
    %4274 = vst.msk [vmem:[%s4 + $0x40] sm:$0xff] %vm486, %v4117
    %4275 = vst.msk [vmem:[%s4 + $0x48] sm:$0xff] %vm486, %v4120
    %4276 = vst.msk [vmem:[%s4 + $0x50] sm:$0xff] %vm486, %v4125
    %4277 = vst.msk [vmem:[%s4 + $0x58] sm:$0xff] %vm486, %v4128
    %4278 = vst.msk [vmem:[%s4 + $0x60] sm:$0xff] %vm486, %v4133
    %4279 = vst.msk [vmem:[%s4 + $0x68] sm:$0xff] %vm486, %v4136
    %4280 = vst.msk [vmem:[%s4 + $0x70] sm:$0xff] %vm486, %v4141
    %4281 = vst.msk [vmem:[%s4 + $0x78] sm:$0xff] %vm486, %v4144
    %4282 = vst.msk [vmem:[%s4 + $0x80] sm:$0xff] %vm486, %v4149
    %4283 = vst.msk [vmem:[%s4 + $0x88] sm:$0xff] %vm486, %v4152
    %4284 = vst.msk [vmem:[%s4 + $0x90] sm:$0xff] %vm486, %v4157
    %4285 = vst.msk [vmem:[%s4 + $0x98] sm:$0xff] %vm486, %v4160
    %4286 = vst.msk [vmem:[%s4 + $0xa0] sm:$0xff] %vm486, %v4165
    %4287 = vst.msk [vmem:[%s4 + $0xa8] sm:$0xff] %vm486, %v4168
    %4288 = vst.msk [vmem:[%s4 + $0xb0] sm:$0xff] %vm486, %v4173
    %4289 = vst.msk [vmem:[%s4 + $0xb8] sm:$0xff] %vm486, %v4176
    %4290 = vst.msk [vmem:[%s4 + $0xc0] sm:$0xff] %vm486, %v4181
    %4291 = vst.msk [vmem:[%s4 + $0xc8] sm:$0xff] %vm486, %v4184
    %4292 = vst.msk [vmem:[%s4 + $0xd0] sm:$0xff] %vm486, %v4189
    %4293 = vst.msk [vmem:[%s4 + $0xd8] sm:$0xff] %vm486, %v4192
    %4294 = vst.msk [vmem:[%s4 + $0xe0] sm:$0xff] %vm486, %v4197
    %4295 = vst.msk [vmem:[%s4 + $0xe8] sm:$0xff] %vm486, %v4200
    %4296 = vst.msk [vmem:[%s4 + $0xf0] sm:$0xff] %vm486, %v4205
    %4297 = vst.msk [vmem:[%s4 + $0xf8] sm:$0xff] %vm486, %v4208
    %4298 = vst.msk [vmem:[%s4 + $0x100] sm:$0xff] %vm486, %v4213
    %4299 = vst.msk [vmem:[%s4 + $0x108] sm:$0xff] %vm486, %v4216
    %4300 = vst.msk [vmem:[%s4 + $0x110] sm:$0xff] %vm486, %v4221
    %4301 = vst.msk [vmem:[%s4 + $0x118] sm:$0xff] %vm486, %v4224
    %4302 = vst.msk [vmem:[%s4 + $0x120] sm:$0xff] %vm486, %v4229
    %4303 = vst.msk [vmem:[%s4 + $0x128] sm:$0xff] %vm486, %v4232
    %4304 = vst.msk [vmem:[%s4 + $0x130] sm:$0xff] %vm486, %v4237
    %4305 = vst.msk [vmem:[%s4 + $0x138] sm:$0xff] %vm486, %v4240
    %4306 = vst.msk [vmem:[%s4 + $0x140] sm:$0xff] %vm486, %v4245
    %4307 = vst.msk [vmem:[%s4 + $0x148] sm:$0xff] %vm486, %v4248
    %4308 = vst.msk [vmem:[%s4 + $0x150] sm:$0xff] %vm486, %v4253
    %4309 = vst.msk [vmem:[%s4 + $0x158] sm:$0xff] %vm486, %v4256
    %4310 = vst.msk [vmem:[%s4 + $0x160] sm:$0xff] %vm486, %v4261
    // Predicated region
    $region22: #{simple_conv1d_forward.1} parent=1 // pred_check
      _
    $region23: #{simple_conv1d_forward.1} parent=1 // pred_check_branch
      %4312 = sbr.rel (0) target = $region25
    $region24: #{simple_conv1d_forward.1} parent=1 // pred_region
      _
    $region25: #{simple_conv1d_forward.1} parent=1 // pred_fallthru
      _
    // Predicated region
    $region26: #{simple_conv1d_forward.1} parent=1 // pred_check
      _
    $region27: #{simple_conv1d_forward.1} parent=1 // pred_check_branch
      %4314 = sbr.rel (0) target = $region29
    $region28: #{simple_conv1d_forward.1} parent=1 // pred_region
      _
    $region29: #{simple_conv1d_forward.1} parent=1 // pred_fallthru
      _
    %4315 = vsyncpa [#allocation3], 1

</llo_original>
